<compile_context>
chip_gen: v6e
topology: v6e:2x2x1
jax: 0.10.0
libtpu: 0.0.40
codegen_flags: <defaults>
</compile_context>

<pallas_src>
import numpy as np
import jax
import jax.numpy as jnp
from jax import lax
from jax.experimental import pallas as pl
from jax.experimental.pallas import tpu as pltpu

EPS = 1e-5

# Static architecture: (cin, cout) per conv layer, all 3x3, stride 1, VALID.
_LAYERS = ((3, 3), (3, 3), (3, 5), (5, 5))
_K = 3
_WPAD = 128          # lane-padded width of the packed weight / shift tables


# ----------------------------- fused Pallas kernel ------------------------- #

def _fused_kernel(x_ref, w_ref, t_ref, sel_ref, o_ref):
    """Whole network for the whole batch in one invocation.

    x_ref:   (N, 3, H, W)      VMEM  input images (NCHW)
    w_ref:   (126, 128)        VMEM  one packed weight row per (layer,ci,kh,kw):
                                     lanes are (n, co) blocks of width win_L,
                                     value = BN-folded w[co, ci, kh, kw]
    t_ref:   (4, 128)          VMEM  per-layer folded BN shift rows (same lane
                                     blocking as the accumulator)
    sel_ref: (97, 40)          VMEM  0/1 selection matrix: picks lane
                                     b*blk_w + 2*xp -> b*4 + xp (pool stride-2
                                     lane compaction, done on the MXU)
    o_ref:   (4, 40)           VMEM  pooled output, lanes = (n, co, x')
    """
    N = x_ref.shape[0]
    H, W = x_ref.shape[2], x_ref.shape[3]

    # Layer-0 "slab getter": per (image, channel) 2-D activation slab.
    get_slab = lambda n, ci: x_ref[n, ci]            # noqa: E731  (H, W)

    hin, win = H, W
    row = 0
    y = None
    acc_w = hout = wout = None

    for layer, (cin, cout) in enumerate(_LAYERS):
        hout, wout = hin - (_K - 1), win - (_K - 1)
        B = N * cout                                  # lane blocks (n, co)
        blk_w = win                                   # lanes per block
        acc_w = B * blk_w - (_K - 1)                  # accumulator width

        # Tile each input channel across all (n, co) lane blocks once.
        tiled = []
        for ci in range(cin):
            pieces = []
            for n in range(N):
                s = get_slab(n, ci)                   # (hin, win), valid data
                pieces.extend([s] * cout)
            tiled.append(jnp.concatenate(pieces, axis=1))   # (hin, B*blk_w)

        # Conv as 9*cin wide VPU FMAs (one per (ci, kh, kw), all cout at once).
        acc = jnp.zeros((hout, acc_w), jnp.float32)
        for ci in range(cin):
            xt = tiled[ci]
            for kh in range(_K):
                for kw in range(_K):
                    wrow = w_ref[row:row + 1, 0:acc_w]              # (1, acc_w)
                    acc = acc + wrow * xt[kh:kh + hout, kw:kw + acc_w]
                    row += 1

        # Folded BN shift + ReLU (scale already folded into the weights).
        y = jnp.maximum(acc + t_ref[layer:layer + 1, 0:acc_w], 0.0)

        # Slab getter for the next layer: contiguous lane slice per (n, ci);
        # lanes x >= wout of each block are garbage and are never read.
        def _mk(yv, bw, nco, vw):
            return lambda n, ci: yv[:, (n * nco + ci) * bw:(n * nco + ci) * bw + vw]
        get_slab = _mk(y, blk_w, cout, wout)
        hin, win = hout, wout

    # ---- 2x2 / stride-2 max pool, fully in registers ----------------------
    hp = hout // 2
    ym = jnp.maximum(y[:, 0:acc_w - 1], y[:, 1:acc_w])        # W-pair max
    yh = jnp.concatenate(
        [jnp.maximum(ym[2 * i:2 * i + 1, :], ym[2 * i + 1:2 * i + 2, :])
         for i in range(hp)], axis=0)                          # H pool (hp, acc_w-1)
    # Stride-2 lane compaction via a 0/1 selection matmul (MXU is idle here);
    # single dense store of the packed pooled result.
    o_ref[...] = jnp.dot(yh, sel_ref[...], preferred_element_type=jnp.float32)


# ------------------- one-time parameter folding / packing ------------------ #

def fold_and_pack(params, n_batch, width):
    """Fold eval-mode BN into the convs and pack the lane-blocked tables.

    Runs ONCE (host-side, numpy) when the parameters are fixed; the per-call
    forward path contains no folding ops.
    """
    w_rows, t_rows = [], []
    win = width
    for (w, b, g, be, m, v) in params:
        w, b, g, be, m, v = map(np.asarray, (w, b, g, be, m, v))
        s = (g / np.sqrt(v + EPS)).astype(np.float32)
        wf = (w * s[:, None, None, None]).astype(np.float32)    # (cout,cin,3,3)
        tf = ((b - m) * s + be).astype(np.float32)               # (cout,)
        cout, cin = wf.shape[0], wf.shape[1]
        B = n_batch * cout
        acc_w = B * win - (_K - 1)

        trow = np.zeros((_WPAD,), np.float32)
        trow[:acc_w] = np.repeat(np.tile(tf, n_batch), win)[:acc_w]
        t_rows.append(trow)

        for ci in range(cin):
            for kh in range(_K):
                for kw in range(_K):
                    blk = np.tile(wf[:, ci, kh, kw], n_batch)     # (B,)
                    wrow = np.zeros((_WPAD,), np.float32)
                    wrow[:acc_w] = np.repeat(blk, win)[:acc_w]
                    w_rows.append(wrow)
        win -= (_K - 1)

    # Selection matrix for the pooled lane compaction of the last layer.
    cout_last = _LAYERS[-1][1]
    B = n_batch * cout_last
    wout = win                       # last layer output width (8)
    blk_w = wout + (_K - 1)          # last layer block width (10)
    acc_w = B * blk_w - (_K - 1)     # 98
    wp = wout // 2                   # 4
    sel = np.zeros((acc_w - 1, B * wp), np.float32)
    for blk in range(B):
        for xp in range(wp):
            sel[blk * blk_w + 2 * xp, blk * wp + xp] = 1.0

    return (jnp.asarray(np.stack(w_rows)),       # (126, 128)
            jnp.asarray(np.stack(t_rows)),       # (4, 128)
            jnp.asarray(sel))                    # (97, 40)


# ------------------------------ forward ------------------------------------ #

def model_forward(x_nchw, packed):
    w_tab, t_tab, sel = packed
    N, C, H, W = x_nchw.shape
    assert C == _LAYERS[0][0]
    n_conv = len(_LAYERS)
    hp = (H - n_conv * (_K - 1)) // 2            # 4
    wp = (W - n_conv * (_K - 1)) // 2            # 4
    cout = _LAYERS[-1][1]
    B = N * cout

    ker_out = pl.pallas_call(
        _fused_kernel,
        out_shape=jax.ShapeDtypeStruct((hp, B * wp), jnp.float32),
        in_specs=[
            pl.BlockSpec(memory_space=pltpu.MemorySpace.VMEM),
            pl.BlockSpec(memory_space=pltpu.MemorySpace.VMEM),
            pl.BlockSpec(memory_space=pltpu.MemorySpace.VMEM),
            pl.BlockSpec(memory_space=pltpu.MemorySpace.VMEM),
        ],
        out_specs=pl.BlockSpec(memory_space=pltpu.MemorySpace.VMEM),
    )(x_nchw.astype(jnp.float32), w_tab, t_tab, sel)

    # kernel output lanes are ordered (n, co, x'); unpack to NCHW.
    return ker_out.reshape(hp, N, cout, wp).transpose(1, 2, 0, 3)


# ------------------------- deterministic parameters ------------------------ #

def make_layer_params(key, cin, cout):
    k1, k2, k3, k4, k5, k6 = jax.random.split(key, 6)
    w = 0.2 * jax.random.normal(k1, (cout, cin, 3, 3), jnp.float32)
    b = 0.1 * jax.random.normal(k2, (cout,), jnp.float32)
    gamma = 1.0 + 0.1 * jax.random.normal(k3, (cout,), jnp.float32)
    beta = 0.1 * jax.random.normal(k4, (cout,), jnp.float32)
    mean = 0.1 * jax.random.normal(k5, (cout,), jnp.float32)
    var = 1.0 + 0.1 * jax.random.uniform(k6, (cout,), jnp.float32)
    return (w, b, gamma, beta, mean, var)


# ------------------------------ reference ---------------------------------- #

def reference_forward(x_nchw, params):
    y = jnp.transpose(x_nchw, (0, 2, 3, 1))
    for (w, b, g, be, m, v) in params:
        wh = jnp.transpose(w, (2, 3, 1, 0))       # OIHW -> HWIO
        y = lax.conv_general_dilated(
            y, wh, (1, 1), 'VALID',
            dimension_numbers=('NHWC', 'HWIO', 'NHWC'))
        y = y + b
        y = (y - m) / jnp.sqrt(v + EPS) * g + be
        y = jnp.maximum(y, 0.0)
    y = lax.reduce_window(y, -jnp.inf, lax.max,
                          (1, 2, 2, 1), (1, 2, 2, 1), 'VALID')
    return jnp.transpose(y, (0, 3, 1, 2))


# --------------------------------- main ------------------------------------ #

if __name__ == "__main__":
    key = jax.random.PRNGKey(0)
    kx, k1, k2, k3, k4 = jax.random.split(key, 5)

    # input: NCHW, batch=2, channels=3, spatial=16x16
    x = jax.random.normal(kx, (2, 3, 16, 16), jnp.float32)

    params = [
        make_layer_params(k1, 3, 3),   # feature1 conv1 + bn1
        make_layer_params(k2, 3, 3),   # feature1 conv2 + bn2
        make_layer_params(k3, 3, 5),   # feature2 conv1 + bn1
        make_layer_params(k4, 5, 5),   # feature2 conv2 + bn2
    ]

    # One-time BN fold + table packing (hoisted out of the forward path).
    packed = fold_and_pack(params, n_batch=x.shape[0], width=x.shape[3])

    forward = jax.jit(model_forward)
    out = jax.block_until_ready(forward(x, packed))
    ref = jax.block_until_ready(reference_forward(x, params))

    assert out.shape == (2, 5, 4, 4), out.shape
    assert jnp.allclose(out, ref, rtol=1e-4, atol=1e-4), "mismatch vs reference"

    print("KERNEL_OK")
</pallas_src>

<mosaic_0001>
module attributes {stable_mosaic.version = 11 : i64} {
  func.func @_fused_kernel(%arg0: memref<2x3x16x16xf32, #tpu.memory_space<vmem>>, %arg1: memref<126x128xf32, #tpu.memory_space<vmem>>, %arg2: memref<4x128xf32, #tpu.memory_space<vmem>>, %arg3: memref<97x40xf32, #tpu.memory_space<vmem>>, %arg4: memref<4x40xf32, #tpu.memory_space<vmem>>) attributes {dimension_semantics = [], scalar_prefetch = 0 : i64, scratch_operands = 0 : i64, tpu.core_type = #tpu.core_type<tc>} {
    %c0 = arith.constant 0 : index
    %c0_0 = arith.constant 0 : index
    %c0_1 = arith.constant 0 : index
    %c0_2 = arith.constant 0 : index
    %0 = vector.load %arg0[%c0, %c0_0, %c0_1, %c0_2] : memref<2x3x16x16xf32, #tpu.memory_space<vmem>>, vector<1x1x16x16xf32>
    %1 = vector.shape_cast %0 : vector<1x1x16x16xf32> to vector<16x16xf32>
    %c1 = arith.constant 1 : index
    %c0_3 = arith.constant 0 : index
    %c0_4 = arith.constant 0 : index
    %c0_5 = arith.constant 0 : index
    %2 = vector.load %arg0[%c1, %c0_3, %c0_4, %c0_5] : memref<2x3x16x16xf32, #tpu.memory_space<vmem>>, vector<1x1x16x16xf32>
    %3 = vector.shape_cast %2 : vector<1x1x16x16xf32> to vector<16x16xf32>
    %4 = tpu.concatenate %1, %1, %1, %3, %3, %3 in 1 : vector<16x16xf32>, vector<16x16xf32>, vector<16x16xf32>, vector<16x16xf32>, vector<16x16xf32>, vector<16x16xf32> -> vector<16x96xf32>
    %c0_6 = arith.constant 0 : index
    %c1_7 = arith.constant 1 : index
    %c0_8 = arith.constant 0 : index
    %c0_9 = arith.constant 0 : index
    %5 = vector.load %arg0[%c0_6, %c1_7, %c0_8, %c0_9] : memref<2x3x16x16xf32, #tpu.memory_space<vmem>>, vector<1x1x16x16xf32>
    %6 = vector.shape_cast %5 : vector<1x1x16x16xf32> to vector<16x16xf32>
    %c1_10 = arith.constant 1 : index
    %c1_11 = arith.constant 1 : index
    %c0_12 = arith.constant 0 : index
    %c0_13 = arith.constant 0 : index
    %7 = vector.load %arg0[%c1_10, %c1_11, %c0_12, %c0_13] : memref<2x3x16x16xf32, #tpu.memory_space<vmem>>, vector<1x1x16x16xf32>
    %8 = vector.shape_cast %7 : vector<1x1x16x16xf32> to vector<16x16xf32>
    %9 = tpu.concatenate %6, %6, %6, %8, %8, %8 in 1 : vector<16x16xf32>, vector<16x16xf32>, vector<16x16xf32>, vector<16x16xf32>, vector<16x16xf32>, vector<16x16xf32> -> vector<16x96xf32>
    %c0_14 = arith.constant 0 : index
    %c2 = arith.constant 2 : index
    %c0_15 = arith.constant 0 : index
    %c0_16 = arith.constant 0 : index
    %10 = vector.load %arg0[%c0_14, %c2, %c0_15, %c0_16] : memref<2x3x16x16xf32, #tpu.memory_space<vmem>>, vector<1x1x16x16xf32>
    %11 = vector.shape_cast %10 : vector<1x1x16x16xf32> to vector<16x16xf32>
    %c1_17 = arith.constant 1 : index
    %c2_18 = arith.constant 2 : index
    %c0_19 = arith.constant 0 : index
    %c0_20 = arith.constant 0 : index
    %12 = vector.load %arg0[%c1_17, %c2_18, %c0_19, %c0_20] : memref<2x3x16x16xf32, #tpu.memory_space<vmem>>, vector<1x1x16x16xf32>
    %13 = vector.shape_cast %12 : vector<1x1x16x16xf32> to vector<16x16xf32>
    %14 = tpu.concatenate %11, %11, %11, %13, %13, %13 in 1 : vector<16x16xf32>, vector<16x16xf32>, vector<16x16xf32>, vector<16x16xf32>, vector<16x16xf32>, vector<16x16xf32> -> vector<16x96xf32>
    %cst = arith.constant 0.000000e+00 : f32
    %15 = vector.broadcast %cst : f32 to vector<14x94xf32>
    %c0_21 = arith.constant 0 : index
    %c0_22 = arith.constant 0 : index
    %16 = vector.load %arg1[%c0_21, %c0_22] : memref<126x128xf32, #tpu.memory_space<vmem>>, vector<1x94xf32>
    %17 = vector.extract_strided_slice %4 {offsets = [0, 0], sizes = [14, 94], strides = [1, 1]} : vector<16x96xf32> to vector<14x94xf32>
    %18 = vector.broadcast %16 : vector<1x94xf32> to vector<14x94xf32>
    %19 = arith.mulf %18, %17 : vector<14x94xf32>
    %20 = arith.addf %15, %19 : vector<14x94xf32>
    %c1_23 = arith.constant 1 : index
    %c0_24 = arith.constant 0 : index
    %21 = vector.load %arg1[%c1_23, %c0_24] : memref<126x128xf32, #tpu.memory_space<vmem>>, vector<1x94xf32>
    %22 = vector.extract_strided_slice %4 {offsets = [0, 1], sizes = [14, 94], strides = [1, 1]} : vector<16x96xf32> to vector<14x94xf32>
    %23 = vector.broadcast %21 : vector<1x94xf32> to vector<14x94xf32>
    %24 = arith.mulf %23, %22 : vector<14x94xf32>
    %25 = arith.addf %20, %24 : vector<14x94xf32>
    %c2_25 = arith.constant 2 : index
    %c0_26 = arith.constant 0 : index
    %26 = vector.load %arg1[%c2_25, %c0_26] : memref<126x128xf32, #tpu.memory_space<vmem>>, vector<1x94xf32>
    %27 = vector.extract_strided_slice %4 {offsets = [0, 2], sizes = [14, 94], strides = [1, 1]} : vector<16x96xf32> to vector<14x94xf32>
    %28 = vector.broadcast %26 : vector<1x94xf32> to vector<14x94xf32>
    %29 = arith.mulf %28, %27 : vector<14x94xf32>
    %30 = arith.addf %25, %29 : vector<14x94xf32>
    %c3 = arith.constant 3 : index
    %c0_27 = arith.constant 0 : index
    %31 = vector.load %arg1[%c3, %c0_27] : memref<126x128xf32, #tpu.memory_space<vmem>>, vector<1x94xf32>
    %32 = vector.extract_strided_slice %4 {offsets = [1, 0], sizes = [14, 94], strides = [1, 1]} : vector<16x96xf32> to vector<14x94xf32>
    %33 = vector.broadcast %31 : vector<1x94xf32> to vector<14x94xf32>
    %34 = arith.mulf %33, %32 : vector<14x94xf32>
    %35 = arith.addf %30, %34 : vector<14x94xf32>
    %c4 = arith.constant 4 : index
    %c0_28 = arith.constant 0 : index
    %36 = vector.load %arg1[%c4, %c0_28] : memref<126x128xf32, #tpu.memory_space<vmem>>, vector<1x94xf32>
    %37 = vector.extract_strided_slice %4 {offsets = [1, 1], sizes = [14, 94], strides = [1, 1]} : vector<16x96xf32> to vector<14x94xf32>
    %38 = vector.broadcast %36 : vector<1x94xf32> to vector<14x94xf32>
    %39 = arith.mulf %38, %37 : vector<14x94xf32>
    %40 = arith.addf %35, %39 : vector<14x94xf32>
    %c5 = arith.constant 5 : index
    %c0_29 = arith.constant 0 : index
    %41 = vector.load %arg1[%c5, %c0_29] : memref<126x128xf32, #tpu.memory_space<vmem>>, vector<1x94xf32>
    %42 = vector.extract_strided_slice %4 {offsets = [1, 2], sizes = [14, 94], strides = [1, 1]} : vector<16x96xf32> to vector<14x94xf32>
    %43 = vector.broadcast %41 : vector<1x94xf32> to vector<14x94xf32>
    %44 = arith.mulf %43, %42 : vector<14x94xf32>
    %45 = arith.addf %40, %44 : vector<14x94xf32>
    %c6 = arith.constant 6 : index
    %c0_30 = arith.constant 0 : index
    %46 = vector.load %arg1[%c6, %c0_30] : memref<126x128xf32, #tpu.memory_space<vmem>>, vector<1x94xf32>
    %47 = vector.extract_strided_slice %4 {offsets = [2, 0], sizes = [14, 94], strides = [1, 1]} : vector<16x96xf32> to vector<14x94xf32>
    %48 = vector.broadcast %46 : vector<1x94xf32> to vector<14x94xf32>
    %49 = arith.mulf %48, %47 : vector<14x94xf32>
    %50 = arith.addf %45, %49 : vector<14x94xf32>
    %c7 = arith.constant 7 : index
    %c0_31 = arith.constant 0 : index
    %51 = vector.load %arg1[%c7, %c0_31] : memref<126x128xf32, #tpu.memory_space<vmem>>, vector<1x94xf32>
    %52 = vector.extract_strided_slice %4 {offsets = [2, 1], sizes = [14, 94], strides = [1, 1]} : vector<16x96xf32> to vector<14x94xf32>
    %53 = vector.broadcast %51 : vector<1x94xf32> to vector<14x94xf32>
    %54 = arith.mulf %53, %52 : vector<14x94xf32>
    %55 = arith.addf %50, %54 : vector<14x94xf32>
    %c8 = arith.constant 8 : index
    %c0_32 = arith.constant 0 : index
    %56 = vector.load %arg1[%c8, %c0_32] : memref<126x128xf32, #tpu.memory_space<vmem>>, vector<1x94xf32>
    %57 = vector.extract_strided_slice %4 {offsets = [2, 2], sizes = [14, 94], strides = [1, 1]} : vector<16x96xf32> to vector<14x94xf32>
    %58 = vector.broadcast %56 : vector<1x94xf32> to vector<14x94xf32>
    %59 = arith.mulf %58, %57 : vector<14x94xf32>
    %60 = arith.addf %55, %59 : vector<14x94xf32>
    %c9 = arith.constant 9 : index
    %c0_33 = arith.constant 0 : index
    %61 = vector.load %arg1[%c9, %c0_33] : memref<126x128xf32, #tpu.memory_space<vmem>>, vector<1x94xf32>
    %62 = vector.extract_strided_slice %9 {offsets = [0, 0], sizes = [14, 94], strides = [1, 1]} : vector<16x96xf32> to vector<14x94xf32>
    %63 = vector.broadcast %61 : vector<1x94xf32> to vector<14x94xf32>
    %64 = arith.mulf %63, %62 : vector<14x94xf32>
    %65 = arith.addf %60, %64 : vector<14x94xf32>
    %c10 = arith.constant 10 : index
    %c0_34 = arith.constant 0 : index
    %66 = vector.load %arg1[%c10, %c0_34] : memref<126x128xf32, #tpu.memory_space<vmem>>, vector<1x94xf32>
    %67 = vector.extract_strided_slice %9 {offsets = [0, 1], sizes = [14, 94], strides = [1, 1]} : vector<16x96xf32> to vector<14x94xf32>
    %68 = vector.broadcast %66 : vector<1x94xf32> to vector<14x94xf32>
    %69 = arith.mulf %68, %67 : vector<14x94xf32>
    %70 = arith.addf %65, %69 : vector<14x94xf32>
    %c11 = arith.constant 11 : index
    %c0_35 = arith.constant 0 : index
    %71 = vector.load %arg1[%c11, %c0_35] : memref<126x128xf32, #tpu.memory_space<vmem>>, vector<1x94xf32>
    %72 = vector.extract_strided_slice %9 {offsets = [0, 2], sizes = [14, 94], strides = [1, 1]} : vector<16x96xf32> to vector<14x94xf32>
    %73 = vector.broadcast %71 : vector<1x94xf32> to vector<14x94xf32>
    %74 = arith.mulf %73, %72 : vector<14x94xf32>
    %75 = arith.addf %70, %74 : vector<14x94xf32>
    %c12 = arith.constant 12 : index
    %c0_36 = arith.constant 0 : index
    %76 = vector.load %arg1[%c12, %c0_36] : memref<126x128xf32, #tpu.memory_space<vmem>>, vector<1x94xf32>
    %77 = vector.extract_strided_slice %9 {offsets = [1, 0], sizes = [14, 94], strides = [1, 1]} : vector<16x96xf32> to vector<14x94xf32>
    %78 = vector.broadcast %76 : vector<1x94xf32> to vector<14x94xf32>
    %79 = arith.mulf %78, %77 : vector<14x94xf32>
    %80 = arith.addf %75, %79 : vector<14x94xf32>
    %c13 = arith.constant 13 : index
    %c0_37 = arith.constant 0 : index
    %81 = vector.load %arg1[%c13, %c0_37] : memref<126x128xf32, #tpu.memory_space<vmem>>, vector<1x94xf32>
    %82 = vector.extract_strided_slice %9 {offsets = [1, 1], sizes = [14, 94], strides = [1, 1]} : vector<16x96xf32> to vector<14x94xf32>
    %83 = vector.broadcast %81 : vector<1x94xf32> to vector<14x94xf32>
    %84 = arith.mulf %83, %82 : vector<14x94xf32>
    %85 = arith.addf %80, %84 : vector<14x94xf32>
    %c14 = arith.constant 14 : index
    %c0_38 = arith.constant 0 : index
    %86 = vector.load %arg1[%c14, %c0_38] : memref<126x128xf32, #tpu.memory_space<vmem>>, vector<1x94xf32>
    %87 = vector.extract_strided_slice %9 {offsets = [1, 2], sizes = [14, 94], strides = [1, 1]} : vector<16x96xf32> to vector<14x94xf32>
    %88 = vector.broadcast %86 : vector<1x94xf32> to vector<14x94xf32>
    %89 = arith.mulf %88, %87 : vector<14x94xf32>
    %90 = arith.addf %85, %89 : vector<14x94xf32>
    %c15 = arith.constant 15 : index
    %c0_39 = arith.constant 0 : index
    %91 = vector.load %arg1[%c15, %c0_39] : memref<126x128xf32, #tpu.memory_space<vmem>>, vector<1x94xf32>
    %92 = vector.extract_strided_slice %9 {offsets = [2, 0], sizes = [14, 94], strides = [1, 1]} : vector<16x96xf32> to vector<14x94xf32>
    %93 = vector.broadcast %91 : vector<1x94xf32> to vector<14x94xf32>
    %94 = arith.mulf %93, %92 : vector<14x94xf32>
    %95 = arith.addf %90, %94 : vector<14x94xf32>
    %c16 = arith.constant 16 : index
    %c0_40 = arith.constant 0 : index
    %96 = vector.load %arg1[%c16, %c0_40] : memref<126x128xf32, #tpu.memory_space<vmem>>, vector<1x94xf32>
    %97 = vector.extract_strided_slice %9 {offsets = [2, 1], sizes = [14, 94], strides = [1, 1]} : vector<16x96xf32> to vector<14x94xf32>
    %98 = vector.broadcast %96 : vector<1x94xf32> to vector<14x94xf32>
    %99 = arith.mulf %98, %97 : vector<14x94xf32>
    %100 = arith.addf %95, %99 : vector<14x94xf32>
    %c17 = arith.constant 17 : index
    %c0_41 = arith.constant 0 : index
    %101 = vector.load %arg1[%c17, %c0_41] : memref<126x128xf32, #tpu.memory_space<vmem>>, vector<1x94xf32>
    %102 = vector.extract_strided_slice %9 {offsets = [2, 2], sizes = [14, 94], strides = [1, 1]} : vector<16x96xf32> to vector<14x94xf32>
    %103 = vector.broadcast %101 : vector<1x94xf32> to vector<14x94xf32>
    %104 = arith.mulf %103, %102 : vector<14x94xf32>
    %105 = arith.addf %100, %104 : vector<14x94xf32>
    %c18 = arith.constant 18 : index
    %c0_42 = arith.constant 0 : index
    %106 = vector.load %arg1[%c18, %c0_42] : memref<126x128xf32, #tpu.memory_space<vmem>>, vector<1x94xf32>
    %107 = vector.extract_strided_slice %14 {offsets = [0, 0], sizes = [14, 94], strides = [1, 1]} : vector<16x96xf32> to vector<14x94xf32>
    %108 = vector.broadcast %106 : vector<1x94xf32> to vector<14x94xf32>
    %109 = arith.mulf %108, %107 : vector<14x94xf32>
    %110 = arith.addf %105, %109 : vector<14x94xf32>
    %c19 = arith.constant 19 : index
    %c0_43 = arith.constant 0 : index
    %111 = vector.load %arg1[%c19, %c0_43] : memref<126x128xf32, #tpu.memory_space<vmem>>, vector<1x94xf32>
    %112 = vector.extract_strided_slice %14 {offsets = [0, 1], sizes = [14, 94], strides = [1, 1]} : vector<16x96xf32> to vector<14x94xf32>
    %113 = vector.broadcast %111 : vector<1x94xf32> to vector<14x94xf32>
    %114 = arith.mulf %113, %112 : vector<14x94xf32>
    %115 = arith.addf %110, %114 : vector<14x94xf32>
    %c20 = arith.constant 20 : index
    %c0_44 = arith.constant 0 : index
    %116 = vector.load %arg1[%c20, %c0_44] : memref<126x128xf32, #tpu.memory_space<vmem>>, vector<1x94xf32>
    %117 = vector.extract_strided_slice %14 {offsets = [0, 2], sizes = [14, 94], strides = [1, 1]} : vector<16x96xf32> to vector<14x94xf32>
    %118 = vector.broadcast %116 : vector<1x94xf32> to vector<14x94xf32>
    %119 = arith.mulf %118, %117 : vector<14x94xf32>
    %120 = arith.addf %115, %119 : vector<14x94xf32>
    %c21 = arith.constant 21 : index
    %c0_45 = arith.constant 0 : index
    %121 = vector.load %arg1[%c21, %c0_45] : memref<126x128xf32, #tpu.memory_space<vmem>>, vector<1x94xf32>
    %122 = vector.extract_strided_slice %14 {offsets = [1, 0], sizes = [14, 94], strides = [1, 1]} : vector<16x96xf32> to vector<14x94xf32>
    %123 = vector.broadcast %121 : vector<1x94xf32> to vector<14x94xf32>
    %124 = arith.mulf %123, %122 : vector<14x94xf32>
    %125 = arith.addf %120, %124 : vector<14x94xf32>
    %c22 = arith.constant 22 : index
    %c0_46 = arith.constant 0 : index
    %126 = vector.load %arg1[%c22, %c0_46] : memref<126x128xf32, #tpu.memory_space<vmem>>, vector<1x94xf32>
    %127 = vector.extract_strided_slice %14 {offsets = [1, 1], sizes = [14, 94], strides = [1, 1]} : vector<16x96xf32> to vector<14x94xf32>
    %128 = vector.broadcast %126 : vector<1x94xf32> to vector<14x94xf32>
    %129 = arith.mulf %128, %127 : vector<14x94xf32>
    %130 = arith.addf %125, %129 : vector<14x94xf32>
    %c23 = arith.constant 23 : index
    %c0_47 = arith.constant 0 : index
    %131 = vector.load %arg1[%c23, %c0_47] : memref<126x128xf32, #tpu.memory_space<vmem>>, vector<1x94xf32>
    %132 = vector.extract_strided_slice %14 {offsets = [1, 2], sizes = [14, 94], strides = [1, 1]} : vector<16x96xf32> to vector<14x94xf32>
    %133 = vector.broadcast %131 : vector<1x94xf32> to vector<14x94xf32>
    %134 = arith.mulf %133, %132 : vector<14x94xf32>
    %135 = arith.addf %130, %134 : vector<14x94xf32>
    %c24 = arith.constant 24 : index
    %c0_48 = arith.constant 0 : index
    %136 = vector.load %arg1[%c24, %c0_48] : memref<126x128xf32, #tpu.memory_space<vmem>>, vector<1x94xf32>
    %137 = vector.extract_strided_slice %14 {offsets = [2, 0], sizes = [14, 94], strides = [1, 1]} : vector<16x96xf32> to vector<14x94xf32>
    %138 = vector.broadcast %136 : vector<1x94xf32> to vector<14x94xf32>
    %139 = arith.mulf %138, %137 : vector<14x94xf32>
    %140 = arith.addf %135, %139 : vector<14x94xf32>
    %c25 = arith.constant 25 : index
    %c0_49 = arith.constant 0 : index
    %141 = vector.load %arg1[%c25, %c0_49] : memref<126x128xf32, #tpu.memory_space<vmem>>, vector<1x94xf32>
    %142 = vector.extract_strided_slice %14 {offsets = [2, 1], sizes = [14, 94], strides = [1, 1]} : vector<16x96xf32> to vector<14x94xf32>
    %143 = vector.broadcast %141 : vector<1x94xf32> to vector<14x94xf32>
    %144 = arith.mulf %143, %142 : vector<14x94xf32>
    %145 = arith.addf %140, %144 : vector<14x94xf32>
    %c26 = arith.constant 26 : index
    %c0_50 = arith.constant 0 : index
    %146 = vector.load %arg1[%c26, %c0_50] : memref<126x128xf32, #tpu.memory_space<vmem>>, vector<1x94xf32>
    %147 = vector.extract_strided_slice %14 {offsets = [2, 2], sizes = [14, 94], strides = [1, 1]} : vector<16x96xf32> to vector<14x94xf32>
    %148 = vector.broadcast %146 : vector<1x94xf32> to vector<14x94xf32>
    %149 = arith.mulf %148, %147 : vector<14x94xf32>
    %150 = arith.addf %145, %149 : vector<14x94xf32>
    %c0_51 = arith.constant 0 : index
    %c0_52 = arith.constant 0 : index
    %151 = vector.load %arg2[%c0_51, %c0_52] : memref<4x128xf32, #tpu.memory_space<vmem>>, vector<1x94xf32>
    %152 = vector.broadcast %151 : vector<1x94xf32> to vector<14x94xf32>
    %153 = arith.addf %150, %152 : vector<14x94xf32>
    %cst_53 = arith.constant 0.000000e+00 : f32
    %154 = vector.broadcast %cst_53 : f32 to vector<14x94xf32>
    %155 = arith.maximumf %153, %154 : vector<14x94xf32>
    %156 = vector.extract_strided_slice %155 {offsets = [0, 0], sizes = [14, 14], strides = [1, 1]} : vector<14x94xf32> to vector<14x14xf32>
    %157 = vector.extract_strided_slice %155 {offsets = [0, 48], sizes = [14, 14], strides = [1, 1]} : vector<14x94xf32> to vector<14x14xf32>
    %158 = tpu.concatenate %156, %156, %156, %157, %157, %157 in 1 : vector<14x14xf32>, vector<14x14xf32>, vector<14x14xf32>, vector<14x14xf32>, vector<14x14xf32>, vector<14x14xf32> -> vector<14x84xf32>
    %159 = vector.extract_strided_slice %155 {offsets = [0, 16], sizes = [14, 14], strides = [1, 1]} : vector<14x94xf32> to vector<14x14xf32>
    %160 = vector.extract_strided_slice %155 {offsets = [0, 64], sizes = [14, 14], strides = [1, 1]} : vector<14x94xf32> to vector<14x14xf32>
    %161 = tpu.concatenate %159, %159, %159, %160, %160, %160 in 1 : vector<14x14xf32>, vector<14x14xf32>, vector<14x14xf32>, vector<14x14xf32>, vector<14x14xf32>, vector<14x14xf32> -> vector<14x84xf32>
    %162 = vector.extract_strided_slice %155 {offsets = [0, 32], sizes = [14, 14], strides = [1, 1]} : vector<14x94xf32> to vector<14x14xf32>
    %163 = vector.extract_strided_slice %155 {offsets = [0, 80], sizes = [14, 14], strides = [1, 1]} : vector<14x94xf32> to vector<14x14xf32>
    %164 = tpu.concatenate %162, %162, %162, %163, %163, %163 in 1 : vector<14x14xf32>, vector<14x14xf32>, vector<14x14xf32>, vector<14x14xf32>, vector<14x14xf32>, vector<14x14xf32> -> vector<14x84xf32>
    %cst_54 = arith.constant 0.000000e+00 : f32
    %165 = vector.broadcast %cst_54 : f32 to vector<12x82xf32>
    %c27 = arith.constant 27 : index
    %c0_55 = arith.constant 0 : index
    %166 = vector.load %arg1[%c27, %c0_55] : memref<126x128xf32, #tpu.memory_space<vmem>>, vector<1x82xf32>
    %167 = vector.extract_strided_slice %158 {offsets = [0, 0], sizes = [12, 82], strides = [1, 1]} : vector<14x84xf32> to vector<12x82xf32>
    %168 = vector.broadcast %166 : vector<1x82xf32> to vector<12x82xf32>
    %169 = arith.mulf %168, %167 : vector<12x82xf32>
    %170 = arith.addf %165, %169 : vector<12x82xf32>
    %c28 = arith.constant 28 : index
    %c0_56 = arith.constant 0 : index
    %171 = vector.load %arg1[%c28, %c0_56] : memref<126x128xf32, #tpu.memory_space<vmem>>, vector<1x82xf32>
    %172 = vector.extract_strided_slice %158 {offsets = [0, 1], sizes = [12, 82], strides = [1, 1]} : vector<14x84xf32> to vector<12x82xf32>
    %173 = vector.broadcast %171 : vector<1x82xf32> to vector<12x82xf32>
    %174 = arith.mulf %173, %172 : vector<12x82xf32>
    %175 = arith.addf %170, %174 : vector<12x82xf32>
    %c29 = arith.constant 29 : index
    %c0_57 = arith.constant 0 : index
    %176 = vector.load %arg1[%c29, %c0_57] : memref<126x128xf32, #tpu.memory_space<vmem>>, vector<1x82xf32>
    %177 = vector.extract_strided_slice %158 {offsets = [0, 2], sizes = [12, 82], strides = [1, 1]} : vector<14x84xf32> to vector<12x82xf32>
    %178 = vector.broadcast %176 : vector<1x82xf32> to vector<12x82xf32>
    %179 = arith.mulf %178, %177 : vector<12x82xf32>
    %180 = arith.addf %175, %179 : vector<12x82xf32>
    %c30 = arith.constant 30 : index
    %c0_58 = arith.constant 0 : index
    %181 = vector.load %arg1[%c30, %c0_58] : memref<126x128xf32, #tpu.memory_space<vmem>>, vector<1x82xf32>
    %182 = vector.extract_strided_slice %158 {offsets = [1, 0], sizes = [12, 82], strides = [1, 1]} : vector<14x84xf32> to vector<12x82xf32>
    %183 = vector.broadcast %181 : vector<1x82xf32> to vector<12x82xf32>
    %184 = arith.mulf %183, %182 : vector<12x82xf32>
    %185 = arith.addf %180, %184 : vector<12x82xf32>
    %c31 = arith.constant 31 : index
    %c0_59 = arith.constant 0 : index
    %186 = vector.load %arg1[%c31, %c0_59] : memref<126x128xf32, #tpu.memory_space<vmem>>, vector<1x82xf32>
    %187 = vector.extract_strided_slice %158 {offsets = [1, 1], sizes = [12, 82], strides = [1, 1]} : vector<14x84xf32> to vector<12x82xf32>
    %188 = vector.broadcast %186 : vector<1x82xf32> to vector<12x82xf32>
    %189 = arith.mulf %188, %187 : vector<12x82xf32>
    %190 = arith.addf %185, %189 : vector<12x82xf32>
    %c32 = arith.constant 32 : index
    %c0_60 = arith.constant 0 : index
    %191 = vector.load %arg1[%c32, %c0_60] : memref<126x128xf32, #tpu.memory_space<vmem>>, vector<1x82xf32>
    %192 = vector.extract_strided_slice %158 {offsets = [1, 2], sizes = [12, 82], strides = [1, 1]} : vector<14x84xf32> to vector<12x82xf32>
    %193 = vector.broadcast %191 : vector<1x82xf32> to vector<12x82xf32>
    %194 = arith.mulf %193, %192 : vector<12x82xf32>
    %195 = arith.addf %190, %194 : vector<12x82xf32>
    %c33 = arith.constant 33 : index
    %c0_61 = arith.constant 0 : index
    %196 = vector.load %arg1[%c33, %c0_61] : memref<126x128xf32, #tpu.memory_space<vmem>>, vector<1x82xf32>
    %197 = vector.extract_strided_slice %158 {offsets = [2, 0], sizes = [12, 82], strides = [1, 1]} : vector<14x84xf32> to vector<12x82xf32>
    %198 = vector.broadcast %196 : vector<1x82xf32> to vector<12x82xf32>
    %199 = arith.mulf %198, %197 : vector<12x82xf32>
    %200 = arith.addf %195, %199 : vector<12x82xf32>
    %c34 = arith.constant 34 : index
    %c0_62 = arith.constant 0 : index
    %201 = vector.load %arg1[%c34, %c0_62] : memref<126x128xf32, #tpu.memory_space<vmem>>, vector<1x82xf32>
    %202 = vector.extract_strided_slice %158 {offsets = [2, 1], sizes = [12, 82], strides = [1, 1]} : vector<14x84xf32> to vector<12x82xf32>
    %203 = vector.broadcast %201 : vector<1x82xf32> to vector<12x82xf32>
    %204 = arith.mulf %203, %202 : vector<12x82xf32>
    %205 = arith.addf %200, %204 : vector<12x82xf32>
    %c35 = arith.constant 35 : index
    %c0_63 = arith.constant 0 : index
    %206 = vector.load %arg1[%c35, %c0_63] : memref<126x128xf32, #tpu.memory_space<vmem>>, vector<1x82xf32>
    %207 = vector.extract_strided_slice %158 {offsets = [2, 2], sizes = [12, 82], strides = [1, 1]} : vector<14x84xf32> to vector<12x82xf32>
    %208 = vector.broadcast %206 : vector<1x82xf32> to vector<12x82xf32>
    %209 = arith.mulf %208, %207 : vector<12x82xf32>
    %210 = arith.addf %205, %209 : vector<12x82xf32>
    %c36 = arith.constant 36 : index
    %c0_64 = arith.constant 0 : index
    %211 = vector.load %arg1[%c36, %c0_64] : memref<126x128xf32, #tpu.memory_space<vmem>>, vector<1x82xf32>
    %212 = vector.extract_strided_slice %161 {offsets = [0, 0], sizes = [12, 82], strides = [1, 1]} : vector<14x84xf32> to vector<12x82xf32>
    %213 = vector.broadcast %211 : vector<1x82xf32> to vector<12x82xf32>
    %214 = arith.mulf %213, %212 : vector<12x82xf32>
    %215 = arith.addf %210, %214 : vector<12x82xf32>
    %c37 = arith.constant 37 : index
    %c0_65 = arith.constant 0 : index
    %216 = vector.load %arg1[%c37, %c0_65] : memref<126x128xf32, #tpu.memory_space<vmem>>, vector<1x82xf32>
    %217 = vector.extract_strided_slice %161 {offsets = [0, 1], sizes = [12, 82], strides = [1, 1]} : vector<14x84xf32> to vector<12x82xf32>
    %218 = vector.broadcast %216 : vector<1x82xf32> to vector<12x82xf32>
    %219 = arith.mulf %218, %217 : vector<12x82xf32>
    %220 = arith.addf %215, %219 : vector<12x82xf32>
    %c38 = arith.constant 38 : index
    %c0_66 = arith.constant 0 : index
    %221 = vector.load %arg1[%c38, %c0_66] : memref<126x128xf32, #tpu.memory_space<vmem>>, vector<1x82xf32>
    %222 = vector.extract_strided_slice %161 {offsets = [0, 2], sizes = [12, 82], strides = [1, 1]} : vector<14x84xf32> to vector<12x82xf32>
    %223 = vector.broadcast %221 : vector<1x82xf32> to vector<12x82xf32>
    %224 = arith.mulf %223, %222 : vector<12x82xf32>
    %225 = arith.addf %220, %224 : vector<12x82xf32>
    %c39 = arith.constant 39 : index
    %c0_67 = arith.constant 0 : index
    %226 = vector.load %arg1[%c39, %c0_67] : memref<126x128xf32, #tpu.memory_space<vmem>>, vector<1x82xf32>
    %227 = vector.extract_strided_slice %161 {offsets = [1, 0], sizes = [12, 82], strides = [1, 1]} : vector<14x84xf32> to vector<12x82xf32>
    %228 = vector.broadcast %226 : vector<1x82xf32> to vector<12x82xf32>
    %229 = arith.mulf %228, %227 : vector<12x82xf32>
    %230 = arith.addf %225, %229 : vector<12x82xf32>
    %c40 = arith.constant 40 : index
    %c0_68 = arith.constant 0 : index
    %231 = vector.load %arg1[%c40, %c0_68] : memref<126x128xf32, #tpu.memory_space<vmem>>, vector<1x82xf32>
    %232 = vector.extract_strided_slice %161 {offsets = [1, 1], sizes = [12, 82], strides = [1, 1]} : vector<14x84xf32> to vector<12x82xf32>
    %233 = vector.broadcast %231 : vector<1x82xf32> to vector<12x82xf32>
    %234 = arith.mulf %233, %232 : vector<12x82xf32>
    %235 = arith.addf %230, %234 : vector<12x82xf32>
    %c41 = arith.constant 41 : index
    %c0_69 = arith.constant 0 : index
    %236 = vector.load %arg1[%c41, %c0_69] : memref<126x128xf32, #tpu.memory_space<vmem>>, vector<1x82xf32>
    %237 = vector.extract_strided_slice %161 {offsets = [1, 2], sizes = [12, 82], strides = [1, 1]} : vector<14x84xf32> to vector<12x82xf32>
    %238 = vector.broadcast %236 : vector<1x82xf32> to vector<12x82xf32>
    %239 = arith.mulf %238, %237 : vector<12x82xf32>
    %240 = arith.addf %235, %239 : vector<12x82xf32>
    %c42 = arith.constant 42 : index
    %c0_70 = arith.constant 0 : index
    %241 = vector.load %arg1[%c42, %c0_70] : memref<126x128xf32, #tpu.memory_space<vmem>>, vector<1x82xf32>
    %242 = vector.extract_strided_slice %161 {offsets = [2, 0], sizes = [12, 82], strides = [1, 1]} : vector<14x84xf32> to vector<12x82xf32>
    %243 = vector.broadcast %241 : vector<1x82xf32> to vector<12x82xf32>
    %244 = arith.mulf %243, %242 : vector<12x82xf32>
    %245 = arith.addf %240, %244 : vector<12x82xf32>
    %c43 = arith.constant 43 : index
    %c0_71 = arith.constant 0 : index
    %246 = vector.load %arg1[%c43, %c0_71] : memref<126x128xf32, #tpu.memory_space<vmem>>, vector<1x82xf32>
    %247 = vector.extract_strided_slice %161 {offsets = [2, 1], sizes = [12, 82], strides = [1, 1]} : vector<14x84xf32> to vector<12x82xf32>
    %248 = vector.broadcast %246 : vector<1x82xf32> to vector<12x82xf32>
    %249 = arith.mulf %248, %247 : vector<12x82xf32>
    %250 = arith.addf %245, %249 : vector<12x82xf32>
    %c44 = arith.constant 44 : index
    %c0_72 = arith.constant 0 : index
    %251 = vector.load %arg1[%c44, %c0_72] : memref<126x128xf32, #tpu.memory_space<vmem>>, vector<1x82xf32>
    %252 = vector.extract_strided_slice %161 {offsets = [2, 2], sizes = [12, 82], strides = [1, 1]} : vector<14x84xf32> to vector<12x82xf32>
    %253 = vector.broadcast %251 : vector<1x82xf32> to vector<12x82xf32>
    %254 = arith.mulf %253, %252 : vector<12x82xf32>
    %255 = arith.addf %250, %254 : vector<12x82xf32>
    %c45 = arith.constant 45 : index
    %c0_73 = arith.constant 0 : index
    %256 = vector.load %arg1[%c45, %c0_73] : memref<126x128xf32, #tpu.memory_space<vmem>>, vector<1x82xf32>
    %257 = vector.extract_strided_slice %164 {offsets = [0, 0], sizes = [12, 82], strides = [1, 1]} : vector<14x84xf32> to vector<12x82xf32>
    %258 = vector.broadcast %256 : vector<1x82xf32> to vector<12x82xf32>
    %259 = arith.mulf %258, %257 : vector<12x82xf32>
    %260 = arith.addf %255, %259 : vector<12x82xf32>
    %c46 = arith.constant 46 : index
    %c0_74 = arith.constant 0 : index
    %261 = vector.load %arg1[%c46, %c0_74] : memref<126x128xf32, #tpu.memory_space<vmem>>, vector<1x82xf32>
    %262 = vector.extract_strided_slice %164 {offsets = [0, 1], sizes = [12, 82], strides = [1, 1]} : vector<14x84xf32> to vector<12x82xf32>
    %263 = vector.broadcast %261 : vector<1x82xf32> to vector<12x82xf32>
    %264 = arith.mulf %263, %262 : vector<12x82xf32>
    %265 = arith.addf %260, %264 : vector<12x82xf32>
    %c47 = arith.constant 47 : index
    %c0_75 = arith.constant 0 : index
    %266 = vector.load %arg1[%c47, %c0_75] : memref<126x128xf32, #tpu.memory_space<vmem>>, vector<1x82xf32>
    %267 = vector.extract_strided_slice %164 {offsets = [0, 2], sizes = [12, 82], strides = [1, 1]} : vector<14x84xf32> to vector<12x82xf32>
    %268 = vector.broadcast %266 : vector<1x82xf32> to vector<12x82xf32>
    %269 = arith.mulf %268, %267 : vector<12x82xf32>
    %270 = arith.addf %265, %269 : vector<12x82xf32>
    %c48 = arith.constant 48 : index
    %c0_76 = arith.constant 0 : index
    %271 = vector.load %arg1[%c48, %c0_76] : memref<126x128xf32, #tpu.memory_space<vmem>>, vector<1x82xf32>
    %272 = vector.extract_strided_slice %164 {offsets = [1, 0], sizes = [12, 82], strides = [1, 1]} : vector<14x84xf32> to vector<12x82xf32>
    %273 = vector.broadcast %271 : vector<1x82xf32> to vector<12x82xf32>
    %274 = arith.mulf %273, %272 : vector<12x82xf32>
    %275 = arith.addf %270, %274 : vector<12x82xf32>
    %c49 = arith.constant 49 : index
    %c0_77 = arith.constant 0 : index
    %276 = vector.load %arg1[%c49, %c0_77] : memref<126x128xf32, #tpu.memory_space<vmem>>, vector<1x82xf32>
    %277 = vector.extract_strided_slice %164 {offsets = [1, 1], sizes = [12, 82], strides = [1, 1]} : vector<14x84xf32> to vector<12x82xf32>
    %278 = vector.broadcast %276 : vector<1x82xf32> to vector<12x82xf32>
    %279 = arith.mulf %278, %277 : vector<12x82xf32>
    %280 = arith.addf %275, %279 : vector<12x82xf32>
    %c50 = arith.constant 50 : index
    %c0_78 = arith.constant 0 : index
    %281 = vector.load %arg1[%c50, %c0_78] : memref<126x128xf32, #tpu.memory_space<vmem>>, vector<1x82xf32>
    %282 = vector.extract_strided_slice %164 {offsets = [1, 2], sizes = [12, 82], strides = [1, 1]} : vector<14x84xf32> to vector<12x82xf32>
    %283 = vector.broadcast %281 : vector<1x82xf32> to vector<12x82xf32>
    %284 = arith.mulf %283, %282 : vector<12x82xf32>
    %285 = arith.addf %280, %284 : vector<12x82xf32>
    %c51 = arith.constant 51 : index
    %c0_79 = arith.constant 0 : index
    %286 = vector.load %arg1[%c51, %c0_79] : memref<126x128xf32, #tpu.memory_space<vmem>>, vector<1x82xf32>
    %287 = vector.extract_strided_slice %164 {offsets = [2, 0], sizes = [12, 82], strides = [1, 1]} : vector<14x84xf32> to vector<12x82xf32>
    %288 = vector.broadcast %286 : vector<1x82xf32> to vector<12x82xf32>
    %289 = arith.mulf %288, %287 : vector<12x82xf32>
    %290 = arith.addf %285, %289 : vector<12x82xf32>
    %c52 = arith.constant 52 : index
    %c0_80 = arith.constant 0 : index
    %291 = vector.load %arg1[%c52, %c0_80] : memref<126x128xf32, #tpu.memory_space<vmem>>, vector<1x82xf32>
    %292 = vector.extract_strided_slice %164 {offsets = [2, 1], sizes = [12, 82], strides = [1, 1]} : vector<14x84xf32> to vector<12x82xf32>
    %293 = vector.broadcast %291 : vector<1x82xf32> to vector<12x82xf32>
    %294 = arith.mulf %293, %292 : vector<12x82xf32>
    %295 = arith.addf %290, %294 : vector<12x82xf32>
    %c53 = arith.constant 53 : index
    %c0_81 = arith.constant 0 : index
    %296 = vector.load %arg1[%c53, %c0_81] : memref<126x128xf32, #tpu.memory_space<vmem>>, vector<1x82xf32>
    %297 = vector.extract_strided_slice %164 {offsets = [2, 2], sizes = [12, 82], strides = [1, 1]} : vector<14x84xf32> to vector<12x82xf32>
    %298 = vector.broadcast %296 : vector<1x82xf32> to vector<12x82xf32>
    %299 = arith.mulf %298, %297 : vector<12x82xf32>
    %300 = arith.addf %295, %299 : vector<12x82xf32>
    %c1_82 = arith.constant 1 : index
    %c0_83 = arith.constant 0 : index
    %301 = vector.load %arg2[%c1_82, %c0_83] : memref<4x128xf32, #tpu.memory_space<vmem>>, vector<1x82xf32>
    %302 = vector.broadcast %301 : vector<1x82xf32> to vector<12x82xf32>
    %303 = arith.addf %300, %302 : vector<12x82xf32>
    %cst_84 = arith.constant 0.000000e+00 : f32
    %304 = vector.broadcast %cst_84 : f32 to vector<12x82xf32>
    %305 = arith.maximumf %303, %304 : vector<12x82xf32>
    %306 = vector.extract_strided_slice %305 {offsets = [0, 0], sizes = [12, 12], strides = [1, 1]} : vector<12x82xf32> to vector<12x12xf32>
    %307 = vector.extract_strided_slice %305 {offsets = [0, 42], sizes = [12, 12], strides = [1, 1]} : vector<12x82xf32> to vector<12x12xf32>
    %308 = tpu.concatenate %306, %306, %306, %306, %306, %307, %307, %307, %307, %307 in 1 : vector<12x12xf32>, vector<12x12xf32>, vector<12x12xf32>, vector<12x12xf32>, vector<12x12xf32>, vector<12x12xf32>, vector<12x12xf32>, vector<12x12xf32>, vector<12x12xf32>, vector<12x12xf32> -> vector<12x120xf32>
    %309 = vector.extract_strided_slice %305 {offsets = [0, 14], sizes = [12, 12], strides = [1, 1]} : vector<12x82xf32> to vector<12x12xf32>
    %310 = vector.extract_strided_slice %305 {offsets = [0, 56], sizes = [12, 12], strides = [1, 1]} : vector<12x82xf32> to vector<12x12xf32>
    %311 = tpu.concatenate %309, %309, %309, %309, %309, %310, %310, %310, %310, %310 in 1 : vector<12x12xf32>, vector<12x12xf32>, vector<12x12xf32>, vector<12x12xf32>, vector<12x12xf32>, vector<12x12xf32>, vector<12x12xf32>, vector<12x12xf32>, vector<12x12xf32>, vector<12x12xf32> -> vector<12x120xf32>
    %312 = vector.extract_strided_slice %305 {offsets = [0, 28], sizes = [12, 12], strides = [1, 1]} : vector<12x82xf32> to vector<12x12xf32>
    %313 = vector.extract_strided_slice %305 {offsets = [0, 70], sizes = [12, 12], strides = [1, 1]} : vector<12x82xf32> to vector<12x12xf32>
    %314 = tpu.concatenate %312, %312, %312, %312, %312, %313, %313, %313, %313, %313 in 1 : vector<12x12xf32>, vector<12x12xf32>, vector<12x12xf32>, vector<12x12xf32>, vector<12x12xf32>, vector<12x12xf32>, vector<12x12xf32>, vector<12x12xf32>, vector<12x12xf32>, vector<12x12xf32> -> vector<12x120xf32>
    %cst_85 = arith.constant 0.000000e+00 : f32
    %315 = vector.broadcast %cst_85 : f32 to vector<10x118xf32>
    %c54 = arith.constant 54 : index
    %c0_86 = arith.constant 0 : index
    %316 = vector.load %arg1[%c54, %c0_86] : memref<126x128xf32, #tpu.memory_space<vmem>>, vector<1x118xf32>
    %317 = vector.extract_strided_slice %308 {offsets = [0, 0], sizes = [10, 118], strides = [1, 1]} : vector<12x120xf32> to vector<10x118xf32>
    %318 = vector.broadcast %316 : vector<1x118xf32> to vector<10x118xf32>
    %319 = arith.mulf %318, %317 : vector<10x118xf32>
    %320 = arith.addf %315, %319 : vector<10x118xf32>
    %c55 = arith.constant 55 : index
    %c0_87 = arith.constant 0 : index
    %321 = vector.load %arg1[%c55, %c0_87] : memref<126x128xf32, #tpu.memory_space<vmem>>, vector<1x118xf32>
    %322 = vector.extract_strided_slice %308 {offsets = [0, 1], sizes = [10, 118], strides = [1, 1]} : vector<12x120xf32> to vector<10x118xf32>
    %323 = vector.broadcast %321 : vector<1x118xf32> to vector<10x118xf32>
    %324 = arith.mulf %323, %322 : vector<10x118xf32>
    %325 = arith.addf %320, %324 : vector<10x118xf32>
    %c56 = arith.constant 56 : index
    %c0_88 = arith.constant 0 : index
    %326 = vector.load %arg1[%c56, %c0_88] : memref<126x128xf32, #tpu.memory_space<vmem>>, vector<1x118xf32>
    %327 = vector.extract_strided_slice %308 {offsets = [0, 2], sizes = [10, 118], strides = [1, 1]} : vector<12x120xf32> to vector<10x118xf32>
    %328 = vector.broadcast %326 : vector<1x118xf32> to vector<10x118xf32>
    %329 = arith.mulf %328, %327 : vector<10x118xf32>
    %330 = arith.addf %325, %329 : vector<10x118xf32>
    %c57 = arith.constant 57 : index
    %c0_89 = arith.constant 0 : index
    %331 = vector.load %arg1[%c57, %c0_89] : memref<126x128xf32, #tpu.memory_space<vmem>>, vector<1x118xf32>
    %332 = vector.extract_strided_slice %308 {offsets = [1, 0], sizes = [10, 118], strides = [1, 1]} : vector<12x120xf32> to vector<10x118xf32>
    %333 = vector.broadcast %331 : vector<1x118xf32> to vector<10x118xf32>
    %334 = arith.mulf %333, %332 : vector<10x118xf32>
    %335 = arith.addf %330, %334 : vector<10x118xf32>
    %c58 = arith.constant 58 : index
    %c0_90 = arith.constant 0 : index
    %336 = vector.load %arg1[%c58, %c0_90] : memref<126x128xf32, #tpu.memory_space<vmem>>, vector<1x118xf32>
    %337 = vector.extract_strided_slice %308 {offsets = [1, 1], sizes = [10, 118], strides = [1, 1]} : vector<12x120xf32> to vector<10x118xf32>
    %338 = vector.broadcast %336 : vector<1x118xf32> to vector<10x118xf32>
    %339 = arith.mulf %338, %337 : vector<10x118xf32>
    %340 = arith.addf %335, %339 : vector<10x118xf32>
    %c59 = arith.constant 59 : index
    %c0_91 = arith.constant 0 : index
    %341 = vector.load %arg1[%c59, %c0_91] : memref<126x128xf32, #tpu.memory_space<vmem>>, vector<1x118xf32>
    %342 = vector.extract_strided_slice %308 {offsets = [1, 2], sizes = [10, 118], strides = [1, 1]} : vector<12x120xf32> to vector<10x118xf32>
    %343 = vector.broadcast %341 : vector<1x118xf32> to vector<10x118xf32>
    %344 = arith.mulf %343, %342 : vector<10x118xf32>
    %345 = arith.addf %340, %344 : vector<10x118xf32>
    %c60 = arith.constant 60 : index
    %c0_92 = arith.constant 0 : index
    %346 = vector.load %arg1[%c60, %c0_92] : memref<126x128xf32, #tpu.memory_space<vmem>>, vector<1x118xf32>
    %347 = vector.extract_strided_slice %308 {offsets = [2, 0], sizes = [10, 118], strides = [1, 1]} : vector<12x120xf32> to vector<10x118xf32>
    %348 = vector.broadcast %346 : vector<1x118xf32> to vector<10x118xf32>
    %349 = arith.mulf %348, %347 : vector<10x118xf32>
    %350 = arith.addf %345, %349 : vector<10x118xf32>
    %c61 = arith.constant 61 : index
    %c0_93 = arith.constant 0 : index
    %351 = vector.load %arg1[%c61, %c0_93] : memref<126x128xf32, #tpu.memory_space<vmem>>, vector<1x118xf32>
    %352 = vector.extract_strided_slice %308 {offsets = [2, 1], sizes = [10, 118], strides = [1, 1]} : vector<12x120xf32> to vector<10x118xf32>
    %353 = vector.broadcast %351 : vector<1x118xf32> to vector<10x118xf32>
    %354 = arith.mulf %353, %352 : vector<10x118xf32>
    %355 = arith.addf %350, %354 : vector<10x118xf32>
    %c62 = arith.constant 62 : index
    %c0_94 = arith.constant 0 : index
    %356 = vector.load %arg1[%c62, %c0_94] : memref<126x128xf32, #tpu.memory_space<vmem>>, vector<1x118xf32>
    %357 = vector.extract_strided_slice %308 {offsets = [2, 2], sizes = [10, 118], strides = [1, 1]} : vector<12x120xf32> to vector<10x118xf32>
    %358 = vector.broadcast %356 : vector<1x118xf32> to vector<10x118xf32>
    %359 = arith.mulf %358, %357 : vector<10x118xf32>
    %360 = arith.addf %355, %359 : vector<10x118xf32>
    %c63 = arith.constant 63 : index
    %c0_95 = arith.constant 0 : index
    %361 = vector.load %arg1[%c63, %c0_95] : memref<126x128xf32, #tpu.memory_space<vmem>>, vector<1x118xf32>
    %362 = vector.extract_strided_slice %311 {offsets = [0, 0], sizes = [10, 118], strides = [1, 1]} : vector<12x120xf32> to vector<10x118xf32>
    %363 = vector.broadcast %361 : vector<1x118xf32> to vector<10x118xf32>
    %364 = arith.mulf %363, %362 : vector<10x118xf32>
    %365 = arith.addf %360, %364 : vector<10x118xf32>
    %c64 = arith.constant 64 : index
    %c0_96 = arith.constant 0 : index
    %366 = vector.load %arg1[%c64, %c0_96] : memref<126x128xf32, #tpu.memory_space<vmem>>, vector<1x118xf32>
    %367 = vector.extract_strided_slice %311 {offsets = [0, 1], sizes = [10, 118], strides = [1, 1]} : vector<12x120xf32> to vector<10x118xf32>
    %368 = vector.broadcast %366 : vector<1x118xf32> to vector<10x118xf32>
    %369 = arith.mulf %368, %367 : vector<10x118xf32>
    %370 = arith.addf %365, %369 : vector<10x118xf32>
    %c65 = arith.constant 65 : index
    %c0_97 = arith.constant 0 : index
    %371 = vector.load %arg1[%c65, %c0_97] : memref<126x128xf32, #tpu.memory_space<vmem>>, vector<1x118xf32>
    %372 = vector.extract_strided_slice %311 {offsets = [0, 2], sizes = [10, 118], strides = [1, 1]} : vector<12x120xf32> to vector<10x118xf32>
    %373 = vector.broadcast %371 : vector<1x118xf32> to vector<10x118xf32>
    %374 = arith.mulf %373, %372 : vector<10x118xf32>
    %375 = arith.addf %370, %374 : vector<10x118xf32>
    %c66 = arith.constant 66 : index
    %c0_98 = arith.constant 0 : index
    %376 = vector.load %arg1[%c66, %c0_98] : memref<126x128xf32, #tpu.memory_space<vmem>>, vector<1x118xf32>
    %377 = vector.extract_strided_slice %311 {offsets = [1, 0], sizes = [10, 118], strides = [1, 1]} : vector<12x120xf32> to vector<10x118xf32>
    %378 = vector.broadcast %376 : vector<1x118xf32> to vector<10x118xf32>
    %379 = arith.mulf %378, %377 : vector<10x118xf32>
    %380 = arith.addf %375, %379 : vector<10x118xf32>
    %c67 = arith.constant 67 : index
    %c0_99 = arith.constant 0 : index
    %381 = vector.load %arg1[%c67, %c0_99] : memref<126x128xf32, #tpu.memory_space<vmem>>, vector<1x118xf32>
    %382 = vector.extract_strided_slice %311 {offsets = [1, 1], sizes = [10, 118], strides = [1, 1]} : vector<12x120xf32> to vector<10x118xf32>
    %383 = vector.broadcast %381 : vector<1x118xf32> to vector<10x118xf32>
    %384 = arith.mulf %383, %382 : vector<10x118xf32>
    %385 = arith.addf %380, %384 : vector<10x118xf32>
    %c68 = arith.constant 68 : index
    %c0_100 = arith.constant 0 : index
    %386 = vector.load %arg1[%c68, %c0_100] : memref<126x128xf32, #tpu.memory_space<vmem>>, vector<1x118xf32>
    %387 = vector.extract_strided_slice %311 {offsets = [1, 2], sizes = [10, 118], strides = [1, 1]} : vector<12x120xf32> to vector<10x118xf32>
    %388 = vector.broadcast %386 : vector<1x118xf32> to vector<10x118xf32>
    %389 = arith.mulf %388, %387 : vector<10x118xf32>
    %390 = arith.addf %385, %389 : vector<10x118xf32>
    %c69 = arith.constant 69 : index
    %c0_101 = arith.constant 0 : index
    %391 = vector.load %arg1[%c69, %c0_101] : memref<126x128xf32, #tpu.memory_space<vmem>>, vector<1x118xf32>
    %392 = vector.extract_strided_slice %311 {offsets = [2, 0], sizes = [10, 118], strides = [1, 1]} : vector<12x120xf32> to vector<10x118xf32>
    %393 = vector.broadcast %391 : vector<1x118xf32> to vector<10x118xf32>
    %394 = arith.mulf %393, %392 : vector<10x118xf32>
    %395 = arith.addf %390, %394 : vector<10x118xf32>
    %c70 = arith.constant 70 : index
    %c0_102 = arith.constant 0 : index
    %396 = vector.load %arg1[%c70, %c0_102] : memref<126x128xf32, #tpu.memory_space<vmem>>, vector<1x118xf32>
    %397 = vector.extract_strided_slice %311 {offsets = [2, 1], sizes = [10, 118], strides = [1, 1]} : vector<12x120xf32> to vector<10x118xf32>
    %398 = vector.broadcast %396 : vector<1x118xf32> to vector<10x118xf32>
    %399 = arith.mulf %398, %397 : vector<10x118xf32>
    %400 = arith.addf %395, %399 : vector<10x118xf32>
    %c71 = arith.constant 71 : index
    %c0_103 = arith.constant 0 : index
    %401 = vector.load %arg1[%c71, %c0_103] : memref<126x128xf32, #tpu.memory_space<vmem>>, vector<1x118xf32>
    %402 = vector.extract_strided_slice %311 {offsets = [2, 2], sizes = [10, 118], strides = [1, 1]} : vector<12x120xf32> to vector<10x118xf32>
    %403 = vector.broadcast %401 : vector<1x118xf32> to vector<10x118xf32>
    %404 = arith.mulf %403, %402 : vector<10x118xf32>
    %405 = arith.addf %400, %404 : vector<10x118xf32>
    %c72 = arith.constant 72 : index
    %c0_104 = arith.constant 0 : index
    %406 = vector.load %arg1[%c72, %c0_104] : memref<126x128xf32, #tpu.memory_space<vmem>>, vector<1x118xf32>
    %407 = vector.extract_strided_slice %314 {offsets = [0, 0], sizes = [10, 118], strides = [1, 1]} : vector<12x120xf32> to vector<10x118xf32>
    %408 = vector.broadcast %406 : vector<1x118xf32> to vector<10x118xf32>
    %409 = arith.mulf %408, %407 : vector<10x118xf32>
    %410 = arith.addf %405, %409 : vector<10x118xf32>
    %c73 = arith.constant 73 : index
    %c0_105 = arith.constant 0 : index
    %411 = vector.load %arg1[%c73, %c0_105] : memref<126x128xf32, #tpu.memory_space<vmem>>, vector<1x118xf32>
    %412 = vector.extract_strided_slice %314 {offsets = [0, 1], sizes = [10, 118], strides = [1, 1]} : vector<12x120xf32> to vector<10x118xf32>
    %413 = vector.broadcast %411 : vector<1x118xf32> to vector<10x118xf32>
    %414 = arith.mulf %413, %412 : vector<10x118xf32>
    %415 = arith.addf %410, %414 : vector<10x118xf32>
    %c74 = arith.constant 74 : index
    %c0_106 = arith.constant 0 : index
    %416 = vector.load %arg1[%c74, %c0_106] : memref<126x128xf32, #tpu.memory_space<vmem>>, vector<1x118xf32>
    %417 = vector.extract_strided_slice %314 {offsets = [0, 2], sizes = [10, 118], strides = [1, 1]} : vector<12x120xf32> to vector<10x118xf32>
    %418 = vector.broadcast %416 : vector<1x118xf32> to vector<10x118xf32>
    %419 = arith.mulf %418, %417 : vector<10x118xf32>
    %420 = arith.addf %415, %419 : vector<10x118xf32>
    %c75 = arith.constant 75 : index
    %c0_107 = arith.constant 0 : index
    %421 = vector.load %arg1[%c75, %c0_107] : memref<126x128xf32, #tpu.memory_space<vmem>>, vector<1x118xf32>
    %422 = vector.extract_strided_slice %314 {offsets = [1, 0], sizes = [10, 118], strides = [1, 1]} : vector<12x120xf32> to vector<10x118xf32>
    %423 = vector.broadcast %421 : vector<1x118xf32> to vector<10x118xf32>
    %424 = arith.mulf %423, %422 : vector<10x118xf32>
    %425 = arith.addf %420, %424 : vector<10x118xf32>
    %c76 = arith.constant 76 : index
    %c0_108 = arith.constant 0 : index
    %426 = vector.load %arg1[%c76, %c0_108] : memref<126x128xf32, #tpu.memory_space<vmem>>, vector<1x118xf32>
    %427 = vector.extract_strided_slice %314 {offsets = [1, 1], sizes = [10, 118], strides = [1, 1]} : vector<12x120xf32> to vector<10x118xf32>
    %428 = vector.broadcast %426 : vector<1x118xf32> to vector<10x118xf32>
    %429 = arith.mulf %428, %427 : vector<10x118xf32>
    %430 = arith.addf %425, %429 : vector<10x118xf32>
    %c77 = arith.constant 77 : index
    %c0_109 = arith.constant 0 : index
    %431 = vector.load %arg1[%c77, %c0_109] : memref<126x128xf32, #tpu.memory_space<vmem>>, vector<1x118xf32>
    %432 = vector.extract_strided_slice %314 {offsets = [1, 2], sizes = [10, 118], strides = [1, 1]} : vector<12x120xf32> to vector<10x118xf32>
    %433 = vector.broadcast %431 : vector<1x118xf32> to vector<10x118xf32>
    %434 = arith.mulf %433, %432 : vector<10x118xf32>
    %435 = arith.addf %430, %434 : vector<10x118xf32>
    %c78 = arith.constant 78 : index
    %c0_110 = arith.constant 0 : index
    %436 = vector.load %arg1[%c78, %c0_110] : memref<126x128xf32, #tpu.memory_space<vmem>>, vector<1x118xf32>
    %437 = vector.extract_strided_slice %314 {offsets = [2, 0], sizes = [10, 118], strides = [1, 1]} : vector<12x120xf32> to vector<10x118xf32>
    %438 = vector.broadcast %436 : vector<1x118xf32> to vector<10x118xf32>
    %439 = arith.mulf %438, %437 : vector<10x118xf32>
    %440 = arith.addf %435, %439 : vector<10x118xf32>
    %c79 = arith.constant 79 : index
    %c0_111 = arith.constant 0 : index
    %441 = vector.load %arg1[%c79, %c0_111] : memref<126x128xf32, #tpu.memory_space<vmem>>, vector<1x118xf32>
    %442 = vector.extract_strided_slice %314 {offsets = [2, 1], sizes = [10, 118], strides = [1, 1]} : vector<12x120xf32> to vector<10x118xf32>
    %443 = vector.broadcast %441 : vector<1x118xf32> to vector<10x118xf32>
    %444 = arith.mulf %443, %442 : vector<10x118xf32>
    %445 = arith.addf %440, %444 : vector<10x118xf32>
    %c80 = arith.constant 80 : index
    %c0_112 = arith.constant 0 : index
    %446 = vector.load %arg1[%c80, %c0_112] : memref<126x128xf32, #tpu.memory_space<vmem>>, vector<1x118xf32>
    %447 = vector.extract_strided_slice %314 {offsets = [2, 2], sizes = [10, 118], strides = [1, 1]} : vector<12x120xf32> to vector<10x118xf32>
    %448 = vector.broadcast %446 : vector<1x118xf32> to vector<10x118xf32>
    %449 = arith.mulf %448, %447 : vector<10x118xf32>
    %450 = arith.addf %445, %449 : vector<10x118xf32>
    %c2_113 = arith.constant 2 : index
    %c0_114 = arith.constant 0 : index
    %451 = vector.load %arg2[%c2_113, %c0_114] : memref<4x128xf32, #tpu.memory_space<vmem>>, vector<1x118xf32>
    %452 = vector.broadcast %451 : vector<1x118xf32> to vector<10x118xf32>
    %453 = arith.addf %450, %452 : vector<10x118xf32>
    %cst_115 = arith.constant 0.000000e+00 : f32
    %454 = vector.broadcast %cst_115 : f32 to vector<10x118xf32>
    %455 = arith.maximumf %453, %454 : vector<10x118xf32>
    %456 = vector.extract_strided_slice %455 {offsets = [0, 0], sizes = [10, 10], strides = [1, 1]} : vector<10x118xf32> to vector<10x10xf32>
    %457 = vector.extract_strided_slice %455 {offsets = [0, 60], sizes = [10, 10], strides = [1, 1]} : vector<10x118xf32> to vector<10x10xf32>
    %458 = tpu.concatenate %456, %456, %456, %456, %456, %457, %457, %457, %457, %457 in 1 : vector<10x10xf32>, vector<10x10xf32>, vector<10x10xf32>, vector<10x10xf32>, vector<10x10xf32>, vector<10x10xf32>, vector<10x10xf32>, vector<10x10xf32>, vector<10x10xf32>, vector<10x10xf32> -> vector<10x100xf32>
    %459 = vector.extract_strided_slice %455 {offsets = [0, 12], sizes = [10, 10], strides = [1, 1]} : vector<10x118xf32> to vector<10x10xf32>
    %460 = vector.extract_strided_slice %455 {offsets = [0, 72], sizes = [10, 10], strides = [1, 1]} : vector<10x118xf32> to vector<10x10xf32>
    %461 = tpu.concatenate %459, %459, %459, %459, %459, %460, %460, %460, %460, %460 in 1 : vector<10x10xf32>, vector<10x10xf32>, vector<10x10xf32>, vector<10x10xf32>, vector<10x10xf32>, vector<10x10xf32>, vector<10x10xf32>, vector<10x10xf32>, vector<10x10xf32>, vector<10x10xf32> -> vector<10x100xf32>
    %462 = vector.extract_strided_slice %455 {offsets = [0, 24], sizes = [10, 10], strides = [1, 1]} : vector<10x118xf32> to vector<10x10xf32>
    %463 = vector.extract_strided_slice %455 {offsets = [0, 84], sizes = [10, 10], strides = [1, 1]} : vector<10x118xf32> to vector<10x10xf32>
    %464 = tpu.concatenate %462, %462, %462, %462, %462, %463, %463, %463, %463, %463 in 1 : vector<10x10xf32>, vector<10x10xf32>, vector<10x10xf32>, vector<10x10xf32>, vector<10x10xf32>, vector<10x10xf32>, vector<10x10xf32>, vector<10x10xf32>, vector<10x10xf32>, vector<10x10xf32> -> vector<10x100xf32>
    %465 = vector.extract_strided_slice %455 {offsets = [0, 36], sizes = [10, 10], strides = [1, 1]} : vector<10x118xf32> to vector<10x10xf32>
    %466 = vector.extract_strided_slice %455 {offsets = [0, 96], sizes = [10, 10], strides = [1, 1]} : vector<10x118xf32> to vector<10x10xf32>
    %467 = tpu.concatenate %465, %465, %465, %465, %465, %466, %466, %466, %466, %466 in 1 : vector<10x10xf32>, vector<10x10xf32>, vector<10x10xf32>, vector<10x10xf32>, vector<10x10xf32>, vector<10x10xf32>, vector<10x10xf32>, vector<10x10xf32>, vector<10x10xf32>, vector<10x10xf32> -> vector<10x100xf32>
    %468 = vector.extract_strided_slice %455 {offsets = [0, 48], sizes = [10, 10], strides = [1, 1]} : vector<10x118xf32> to vector<10x10xf32>
    %469 = vector.extract_strided_slice %455 {offsets = [0, 108], sizes = [10, 10], strides = [1, 1]} : vector<10x118xf32> to vector<10x10xf32>
    %470 = tpu.concatenate %468, %468, %468, %468, %468, %469, %469, %469, %469, %469 in 1 : vector<10x10xf32>, vector<10x10xf32>, vector<10x10xf32>, vector<10x10xf32>, vector<10x10xf32>, vector<10x10xf32>, vector<10x10xf32>, vector<10x10xf32>, vector<10x10xf32>, vector<10x10xf32> -> vector<10x100xf32>
    %cst_116 = arith.constant 0.000000e+00 : f32
    %471 = vector.broadcast %cst_116 : f32 to vector<8x98xf32>
    %c81 = arith.constant 81 : index
    %c0_117 = arith.constant 0 : index
    %472 = vector.load %arg1[%c81, %c0_117] : memref<126x128xf32, #tpu.memory_space<vmem>>, vector<1x98xf32>
    %473 = vector.extract_strided_slice %458 {offsets = [0, 0], sizes = [8, 98], strides = [1, 1]} : vector<10x100xf32> to vector<8x98xf32>
    %474 = vector.broadcast %472 : vector<1x98xf32> to vector<8x98xf32>
    %475 = arith.mulf %474, %473 : vector<8x98xf32>
    %476 = arith.addf %471, %475 : vector<8x98xf32>
    %c82 = arith.constant 82 : index
    %c0_118 = arith.constant 0 : index
    %477 = vector.load %arg1[%c82, %c0_118] : memref<126x128xf32, #tpu.memory_space<vmem>>, vector<1x98xf32>
    %478 = vector.extract_strided_slice %458 {offsets = [0, 1], sizes = [8, 98], strides = [1, 1]} : vector<10x100xf32> to vector<8x98xf32>
    %479 = vector.broadcast %477 : vector<1x98xf32> to vector<8x98xf32>
    %480 = arith.mulf %479, %478 : vector<8x98xf32>
    %481 = arith.addf %476, %480 : vector<8x98xf32>
    %c83 = arith.constant 83 : index
    %c0_119 = arith.constant 0 : index
    %482 = vector.load %arg1[%c83, %c0_119] : memref<126x128xf32, #tpu.memory_space<vmem>>, vector<1x98xf32>
    %483 = vector.extract_strided_slice %458 {offsets = [0, 2], sizes = [8, 98], strides = [1, 1]} : vector<10x100xf32> to vector<8x98xf32>
    %484 = vector.broadcast %482 : vector<1x98xf32> to vector<8x98xf32>
    %485 = arith.mulf %484, %483 : vector<8x98xf32>
    %486 = arith.addf %481, %485 : vector<8x98xf32>
    %c84 = arith.constant 84 : index
    %c0_120 = arith.constant 0 : index
    %487 = vector.load %arg1[%c84, %c0_120] : memref<126x128xf32, #tpu.memory_space<vmem>>, vector<1x98xf32>
    %488 = vector.extract_strided_slice %458 {offsets = [1, 0], sizes = [8, 98], strides = [1, 1]} : vector<10x100xf32> to vector<8x98xf32>
    %489 = vector.broadcast %487 : vector<1x98xf32> to vector<8x98xf32>
    %490 = arith.mulf %489, %488 : vector<8x98xf32>
    %491 = arith.addf %486, %490 : vector<8x98xf32>
    %c85 = arith.constant 85 : index
    %c0_121 = arith.constant 0 : index
    %492 = vector.load %arg1[%c85, %c0_121] : memref<126x128xf32, #tpu.memory_space<vmem>>, vector<1x98xf32>
    %493 = vector.extract_strided_slice %458 {offsets = [1, 1], sizes = [8, 98], strides = [1, 1]} : vector<10x100xf32> to vector<8x98xf32>
    %494 = vector.broadcast %492 : vector<1x98xf32> to vector<8x98xf32>
    %495 = arith.mulf %494, %493 : vector<8x98xf32>
    %496 = arith.addf %491, %495 : vector<8x98xf32>
    %c86 = arith.constant 86 : index
    %c0_122 = arith.constant 0 : index
    %497 = vector.load %arg1[%c86, %c0_122] : memref<126x128xf32, #tpu.memory_space<vmem>>, vector<1x98xf32>
    %498 = vector.extract_strided_slice %458 {offsets = [1, 2], sizes = [8, 98], strides = [1, 1]} : vector<10x100xf32> to vector<8x98xf32>
    %499 = vector.broadcast %497 : vector<1x98xf32> to vector<8x98xf32>
    %500 = arith.mulf %499, %498 : vector<8x98xf32>
    %501 = arith.addf %496, %500 : vector<8x98xf32>
    %c87 = arith.constant 87 : index
    %c0_123 = arith.constant 0 : index
    %502 = vector.load %arg1[%c87, %c0_123] : memref<126x128xf32, #tpu.memory_space<vmem>>, vector<1x98xf32>
    %503 = vector.extract_strided_slice %458 {offsets = [2, 0], sizes = [8, 98], strides = [1, 1]} : vector<10x100xf32> to vector<8x98xf32>
    %504 = vector.broadcast %502 : vector<1x98xf32> to vector<8x98xf32>
    %505 = arith.mulf %504, %503 : vector<8x98xf32>
    %506 = arith.addf %501, %505 : vector<8x98xf32>
    %c88 = arith.constant 88 : index
    %c0_124 = arith.constant 0 : index
    %507 = vector.load %arg1[%c88, %c0_124] : memref<126x128xf32, #tpu.memory_space<vmem>>, vector<1x98xf32>
    %508 = vector.extract_strided_slice %458 {offsets = [2, 1], sizes = [8, 98], strides = [1, 1]} : vector<10x100xf32> to vector<8x98xf32>
    %509 = vector.broadcast %507 : vector<1x98xf32> to vector<8x98xf32>
    %510 = arith.mulf %509, %508 : vector<8x98xf32>
    %511 = arith.addf %506, %510 : vector<8x98xf32>
    %c89 = arith.constant 89 : index
    %c0_125 = arith.constant 0 : index
    %512 = vector.load %arg1[%c89, %c0_125] : memref<126x128xf32, #tpu.memory_space<vmem>>, vector<1x98xf32>
    %513 = vector.extract_strided_slice %458 {offsets = [2, 2], sizes = [8, 98], strides = [1, 1]} : vector<10x100xf32> to vector<8x98xf32>
    %514 = vector.broadcast %512 : vector<1x98xf32> to vector<8x98xf32>
    %515 = arith.mulf %514, %513 : vector<8x98xf32>
    %516 = arith.addf %511, %515 : vector<8x98xf32>
    %c90 = arith.constant 90 : index
    %c0_126 = arith.constant 0 : index
    %517 = vector.load %arg1[%c90, %c0_126] : memref<126x128xf32, #tpu.memory_space<vmem>>, vector<1x98xf32>
    %518 = vector.extract_strided_slice %461 {offsets = [0, 0], sizes = [8, 98], strides = [1, 1]} : vector<10x100xf32> to vector<8x98xf32>
    %519 = vector.broadcast %517 : vector<1x98xf32> to vector<8x98xf32>
    %520 = arith.mulf %519, %518 : vector<8x98xf32>
    %521 = arith.addf %516, %520 : vector<8x98xf32>
    %c91 = arith.constant 91 : index
    %c0_127 = arith.constant 0 : index
    %522 = vector.load %arg1[%c91, %c0_127] : memref<126x128xf32, #tpu.memory_space<vmem>>, vector<1x98xf32>
    %523 = vector.extract_strided_slice %461 {offsets = [0, 1], sizes = [8, 98], strides = [1, 1]} : vector<10x100xf32> to vector<8x98xf32>
    %524 = vector.broadcast %522 : vector<1x98xf32> to vector<8x98xf32>
    %525 = arith.mulf %524, %523 : vector<8x98xf32>
    %526 = arith.addf %521, %525 : vector<8x98xf32>
    %c92 = arith.constant 92 : index
    %c0_128 = arith.constant 0 : index
    %527 = vector.load %arg1[%c92, %c0_128] : memref<126x128xf32, #tpu.memory_space<vmem>>, vector<1x98xf32>
    %528 = vector.extract_strided_slice %461 {offsets = [0, 2], sizes = [8, 98], strides = [1, 1]} : vector<10x100xf32> to vector<8x98xf32>
    %529 = vector.broadcast %527 : vector<1x98xf32> to vector<8x98xf32>
    %530 = arith.mulf %529, %528 : vector<8x98xf32>
    %531 = arith.addf %526, %530 : vector<8x98xf32>
    %c93 = arith.constant 93 : index
    %c0_129 = arith.constant 0 : index
    %532 = vector.load %arg1[%c93, %c0_129] : memref<126x128xf32, #tpu.memory_space<vmem>>, vector<1x98xf32>
    %533 = vector.extract_strided_slice %461 {offsets = [1, 0], sizes = [8, 98], strides = [1, 1]} : vector<10x100xf32> to vector<8x98xf32>
    %534 = vector.broadcast %532 : vector<1x98xf32> to vector<8x98xf32>
    %535 = arith.mulf %534, %533 : vector<8x98xf32>
    %536 = arith.addf %531, %535 : vector<8x98xf32>
    %c94 = arith.constant 94 : index
    %c0_130 = arith.constant 0 : index
    %537 = vector.load %arg1[%c94, %c0_130] : memref<126x128xf32, #tpu.memory_space<vmem>>, vector<1x98xf32>
    %538 = vector.extract_strided_slice %461 {offsets = [1, 1], sizes = [8, 98], strides = [1, 1]} : vector<10x100xf32> to vector<8x98xf32>
    %539 = vector.broadcast %537 : vector<1x98xf32> to vector<8x98xf32>
    %540 = arith.mulf %539, %538 : vector<8x98xf32>
    %541 = arith.addf %536, %540 : vector<8x98xf32>
    %c95 = arith.constant 95 : index
    %c0_131 = arith.constant 0 : index
    %542 = vector.load %arg1[%c95, %c0_131] : memref<126x128xf32, #tpu.memory_space<vmem>>, vector<1x98xf32>
    %543 = vector.extract_strided_slice %461 {offsets = [1, 2], sizes = [8, 98], strides = [1, 1]} : vector<10x100xf32> to vector<8x98xf32>
    %544 = vector.broadcast %542 : vector<1x98xf32> to vector<8x98xf32>
    %545 = arith.mulf %544, %543 : vector<8x98xf32>
    %546 = arith.addf %541, %545 : vector<8x98xf32>
    %c96 = arith.constant 96 : index
    %c0_132 = arith.constant 0 : index
    %547 = vector.load %arg1[%c96, %c0_132] : memref<126x128xf32, #tpu.memory_space<vmem>>, vector<1x98xf32>
    %548 = vector.extract_strided_slice %461 {offsets = [2, 0], sizes = [8, 98], strides = [1, 1]} : vector<10x100xf32> to vector<8x98xf32>
    %549 = vector.broadcast %547 : vector<1x98xf32> to vector<8x98xf32>
    %550 = arith.mulf %549, %548 : vector<8x98xf32>
    %551 = arith.addf %546, %550 : vector<8x98xf32>
    %c97 = arith.constant 97 : index
    %c0_133 = arith.constant 0 : index
    %552 = vector.load %arg1[%c97, %c0_133] : memref<126x128xf32, #tpu.memory_space<vmem>>, vector<1x98xf32>
    %553 = vector.extract_strided_slice %461 {offsets = [2, 1], sizes = [8, 98], strides = [1, 1]} : vector<10x100xf32> to vector<8x98xf32>
    %554 = vector.broadcast %552 : vector<1x98xf32> to vector<8x98xf32>
    %555 = arith.mulf %554, %553 : vector<8x98xf32>
    %556 = arith.addf %551, %555 : vector<8x98xf32>
    %c98 = arith.constant 98 : index
    %c0_134 = arith.constant 0 : index
    %557 = vector.load %arg1[%c98, %c0_134] : memref<126x128xf32, #tpu.memory_space<vmem>>, vector<1x98xf32>
    %558 = vector.extract_strided_slice %461 {offsets = [2, 2], sizes = [8, 98], strides = [1, 1]} : vector<10x100xf32> to vector<8x98xf32>
    %559 = vector.broadcast %557 : vector<1x98xf32> to vector<8x98xf32>
    %560 = arith.mulf %559, %558 : vector<8x98xf32>
    %561 = arith.addf %556, %560 : vector<8x98xf32>
    %c99 = arith.constant 99 : index
    %c0_135 = arith.constant 0 : index
    %562 = vector.load %arg1[%c99, %c0_135] : memref<126x128xf32, #tpu.memory_space<vmem>>, vector<1x98xf32>
    %563 = vector.extract_strided_slice %464 {offsets = [0, 0], sizes = [8, 98], strides = [1, 1]} : vector<10x100xf32> to vector<8x98xf32>
    %564 = vector.broadcast %562 : vector<1x98xf32> to vector<8x98xf32>
    %565 = arith.mulf %564, %563 : vector<8x98xf32>
    %566 = arith.addf %561, %565 : vector<8x98xf32>
    %c100 = arith.constant 100 : index
    %c0_136 = arith.constant 0 : index
    %567 = vector.load %arg1[%c100, %c0_136] : memref<126x128xf32, #tpu.memory_space<vmem>>, vector<1x98xf32>
    %568 = vector.extract_strided_slice %464 {offsets = [0, 1], sizes = [8, 98], strides = [1, 1]} : vector<10x100xf32> to vector<8x98xf32>
    %569 = vector.broadcast %567 : vector<1x98xf32> to vector<8x98xf32>
    %570 = arith.mulf %569, %568 : vector<8x98xf32>
    %571 = arith.addf %566, %570 : vector<8x98xf32>
    %c101 = arith.constant 101 : index
    %c0_137 = arith.constant 0 : index
    %572 = vector.load %arg1[%c101, %c0_137] : memref<126x128xf32, #tpu.memory_space<vmem>>, vector<1x98xf32>
    %573 = vector.extract_strided_slice %464 {offsets = [0, 2], sizes = [8, 98], strides = [1, 1]} : vector<10x100xf32> to vector<8x98xf32>
    %574 = vector.broadcast %572 : vector<1x98xf32> to vector<8x98xf32>
    %575 = arith.mulf %574, %573 : vector<8x98xf32>
    %576 = arith.addf %571, %575 : vector<8x98xf32>
    %c102 = arith.constant 102 : index
    %c0_138 = arith.constant 0 : index
    %577 = vector.load %arg1[%c102, %c0_138] : memref<126x128xf32, #tpu.memory_space<vmem>>, vector<1x98xf32>
    %578 = vector.extract_strided_slice %464 {offsets = [1, 0], sizes = [8, 98], strides = [1, 1]} : vector<10x100xf32> to vector<8x98xf32>
    %579 = vector.broadcast %577 : vector<1x98xf32> to vector<8x98xf32>
    %580 = arith.mulf %579, %578 : vector<8x98xf32>
    %581 = arith.addf %576, %580 : vector<8x98xf32>
    %c103 = arith.constant 103 : index
    %c0_139 = arith.constant 0 : index
    %582 = vector.load %arg1[%c103, %c0_139] : memref<126x128xf32, #tpu.memory_space<vmem>>, vector<1x98xf32>
    %583 = vector.extract_strided_slice %464 {offsets = [1, 1], sizes = [8, 98], strides = [1, 1]} : vector<10x100xf32> to vector<8x98xf32>
    %584 = vector.broadcast %582 : vector<1x98xf32> to vector<8x98xf32>
    %585 = arith.mulf %584, %583 : vector<8x98xf32>
    %586 = arith.addf %581, %585 : vector<8x98xf32>
    %c104 = arith.constant 104 : index
    %c0_140 = arith.constant 0 : index
    %587 = vector.load %arg1[%c104, %c0_140] : memref<126x128xf32, #tpu.memory_space<vmem>>, vector<1x98xf32>
    %588 = vector.extract_strided_slice %464 {offsets = [1, 2], sizes = [8, 98], strides = [1, 1]} : vector<10x100xf32> to vector<8x98xf32>
    %589 = vector.broadcast %587 : vector<1x98xf32> to vector<8x98xf32>
    %590 = arith.mulf %589, %588 : vector<8x98xf32>
    %591 = arith.addf %586, %590 : vector<8x98xf32>
    %c105 = arith.constant 105 : index
    %c0_141 = arith.constant 0 : index
    %592 = vector.load %arg1[%c105, %c0_141] : memref<126x128xf32, #tpu.memory_space<vmem>>, vector<1x98xf32>
    %593 = vector.extract_strided_slice %464 {offsets = [2, 0], sizes = [8, 98], strides = [1, 1]} : vector<10x100xf32> to vector<8x98xf32>
    %594 = vector.broadcast %592 : vector<1x98xf32> to vector<8x98xf32>
    %595 = arith.mulf %594, %593 : vector<8x98xf32>
    %596 = arith.addf %591, %595 : vector<8x98xf32>
    %c106 = arith.constant 106 : index
    %c0_142 = arith.constant 0 : index
    %597 = vector.load %arg1[%c106, %c0_142] : memref<126x128xf32, #tpu.memory_space<vmem>>, vector<1x98xf32>
    %598 = vector.extract_strided_slice %464 {offsets = [2, 1], sizes = [8, 98], strides = [1, 1]} : vector<10x100xf32> to vector<8x98xf32>
    %599 = vector.broadcast %597 : vector<1x98xf32> to vector<8x98xf32>
    %600 = arith.mulf %599, %598 : vector<8x98xf32>
    %601 = arith.addf %596, %600 : vector<8x98xf32>
    %c107 = arith.constant 107 : index
    %c0_143 = arith.constant 0 : index
    %602 = vector.load %arg1[%c107, %c0_143] : memref<126x128xf32, #tpu.memory_space<vmem>>, vector<1x98xf32>
    %603 = vector.extract_strided_slice %464 {offsets = [2, 2], sizes = [8, 98], strides = [1, 1]} : vector<10x100xf32> to vector<8x98xf32>
    %604 = vector.broadcast %602 : vector<1x98xf32> to vector<8x98xf32>
    %605 = arith.mulf %604, %603 : vector<8x98xf32>
    %606 = arith.addf %601, %605 : vector<8x98xf32>
    %c108 = arith.constant 108 : index
    %c0_144 = arith.constant 0 : index
    %607 = vector.load %arg1[%c108, %c0_144] : memref<126x128xf32, #tpu.memory_space<vmem>>, vector<1x98xf32>
    %608 = vector.extract_strided_slice %467 {offsets = [0, 0], sizes = [8, 98], strides = [1, 1]} : vector<10x100xf32> to vector<8x98xf32>
    %609 = vector.broadcast %607 : vector<1x98xf32> to vector<8x98xf32>
    %610 = arith.mulf %609, %608 : vector<8x98xf32>
    %611 = arith.addf %606, %610 : vector<8x98xf32>
    %c109 = arith.constant 109 : index
    %c0_145 = arith.constant 0 : index
    %612 = vector.load %arg1[%c109, %c0_145] : memref<126x128xf32, #tpu.memory_space<vmem>>, vector<1x98xf32>
    %613 = vector.extract_strided_slice %467 {offsets = [0, 1], sizes = [8, 98], strides = [1, 1]} : vector<10x100xf32> to vector<8x98xf32>
    %614 = vector.broadcast %612 : vector<1x98xf32> to vector<8x98xf32>
    %615 = arith.mulf %614, %613 : vector<8x98xf32>
    %616 = arith.addf %611, %615 : vector<8x98xf32>
    %c110 = arith.constant 110 : index
    %c0_146 = arith.constant 0 : index
    %617 = vector.load %arg1[%c110, %c0_146] : memref<126x128xf32, #tpu.memory_space<vmem>>, vector<1x98xf32>
    %618 = vector.extract_strided_slice %467 {offsets = [0, 2], sizes = [8, 98], strides = [1, 1]} : vector<10x100xf32> to vector<8x98xf32>
    %619 = vector.broadcast %617 : vector<1x98xf32> to vector<8x98xf32>
    %620 = arith.mulf %619, %618 : vector<8x98xf32>
    %621 = arith.addf %616, %620 : vector<8x98xf32>
    %c111 = arith.constant 111 : index
    %c0_147 = arith.constant 0 : index
    %622 = vector.load %arg1[%c111, %c0_147] : memref<126x128xf32, #tpu.memory_space<vmem>>, vector<1x98xf32>
    %623 = vector.extract_strided_slice %467 {offsets = [1, 0], sizes = [8, 98], strides = [1, 1]} : vector<10x100xf32> to vector<8x98xf32>
    %624 = vector.broadcast %622 : vector<1x98xf32> to vector<8x98xf32>
    %625 = arith.mulf %624, %623 : vector<8x98xf32>
    %626 = arith.addf %621, %625 : vector<8x98xf32>
    %c112 = arith.constant 112 : index
    %c0_148 = arith.constant 0 : index
    %627 = vector.load %arg1[%c112, %c0_148] : memref<126x128xf32, #tpu.memory_space<vmem>>, vector<1x98xf32>
    %628 = vector.extract_strided_slice %467 {offsets = [1, 1], sizes = [8, 98], strides = [1, 1]} : vector<10x100xf32> to vector<8x98xf32>
    %629 = vector.broadcast %627 : vector<1x98xf32> to vector<8x98xf32>
    %630 = arith.mulf %629, %628 : vector<8x98xf32>
    %631 = arith.addf %626, %630 : vector<8x98xf32>
    %c113 = arith.constant 113 : index
    %c0_149 = arith.constant 0 : index
    %632 = vector.load %arg1[%c113, %c0_149] : memref<126x128xf32, #tpu.memory_space<vmem>>, vector<1x98xf32>
    %633 = vector.extract_strided_slice %467 {offsets = [1, 2], sizes = [8, 98], strides = [1, 1]} : vector<10x100xf32> to vector<8x98xf32>
    %634 = vector.broadcast %632 : vector<1x98xf32> to vector<8x98xf32>
    %635 = arith.mulf %634, %633 : vector<8x98xf32>
    %636 = arith.addf %631, %635 : vector<8x98xf32>
    %c114 = arith.constant 114 : index
    %c0_150 = arith.constant 0 : index
    %637 = vector.load %arg1[%c114, %c0_150] : memref<126x128xf32, #tpu.memory_space<vmem>>, vector<1x98xf32>
    %638 = vector.extract_strided_slice %467 {offsets = [2, 0], sizes = [8, 98], strides = [1, 1]} : vector<10x100xf32> to vector<8x98xf32>
    %639 = vector.broadcast %637 : vector<1x98xf32> to vector<8x98xf32>
    %640 = arith.mulf %639, %638 : vector<8x98xf32>
    %641 = arith.addf %636, %640 : vector<8x98xf32>
    %c115 = arith.constant 115 : index
    %c0_151 = arith.constant 0 : index
    %642 = vector.load %arg1[%c115, %c0_151] : memref<126x128xf32, #tpu.memory_space<vmem>>, vector<1x98xf32>
    %643 = vector.extract_strided_slice %467 {offsets = [2, 1], sizes = [8, 98], strides = [1, 1]} : vector<10x100xf32> to vector<8x98xf32>
    %644 = vector.broadcast %642 : vector<1x98xf32> to vector<8x98xf32>
    %645 = arith.mulf %644, %643 : vector<8x98xf32>
    %646 = arith.addf %641, %645 : vector<8x98xf32>
    %c116 = arith.constant 116 : index
    %c0_152 = arith.constant 0 : index
    %647 = vector.load %arg1[%c116, %c0_152] : memref<126x128xf32, #tpu.memory_space<vmem>>, vector<1x98xf32>
    %648 = vector.extract_strided_slice %467 {offsets = [2, 2], sizes = [8, 98], strides = [1, 1]} : vector<10x100xf32> to vector<8x98xf32>
    %649 = vector.broadcast %647 : vector<1x98xf32> to vector<8x98xf32>
    %650 = arith.mulf %649, %648 : vector<8x98xf32>
    %651 = arith.addf %646, %650 : vector<8x98xf32>
    %c117 = arith.constant 117 : index
    %c0_153 = arith.constant 0 : index
    %652 = vector.load %arg1[%c117, %c0_153] : memref<126x128xf32, #tpu.memory_space<vmem>>, vector<1x98xf32>
    %653 = vector.extract_strided_slice %470 {offsets = [0, 0], sizes = [8, 98], strides = [1, 1]} : vector<10x100xf32> to vector<8x98xf32>
    %654 = vector.broadcast %652 : vector<1x98xf32> to vector<8x98xf32>
    %655 = arith.mulf %654, %653 : vector<8x98xf32>
    %656 = arith.addf %651, %655 : vector<8x98xf32>
    %c118 = arith.constant 118 : index
    %c0_154 = arith.constant 0 : index
    %657 = vector.load %arg1[%c118, %c0_154] : memref<126x128xf32, #tpu.memory_space<vmem>>, vector<1x98xf32>
    %658 = vector.extract_strided_slice %470 {offsets = [0, 1], sizes = [8, 98], strides = [1, 1]} : vector<10x100xf32> to vector<8x98xf32>
    %659 = vector.broadcast %657 : vector<1x98xf32> to vector<8x98xf32>
    %660 = arith.mulf %659, %658 : vector<8x98xf32>
    %661 = arith.addf %656, %660 : vector<8x98xf32>
    %c119 = arith.constant 119 : index
    %c0_155 = arith.constant 0 : index
    %662 = vector.load %arg1[%c119, %c0_155] : memref<126x128xf32, #tpu.memory_space<vmem>>, vector<1x98xf32>
    %663 = vector.extract_strided_slice %470 {offsets = [0, 2], sizes = [8, 98], strides = [1, 1]} : vector<10x100xf32> to vector<8x98xf32>
    %664 = vector.broadcast %662 : vector<1x98xf32> to vector<8x98xf32>
    %665 = arith.mulf %664, %663 : vector<8x98xf32>
    %666 = arith.addf %661, %665 : vector<8x98xf32>
    %c120 = arith.constant 120 : index
    %c0_156 = arith.constant 0 : index
    %667 = vector.load %arg1[%c120, %c0_156] : memref<126x128xf32, #tpu.memory_space<vmem>>, vector<1x98xf32>
    %668 = vector.extract_strided_slice %470 {offsets = [1, 0], sizes = [8, 98], strides = [1, 1]} : vector<10x100xf32> to vector<8x98xf32>
    %669 = vector.broadcast %667 : vector<1x98xf32> to vector<8x98xf32>
    %670 = arith.mulf %669, %668 : vector<8x98xf32>
    %671 = arith.addf %666, %670 : vector<8x98xf32>
    %c121 = arith.constant 121 : index
    %c0_157 = arith.constant 0 : index
    %672 = vector.load %arg1[%c121, %c0_157] : memref<126x128xf32, #tpu.memory_space<vmem>>, vector<1x98xf32>
    %673 = vector.extract_strided_slice %470 {offsets = [1, 1], sizes = [8, 98], strides = [1, 1]} : vector<10x100xf32> to vector<8x98xf32>
    %674 = vector.broadcast %672 : vector<1x98xf32> to vector<8x98xf32>
    %675 = arith.mulf %674, %673 : vector<8x98xf32>
    %676 = arith.addf %671, %675 : vector<8x98xf32>
    %c122 = arith.constant 122 : index
    %c0_158 = arith.constant 0 : index
    %677 = vector.load %arg1[%c122, %c0_158] : memref<126x128xf32, #tpu.memory_space<vmem>>, vector<1x98xf32>
    %678 = vector.extract_strided_slice %470 {offsets = [1, 2], sizes = [8, 98], strides = [1, 1]} : vector<10x100xf32> to vector<8x98xf32>
    %679 = vector.broadcast %677 : vector<1x98xf32> to vector<8x98xf32>
    %680 = arith.mulf %679, %678 : vector<8x98xf32>
    %681 = arith.addf %676, %680 : vector<8x98xf32>
    %c123 = arith.constant 123 : index
    %c0_159 = arith.constant 0 : index
    %682 = vector.load %arg1[%c123, %c0_159] : memref<126x128xf32, #tpu.memory_space<vmem>>, vector<1x98xf32>
    %683 = vector.extract_strided_slice %470 {offsets = [2, 0], sizes = [8, 98], strides = [1, 1]} : vector<10x100xf32> to vector<8x98xf32>
    %684 = vector.broadcast %682 : vector<1x98xf32> to vector<8x98xf32>
    %685 = arith.mulf %684, %683 : vector<8x98xf32>
    %686 = arith.addf %681, %685 : vector<8x98xf32>
    %c124 = arith.constant 124 : index
    %c0_160 = arith.constant 0 : index
    %687 = vector.load %arg1[%c124, %c0_160] : memref<126x128xf32, #tpu.memory_space<vmem>>, vector<1x98xf32>
    %688 = vector.extract_strided_slice %470 {offsets = [2, 1], sizes = [8, 98], strides = [1, 1]} : vector<10x100xf32> to vector<8x98xf32>
    %689 = vector.broadcast %687 : vector<1x98xf32> to vector<8x98xf32>
    %690 = arith.mulf %689, %688 : vector<8x98xf32>
    %691 = arith.addf %686, %690 : vector<8x98xf32>
    %c125 = arith.constant 125 : index
    %c0_161 = arith.constant 0 : index
    %692 = vector.load %arg1[%c125, %c0_161] : memref<126x128xf32, #tpu.memory_space<vmem>>, vector<1x98xf32>
    %693 = vector.extract_strided_slice %470 {offsets = [2, 2], sizes = [8, 98], strides = [1, 1]} : vector<10x100xf32> to vector<8x98xf32>
    %694 = vector.broadcast %692 : vector<1x98xf32> to vector<8x98xf32>
    %695 = arith.mulf %694, %693 : vector<8x98xf32>
    %696 = arith.addf %691, %695 : vector<8x98xf32>
    %c3_162 = arith.constant 3 : index
    %c0_163 = arith.constant 0 : index
    %697 = vector.load %arg2[%c3_162, %c0_163] : memref<4x128xf32, #tpu.memory_space<vmem>>, vector<1x98xf32>
    %698 = vector.broadcast %697 : vector<1x98xf32> to vector<8x98xf32>
    %699 = arith.addf %696, %698 : vector<8x98xf32>
    %cst_164 = arith.constant 0.000000e+00 : f32
    %700 = vector.broadcast %cst_164 : f32 to vector<8x98xf32>
    %701 = arith.maximumf %699, %700 : vector<8x98xf32>
    %702 = vector.extract_strided_slice %701 {offsets = [0, 0], sizes = [8, 97], strides = [1, 1]} : vector<8x98xf32> to vector<8x97xf32>
    %703 = vector.extract_strided_slice %701 {offsets = [0, 1], sizes = [8, 97], strides = [1, 1]} : vector<8x98xf32> to vector<8x97xf32>
    %704 = arith.maximumf %702, %703 : vector<8x97xf32>
    %705 = vector.extract_strided_slice %704 {offsets = [0, 0], sizes = [1, 97], strides = [1, 1]} : vector<8x97xf32> to vector<1x97xf32>
    %706 = vector.extract_strided_slice %704 {offsets = [1, 0], sizes = [1, 97], strides = [1, 1]} : vector<8x97xf32> to vector<1x97xf32>
    %707 = arith.maximumf %705, %706 : vector<1x97xf32>
    %708 = vector.extract_strided_slice %704 {offsets = [2, 0], sizes = [1, 97], strides = [1, 1]} : vector<8x97xf32> to vector<1x97xf32>
    %709 = vector.extract_strided_slice %704 {offsets = [3, 0], sizes = [1, 97], strides = [1, 1]} : vector<8x97xf32> to vector<1x97xf32>
    %710 = arith.maximumf %708, %709 : vector<1x97xf32>
    %711 = vector.extract_strided_slice %704 {offsets = [4, 0], sizes = [1, 97], strides = [1, 1]} : vector<8x97xf32> to vector<1x97xf32>
    %712 = vector.extract_strided_slice %704 {offsets = [5, 0], sizes = [1, 97], strides = [1, 1]} : vector<8x97xf32> to vector<1x97xf32>
    %713 = arith.maximumf %711, %712 : vector<1x97xf32>
    %714 = vector.extract_strided_slice %704 {offsets = [6, 0], sizes = [1, 97], strides = [1, 1]} : vector<8x97xf32> to vector<1x97xf32>
    %715 = vector.extract_strided_slice %704 {offsets = [7, 0], sizes = [1, 97], strides = [1, 1]} : vector<8x97xf32> to vector<1x97xf32>
    %716 = arith.maximumf %714, %715 : vector<1x97xf32>
    %717 = tpu.concatenate %707, %710, %713, %716 in 0 : vector<1x97xf32>, vector<1x97xf32>, vector<1x97xf32>, vector<1x97xf32> -> vector<4x97xf32>
    %c0_165 = arith.constant 0 : index
    %c0_166 = arith.constant 0 : index
    %718 = vector.load %arg3[%c0_165, %c0_166] : memref<97x40xf32, #tpu.memory_space<vmem>>, vector<97x40xf32>
    %cst_167 = arith.constant dense<0.000000e+00> : vector<4x40xf32>
    %719 = tpu.matmul %717, %718, %cst_167 {dimension_numbers = #tpu.dot_dimension_numbers<[1], [0], [0], [1], [0, 0, 1, 1], [], []>} : vector<4x97xf32>, vector<97x40xf32>, vector<4x40xf32> -> vector<4x40xf32>
    %c0_168 = arith.constant 0 : index
    %c0_169 = arith.constant 0 : index
    %720 = vector.load %arg4[%c0_168, %c0_169] : memref<4x40xf32, #tpu.memory_space<vmem>>, vector<4x40xf32>
    tpu.vector_store %arg4[%c0_168, %c0_169], %719 {strides = array<i32>} : memref<4x40xf32, #tpu.memory_space<vmem>>, vector<4x40xf32>,
    return
  }
}

</mosaic_0001>

<llo_original>
// kernel: model_forward.1
$region0: #{model_forward.1}
  #allocation0 [shape = 'u32[]', space=smem, size = 0x4, offset = 0x4, fixed_abs, tag = 'smem constant byte address 0x4 - core index']
  #allocation1 [shape = 'u32[144,128]{1,0:T(1,128)}', space=vmem, size = 0x12000, scoped, tag = 'internal scratch']
  %s0 = inlined_call_operand.hbm [shape: f32[2,3,16,16], index: 0, kind: input, shape index: {}]
  %s1 = inlined_call_operand.vmem [shape: f32[126,128], index: 1, kind: input, shape index: {}]
  %s2 = inlined_call_operand.vmem [shape: f32[4,128], index: 2, kind: input, shape index: {}]
  %s3 = inlined_call_operand.vmem [shape: f32[97,40], index: 3, kind: input, shape index: {}]
  %s4 = inlined_call_operand.vmem [shape: f32[4,40], index: 4, kind: output, shape index: {}]
  %s5 = sld [smem:[#allocation0]]
  $region30: #{model_forward.1} parent=0
    _
  %s7 = ssub.s32 1, %s5
  %s8 = scalar_select 0, %s7, %s5
  $region1: #{model_forward.1} parent=0
    #allocation2 [shape = 'u8[49152]{0}', space=vmem, size = 0xc000, scoped, tag = 'input window, operand 0, single buffered']
    #allocation3 [shape = 's32[1]{0}', space=sflag, size = 0x4, scoped, tag = 'scoped memory for model_forward.1']
    %9 = vsyncpa [#allocation3], 0
    // Predicated region
    $region2: #{model_forward.1} parent=1 // pred_check
      _
    $region3: #{model_forward.1} parent=1 // pred_check_branch
      %11 = sbr.rel (0) target = $region5
    $region4: #{model_forward.1} parent=1 // pred_region
      %s13 = ssub.s32 1536, 1536
      %14 = vsyncadd [#allocation3], %s13
      %s15 = sshll.u32 [#allocation2], 4
      %s16 = int_to_ptr.vmem [resolvable:$true] %s15
      %21 = dma.hbm_to_vmem [thread:$0]  %s0, 1536, %s16, [#allocation3], 128, 128, 8
    $region5: #{model_forward.1} parent=1 // pred_fallthru
      _
    // Predicated region
    $region6: #{model_forward.1} parent=1 // pred_check
      _
    $region7: #{model_forward.1} parent=1 // pred_check_branch
      %23 = sbr.rel (0) target = $region9
    $region8: #{model_forward.1} parent=1 // pred_region
      _
    $region9: #{model_forward.1} parent=1 // pred_fallthru
      _
    // Predicated region
    $region10: #{model_forward.1} parent=1 // pred_check
      _
    $region11: #{model_forward.1} parent=1 // pred_check_branch
      %25 = sbr.rel (0) target = $region13
    $region12: #{model_forward.1} parent=1 // pred_region
      _
    $region13: #{model_forward.1} parent=1 // pred_fallthru
      _
    // Predicated region
    $region14: #{model_forward.1} parent=1 // pred_check
      _
    $region15: #{model_forward.1} parent=1 // pred_check_branch
      %27 = sbr.rel (0) target = $region17
    $region16: #{model_forward.1} parent=1 // pred_region
      _
    $region17: #{model_forward.1} parent=1 // pred_fallthru
      _
    // Predicated region
    $region18: #{model_forward.1} parent=1 // pred_check
      _
    $region19: #{model_forward.1} parent=1 // pred_check_branch
      %29 = sbr.rel (0) target = $region21
    $region20: #{model_forward.1} parent=1 // pred_region
      %30 = dma.done [#allocation3], 1536
    $region21: #{model_forward.1} parent=1 // pred_fallthru
      _
    %v31 = vld [vmem:[#allocation2] sm:$0xff]
    %v32 = vld [vmem:[#allocation2 + $0x8] sm:$0xff]
    %s33 = scalar_lea.vmem [#allocation2], 48
    %v34 = vld [vmem:[%s33] sm:$0xff]
    %v35 = vld [vmem:[%s33 + $0x8] sm:$0xff]
    %38 = vrot.lane.b32.xlu0 %v31, 16
    %v39 = vpop.permute.xlu0 %38
    %40 = vrot.lane.b32.xlu0 %v32, 16
    %v41 = vpop.permute.xlu0 %40
    %44 = vrot.lane.b32.xlu0 %v31, 32
    %v45 = vpop.permute.xlu0 %44
    %46 = vrot.lane.b32.xlu0 %v32, 32
    %v47 = vpop.permute.xlu0 %46
    %52 = vrot.lane.b32.xlu0 %v34, 48
    %v53 = vpop.permute.xlu0 %52
    %54 = vrot.lane.b32.xlu0 %v35, 48
    %v55 = vpop.permute.xlu0 %54
    %58 = vrot.lane.b32.xlu0 %v34, 64
    %v59 = vpop.permute.xlu0 %58
    %60 = vrot.lane.b32.xlu0 %v35, 64
    %v61 = vpop.permute.xlu0 %60
    %64 = vrot.lane.b32.xlu0 %v34, 80
    %v65 = vpop.permute.xlu0 %64
    %66 = vrot.lane.b32.xlu0 %v35, 80
    %v67 = vpop.permute.xlu0 %66
    %vm70 = vcmask 130048
    %v71 = vsel %vm70, %v31, %v39
    %v72 = vsel %vm70, %v32, %v41
    %vm73 = vcmask 261120
    %v74 = vsel %vm73, %v71, %v45
    %v75 = vsel %vm73, %v72, %v47
    %vm76 = vcmask 392192
    %v77 = vsel %vm76, %v74, %v53
    %v78 = vsel %vm76, %v75, %v55
    %vm79 = vcmask 523264
    %v80 = vsel %vm79, %v77, %v59
    %v81 = vsel %vm79, %v78, %v61
    %vm82 = vcmask 654336
    %v83 = vsel %vm82, %v80, %v65
    %v84 = vsel %vm82, %v81, %v67
    %s85 = scalar_lea.vmem [#allocation2], 16
    %v86 = vld [vmem:[%s85] sm:$0xff]
    %v87 = vld [vmem:[%s85 + $0x8] sm:$0xff]
    %s88 = scalar_lea.vmem [#allocation2], 64
    %v89 = vld [vmem:[%s88] sm:$0xff]
    %v90 = vld [vmem:[%s88 + $0x8] sm:$0xff]
    %93 = vrot.lane.b32.xlu0 %v86, 16
    %v94 = vpop.permute.xlu0 %93
    %95 = vrot.lane.b32.xlu0 %v87, 16
    %v96 = vpop.permute.xlu0 %95
    %99 = vrot.lane.b32.xlu0 %v86, 32
    %v100 = vpop.permute.xlu0 %99
    %101 = vrot.lane.b32.xlu0 %v87, 32
    %v102 = vpop.permute.xlu0 %101
    %107 = vrot.lane.b32.xlu0 %v89, 48
    %v108 = vpop.permute.xlu0 %107
    %109 = vrot.lane.b32.xlu0 %v90, 48
    %v110 = vpop.permute.xlu0 %109
    %113 = vrot.lane.b32.xlu0 %v89, 64
    %v114 = vpop.permute.xlu0 %113
    %115 = vrot.lane.b32.xlu0 %v90, 64
    %v116 = vpop.permute.xlu0 %115
    %119 = vrot.lane.b32.xlu0 %v89, 80
    %v120 = vpop.permute.xlu0 %119
    %121 = vrot.lane.b32.xlu0 %v90, 80
    %v122 = vpop.permute.xlu0 %121
    %v125 = vsel %vm70, %v86, %v94
    %v126 = vsel %vm70, %v87, %v96
    %v127 = vsel %vm73, %v125, %v100
    %v128 = vsel %vm73, %v126, %v102
    %v129 = vsel %vm76, %v127, %v108
    %v130 = vsel %vm76, %v128, %v110
    %v131 = vsel %vm79, %v129, %v114
    %v132 = vsel %vm79, %v130, %v116
    %v133 = vsel %vm82, %v131, %v120
    %v134 = vsel %vm82, %v132, %v122
    %s135 = scalar_lea.vmem [#allocation2], 32
    %v136 = vld [vmem:[%s135] sm:$0xff]
    %v137 = vld [vmem:[%s135 + $0x8] sm:$0xff]
    %s138 = scalar_lea.vmem [#allocation2], 80
    %v139 = vld [vmem:[%s138] sm:$0xff]
    %v140 = vld [vmem:[%s138 + $0x8] sm:$0xff]
    %143 = vrot.lane.b32.xlu0 %v136, 16
    %v144 = vpop.permute.xlu0 %143
    %145 = vrot.lane.b32.xlu0 %v137, 16
    %v146 = vpop.permute.xlu0 %145
    %149 = vrot.lane.b32.xlu0 %v136, 32
    %v150 = vpop.permute.xlu0 %149
    %151 = vrot.lane.b32.xlu0 %v137, 32
    %v152 = vpop.permute.xlu0 %151
    %157 = vrot.lane.b32.xlu0 %v139, 48
    %v158 = vpop.permute.xlu0 %157
    %159 = vrot.lane.b32.xlu0 %v140, 48
    %v160 = vpop.permute.xlu0 %159
    %163 = vrot.lane.b32.xlu0 %v139, 64
    %v164 = vpop.permute.xlu0 %163
    %165 = vrot.lane.b32.xlu0 %v140, 64
    %v166 = vpop.permute.xlu0 %165
    %169 = vrot.lane.b32.xlu0 %v139, 80
    %v170 = vpop.permute.xlu0 %169
    %171 = vrot.lane.b32.xlu0 %v140, 80
    %v172 = vpop.permute.xlu0 %171
    %v175 = vsel %vm70, %v136, %v144
    %v176 = vsel %vm70, %v137, %v146
    %v177 = vsel %vm73, %v175, %v150
    %v178 = vsel %vm73, %v176, %v152
    %v179 = vsel %vm76, %v177, %v158
    %v180 = vsel %vm76, %v178, %v160
    %v181 = vsel %vm79, %v179, %v164
    %v182 = vsel %vm79, %v180, %v166
    %v183 = vsel %vm82, %v181, %v170
    %v184 = vsel %vm82, %v182, %v172
    %v185 = vld [vmem:[%s1] sm:$0x1]
    %v186 = vlaneseq
    %v187 = vshrl.u32 %v186, 7
    %v188 = vsub.s32 0, %v187
    %v189 = vrot.slane %v185, %v188
    %v190 = vmul.f32 %v189, %v83
    %v191 = vmul.f32 %v189, %v84
    %v192 = vadd.f32 %v190, 0.0
    %v193 = vadd.f32 %v191, 0.0
    %v194 = vld [vmem:[%s1 + $0x1] sm:$0x1]
    %v195 = vlaneseq
    %v196 = vshrl.u32 %v195, 7
    %v197 = vsub.s32 0, %v196
    %v198 = vrot.slane %v194, %v197
    %201 = vrot.lane.b32.xlu0 %v83, 127
    %v202 = vpop.permute.xlu0 %201
    %203 = vrot.lane.b32.xlu0 %v84, 127
    %v204 = vpop.permute.xlu0 %203
    %v207 = vmul.f32 %v198, %v202
    %v208 = vmul.f32 %v198, %v204
    %v209 = vadd.f32 %v192, %v207
    %v210 = vadd.f32 %v193, %v208
    %v211 = vld [vmem:[%s1 + $0x2] sm:$0x1]
    %v212 = vlaneseq
    %v213 = vshrl.u32 %v212, 7
    %v214 = vsub.s32 0, %v213
    %v215 = vrot.slane %v211, %v214
    %216 = vrot.lane.b32.xlu0 %v83, 126
    %v217 = vpop.permute.xlu0 %216
    %218 = vrot.lane.b32.xlu0 %v84, 126
    %v219 = vpop.permute.xlu0 %218
    %v222 = vmul.f32 %v215, %v217
    %v223 = vmul.f32 %v215, %v219
    %v224 = vadd.f32 %v209, %v222
    %v225 = vadd.f32 %v210, %v223
    %v226 = vld [vmem:[%s1 + $0x3] sm:$0x1]
    %v227 = vlaneseq
    %v228 = vshrl.u32 %v227, 7
    %v229 = vsub.s32 0, %v228
    %v230 = vrot.slane %v226, %v229
    %v231 = vmul.f32 %v230, %v83
    %v232 = vmul.f32 %v230, %v84
    %vm235 = vcmask 1046528
    %v236 = vrot.slane %v231, 1
    %v237 = vrot.slane %v232, 1
    %v238 = vsel %vm235, %v236, %v237
    %v241 = vadd.f32 %v224, %v238
    %v242 = vadd.f32 %v225, %v237
    %v243 = vld [vmem:[%s1 + $0x4] sm:$0x1]
    %v244 = vlaneseq
    %v245 = vshrl.u32 %v244, 7
    %v246 = vsub.s32 0, %v245
    %v247 = vrot.slane %v243, %v246
    %v248 = vrot.slane %v83, 1
    %v249 = vrot.slane %v84, 1
    %v250 = vsel %vm235, %v248, %v249
    %251 = vrot.lane.b32.xlu0 %v250, 127
    %v252 = vpop.permute.xlu0 %251
    %253 = vrot.lane.b32.xlu0 %v249, 127
    %v254 = vpop.permute.xlu0 %253
    %v257 = vmul.f32 %v247, %v252
    %v258 = vmul.f32 %v247, %v254
    %v259 = vadd.f32 %v241, %v257
    %v260 = vadd.f32 %v242, %v258
    %v261 = vld [vmem:[%s1 + $0x5] sm:$0x1]
    %v262 = vlaneseq
    %v263 = vshrl.u32 %v262, 7
    %v264 = vsub.s32 0, %v263
    %v265 = vrot.slane %v261, %v264
    %266 = vrot.lane.b32.xlu0 %v250, 126
    %v267 = vpop.permute.xlu0 %266
    %268 = vrot.lane.b32.xlu0 %v249, 126
    %v269 = vpop.permute.xlu0 %268
    %v272 = vmul.f32 %v265, %v267
    %v273 = vmul.f32 %v265, %v269
    %v274 = vadd.f32 %v259, %v272
    %v275 = vadd.f32 %v260, %v273
    %v276 = vld [vmem:[%s1 + $0x6] sm:$0x1]
    %v277 = vlaneseq
    %v278 = vshrl.u32 %v277, 7
    %v279 = vsub.s32 0, %v278
    %v280 = vrot.slane %v276, %v279
    %v281 = vmul.f32 %v280, %v83
    %v282 = vmul.f32 %v280, %v84
    %vm285 = vcmask 1045504
    %v286 = vrot.slane %v281, 2
    %v287 = vrot.slane %v282, 2
    %v288 = vsel %vm285, %v286, %v287
    %v291 = vadd.f32 %v274, %v288
    %v292 = vadd.f32 %v275, %v287
    %v293 = vld [vmem:[%s1 + $0x7] sm:$0x1]
    %v294 = vlaneseq
    %v295 = vshrl.u32 %v294, 7
    %v296 = vsub.s32 0, %v295
    %v297 = vrot.slane %v293, %v296
    %v298 = vrot.slane %v83, 2
    %v299 = vrot.slane %v84, 2
    %v300 = vsel %vm285, %v298, %v299
    %301 = vrot.lane.b32.xlu0 %v300, 127
    %v302 = vpop.permute.xlu0 %301
    %303 = vrot.lane.b32.xlu0 %v299, 127
    %v304 = vpop.permute.xlu0 %303
    %v307 = vmul.f32 %v297, %v302
    %v308 = vmul.f32 %v297, %v304
    %v309 = vadd.f32 %v291, %v307
    %v310 = vadd.f32 %v292, %v308
    %v311 = vld [vmem:[%s1 + $0x8] sm:$0x1]
    %v312 = vlaneseq
    %v313 = vshrl.u32 %v312, 7
    %v314 = vsub.s32 0, %v313
    %v315 = vrot.slane %v311, %v314
    %316 = vrot.lane.b32.xlu0 %v300, 126
    %v317 = vpop.permute.xlu0 %316
    %318 = vrot.lane.b32.xlu0 %v299, 126
    %v319 = vpop.permute.xlu0 %318
    %v322 = vmul.f32 %v315, %v317
    %v323 = vmul.f32 %v315, %v319
    %v324 = vadd.f32 %v309, %v322
    %v325 = vadd.f32 %v310, %v323
    %v326 = vld [vmem:[%s1 + $0x9] sm:$0x1]
    %v327 = vlaneseq
    %v328 = vshrl.u32 %v327, 7
    %v329 = vsub.s32 0, %v328
    %v330 = vrot.slane %v326, %v329
    %v331 = vmul.f32 %v330, %v133
    %v332 = vmul.f32 %v330, %v134
    %v333 = vadd.f32 %v324, %v331
    %v334 = vadd.f32 %v325, %v332
    %v335 = vld [vmem:[%s1 + $0xa] sm:$0x1]
    %v336 = vlaneseq
    %v337 = vshrl.u32 %v336, 7
    %v338 = vsub.s32 0, %v337
    %v339 = vrot.slane %v335, %v338
    %342 = vrot.lane.b32.xlu0 %v133, 127
    %v343 = vpop.permute.xlu0 %342
    %344 = vrot.lane.b32.xlu0 %v134, 127
    %v345 = vpop.permute.xlu0 %344
    %v348 = vmul.f32 %v339, %v343
    %v349 = vmul.f32 %v339, %v345
    %v350 = vadd.f32 %v333, %v348
    %v351 = vadd.f32 %v334, %v349
    %v352 = vld [vmem:[%s1 + $0xb] sm:$0x1]
    %v353 = vlaneseq
    %v354 = vshrl.u32 %v353, 7
    %v355 = vsub.s32 0, %v354
    %v356 = vrot.slane %v352, %v355
    %357 = vrot.lane.b32.xlu0 %v133, 126
    %v358 = vpop.permute.xlu0 %357
    %359 = vrot.lane.b32.xlu0 %v134, 126
    %v360 = vpop.permute.xlu0 %359
    %v363 = vmul.f32 %v356, %v358
    %v364 = vmul.f32 %v356, %v360
    %v365 = vadd.f32 %v350, %v363
    %v366 = vadd.f32 %v351, %v364
    %v367 = vld [vmem:[%s1 + $0xc] sm:$0x1]
    %v368 = vlaneseq
    %v369 = vshrl.u32 %v368, 7
    %v370 = vsub.s32 0, %v369
    %v371 = vrot.slane %v367, %v370
    %v372 = vmul.f32 %v371, %v133
    %v373 = vmul.f32 %v371, %v134
    %v376 = vrot.slane %v372, 1
    %v377 = vrot.slane %v373, 1
    %v378 = vsel %vm235, %v376, %v377
    %v381 = vadd.f32 %v365, %v378
    %v382 = vadd.f32 %v366, %v377
    %v383 = vld [vmem:[%s1 + $0xd] sm:$0x1]
    %v384 = vlaneseq
    %v385 = vshrl.u32 %v384, 7
    %v386 = vsub.s32 0, %v385
    %v387 = vrot.slane %v383, %v386
    %v388 = vrot.slane %v133, 1
    %v389 = vrot.slane %v134, 1
    %v390 = vsel %vm235, %v388, %v389
    %391 = vrot.lane.b32.xlu0 %v390, 127
    %v392 = vpop.permute.xlu0 %391
    %393 = vrot.lane.b32.xlu0 %v389, 127
    %v394 = vpop.permute.xlu0 %393
    %v397 = vmul.f32 %v387, %v392
    %v398 = vmul.f32 %v387, %v394
    %v399 = vadd.f32 %v381, %v397
    %v400 = vadd.f32 %v382, %v398
    %v401 = vld [vmem:[%s1 + $0xe] sm:$0x1]
    %v402 = vlaneseq
    %v403 = vshrl.u32 %v402, 7
    %v404 = vsub.s32 0, %v403
    %v405 = vrot.slane %v401, %v404
    %406 = vrot.lane.b32.xlu0 %v390, 126
    %v407 = vpop.permute.xlu0 %406
    %408 = vrot.lane.b32.xlu0 %v389, 126
    %v409 = vpop.permute.xlu0 %408
    %v412 = vmul.f32 %v405, %v407
    %v413 = vmul.f32 %v405, %v409
    %v414 = vadd.f32 %v399, %v412
    %v415 = vadd.f32 %v400, %v413
    %v416 = vld [vmem:[%s1 + $0xf] sm:$0x1]
    %v417 = vlaneseq
    %v418 = vshrl.u32 %v417, 7
    %v419 = vsub.s32 0, %v418
    %v420 = vrot.slane %v416, %v419
    %v421 = vmul.f32 %v420, %v133
    %v422 = vmul.f32 %v420, %v134
    %v425 = vrot.slane %v421, 2
    %v426 = vrot.slane %v422, 2
    %v427 = vsel %vm285, %v425, %v426
    %v430 = vadd.f32 %v414, %v427
    %v431 = vadd.f32 %v415, %v426
    %v432 = vld [vmem:[%s1 + $0x10] sm:$0x1]
    %v433 = vlaneseq
    %v434 = vshrl.u32 %v433, 7
    %v435 = vsub.s32 0, %v434
    %v436 = vrot.slane %v432, %v435
    %v437 = vrot.slane %v133, 2
    %v438 = vrot.slane %v134, 2
    %v439 = vsel %vm285, %v437, %v438
    %440 = vrot.lane.b32.xlu0 %v439, 127
    %v441 = vpop.permute.xlu0 %440
    %442 = vrot.lane.b32.xlu0 %v438, 127
    %v443 = vpop.permute.xlu0 %442
    %v446 = vmul.f32 %v436, %v441
    %v447 = vmul.f32 %v436, %v443
    %v448 = vadd.f32 %v430, %v446
    %v449 = vadd.f32 %v431, %v447
    %v450 = vld [vmem:[%s1 + $0x11] sm:$0x1]
    %v451 = vlaneseq
    %v452 = vshrl.u32 %v451, 7
    %v453 = vsub.s32 0, %v452
    %v454 = vrot.slane %v450, %v453
    %455 = vrot.lane.b32.xlu0 %v439, 126
    %v456 = vpop.permute.xlu0 %455
    %457 = vrot.lane.b32.xlu0 %v438, 126
    %v458 = vpop.permute.xlu0 %457
    %v461 = vmul.f32 %v454, %v456
    %v462 = vmul.f32 %v454, %v458
    %v463 = vadd.f32 %v448, %v461
    %v464 = vadd.f32 %v449, %v462
    %v465 = vld [vmem:[%s1 + $0x12] sm:$0x1]
    %v466 = vlaneseq
    %v467 = vshrl.u32 %v466, 7
    %v468 = vsub.s32 0, %v467
    %v469 = vrot.slane %v465, %v468
    %v470 = vmul.f32 %v469, %v183
    %v471 = vmul.f32 %v469, %v184
    %v472 = vadd.f32 %v463, %v470
    %v473 = vadd.f32 %v464, %v471
    %v474 = vld [vmem:[%s1 + $0x13] sm:$0x1]
    %v475 = vlaneseq
    %v476 = vshrl.u32 %v475, 7
    %v477 = vsub.s32 0, %v476
    %v478 = vrot.slane %v474, %v477
    %481 = vrot.lane.b32.xlu0 %v183, 127
    %v482 = vpop.permute.xlu0 %481
    %483 = vrot.lane.b32.xlu0 %v184, 127
    %v484 = vpop.permute.xlu0 %483
    %v487 = vmul.f32 %v478, %v482
    %v488 = vmul.f32 %v478, %v484
    %v489 = vadd.f32 %v472, %v487
    %v490 = vadd.f32 %v473, %v488
    %v491 = vld [vmem:[%s1 + $0x14] sm:$0x1]
    %v492 = vlaneseq
    %v493 = vshrl.u32 %v492, 7
    %v494 = vsub.s32 0, %v493
    %v495 = vrot.slane %v491, %v494
    %496 = vrot.lane.b32.xlu0 %v183, 126
    %v497 = vpop.permute.xlu0 %496
    %498 = vrot.lane.b32.xlu0 %v184, 126
    %v499 = vpop.permute.xlu0 %498
    %v502 = vmul.f32 %v495, %v497
    %v503 = vmul.f32 %v495, %v499
    %v504 = vadd.f32 %v489, %v502
    %v505 = vadd.f32 %v490, %v503
    %v506 = vld [vmem:[%s1 + $0x15] sm:$0x1]
    %v507 = vlaneseq
    %v508 = vshrl.u32 %v507, 7
    %v509 = vsub.s32 0, %v508
    %v510 = vrot.slane %v506, %v509
    %v511 = vmul.f32 %v510, %v183
    %v512 = vmul.f32 %v510, %v184
    %v515 = vrot.slane %v511, 1
    %v516 = vrot.slane %v512, 1
    %v517 = vsel %vm235, %v515, %v516
    %v520 = vadd.f32 %v504, %v517
    %v521 = vadd.f32 %v505, %v516
    %v522 = vld [vmem:[%s1 + $0x16] sm:$0x1]
    %v523 = vlaneseq
    %v524 = vshrl.u32 %v523, 7
    %v525 = vsub.s32 0, %v524
    %v526 = vrot.slane %v522, %v525
    %v527 = vrot.slane %v183, 1
    %v528 = vrot.slane %v184, 1
    %v529 = vsel %vm235, %v527, %v528
    %530 = vrot.lane.b32.xlu0 %v529, 127
    %v531 = vpop.permute.xlu0 %530
    %532 = vrot.lane.b32.xlu0 %v528, 127
    %v533 = vpop.permute.xlu0 %532
    %v536 = vmul.f32 %v526, %v531
    %v537 = vmul.f32 %v526, %v533
    %v538 = vadd.f32 %v520, %v536
    %v539 = vadd.f32 %v521, %v537
    %v540 = vld [vmem:[%s1 + $0x17] sm:$0x1]
    %v541 = vlaneseq
    %v542 = vshrl.u32 %v541, 7
    %v543 = vsub.s32 0, %v542
    %v544 = vrot.slane %v540, %v543
    %545 = vrot.lane.b32.xlu0 %v529, 126
    %v546 = vpop.permute.xlu0 %545
    %547 = vrot.lane.b32.xlu0 %v528, 126
    %v548 = vpop.permute.xlu0 %547
    %v551 = vmul.f32 %v544, %v546
    %v552 = vmul.f32 %v544, %v548
    %v553 = vadd.f32 %v538, %v551
    %v554 = vadd.f32 %v539, %v552
    %v555 = vld [vmem:[%s1 + $0x18] sm:$0x1]
    %v556 = vlaneseq
    %v557 = vshrl.u32 %v556, 7
    %v558 = vsub.s32 0, %v557
    %v559 = vrot.slane %v555, %v558
    %v560 = vmul.f32 %v559, %v183
    %v561 = vmul.f32 %v559, %v184
    %v564 = vrot.slane %v560, 2
    %v565 = vrot.slane %v561, 2
    %v566 = vsel %vm285, %v564, %v565
    %v569 = vadd.f32 %v553, %v566
    %v570 = vadd.f32 %v554, %v565
    %v571 = vld [vmem:[%s1 + $0x19] sm:$0x1]
    %v572 = vlaneseq
    %v573 = vshrl.u32 %v572, 7
    %v574 = vsub.s32 0, %v573
    %v575 = vrot.slane %v571, %v574
    %v576 = vrot.slane %v183, 2
    %v577 = vrot.slane %v184, 2
    %v578 = vsel %vm285, %v576, %v577
    %579 = vrot.lane.b32.xlu0 %v578, 127
    %v580 = vpop.permute.xlu0 %579
    %581 = vrot.lane.b32.xlu0 %v577, 127
    %v582 = vpop.permute.xlu0 %581
    %v585 = vmul.f32 %v575, %v580
    %v586 = vmul.f32 %v575, %v582
    %v587 = vadd.f32 %v569, %v585
    %v588 = vadd.f32 %v570, %v586
    %v589 = vld [vmem:[%s1 + $0x1a] sm:$0x1]
    %v590 = vlaneseq
    %v591 = vshrl.u32 %v590, 7
    %v592 = vsub.s32 0, %v591
    %v593 = vrot.slane %v589, %v592
    %594 = vrot.lane.b32.xlu0 %v578, 126
    %v595 = vpop.permute.xlu0 %594
    %596 = vrot.lane.b32.xlu0 %v577, 126
    %v597 = vpop.permute.xlu0 %596
    %v600 = vmul.f32 %v593, %v595
    %v601 = vmul.f32 %v593, %v597
    %v602 = vadd.f32 %v587, %v600
    %v603 = vadd.f32 %v588, %v601
    %v604 = vld [vmem:[%s2] sm:$0x1]
    %v605 = vlaneseq
    %v606 = vshrl.u32 %v605, 7
    %v607 = vsub.s32 0, %v606
    %v608 = vrot.slane %v604, %v607
    %v609 = vadd.f32 %v602, %v608
    %v610 = vadd.f32 %v603, %v608
    %v611 = vmax.f32 %v609, 0.0
    %v612 = vmax.f32 %v610, 0.0
    %615 = vrot.lane.b32.xlu0 %v611, 14
    %v616 = vpop.permute.xlu0 %615
    %617 = vrot.lane.b32.xlu0 %v612, 14
    %v618 = vpop.permute.xlu0 %617
    %621 = vrot.lane.b32.xlu0 %v611, 28
    %v622 = vpop.permute.xlu0 %621
    %623 = vrot.lane.b32.xlu0 %v612, 28
    %v624 = vpop.permute.xlu0 %623
    %627 = vrot.lane.b32.xlu0 %v611, 122
    %v628 = vpop.permute.xlu0 %627
    %629 = vrot.lane.b32.xlu0 %v612, 122
    %v630 = vpop.permute.xlu0 %629
    %633 = vrot.lane.b32.xlu0 %v611, 8
    %v634 = vpop.permute.xlu0 %633
    %635 = vrot.lane.b32.xlu0 %v612, 8
    %v636 = vpop.permute.xlu0 %635
    %639 = vrot.lane.b32.xlu0 %v611, 22
    %v640 = vpop.permute.xlu0 %639
    %641 = vrot.lane.b32.xlu0 %v612, 22
    %v642 = vpop.permute.xlu0 %641
    %vm645 = vcmask 113664
    %v646 = vsel %vm645, %v611, %v616
    %v647 = vsel %vm645, %v612, %v618
    %vm648 = vcmask 228352
    %v649 = vsel %vm648, %v646, %v622
    %v650 = vsel %vm648, %v647, %v624
    %vm651 = vcmask 343040
    %v652 = vsel %vm651, %v649, %v628
    %v653 = vsel %vm651, %v650, %v630
    %vm654 = vcmask 457728
    %v655 = vsel %vm654, %v652, %v634
    %v656 = vsel %vm654, %v653, %v636
    %vm657 = vcmask 572416
    %v658 = vsel %vm657, %v655, %v640
    %v659 = vsel %vm657, %v656, %v642
    %660 = vrot.lane.b32.xlu0 %v611, 112
    %v661 = vpop.permute.xlu0 %660
    %662 = vrot.lane.b32.xlu0 %v612, 112
    %v663 = vpop.permute.xlu0 %662
    %666 = vrot.lane.b32.xlu0 %v611, 126
    %v667 = vpop.permute.xlu0 %666
    %668 = vrot.lane.b32.xlu0 %v612, 126
    %v669 = vpop.permute.xlu0 %668
    %672 = vrot.lane.b32.xlu0 %v611, 12
    %v673 = vpop.permute.xlu0 %672
    %674 = vrot.lane.b32.xlu0 %v612, 12
    %v675 = vpop.permute.xlu0 %674
    %678 = vrot.lane.b32.xlu0 %v611, 106
    %v679 = vpop.permute.xlu0 %678
    %680 = vrot.lane.b32.xlu0 %v612, 106
    %v681 = vpop.permute.xlu0 %680
    %684 = vrot.lane.b32.xlu0 %v611, 120
    %v685 = vpop.permute.xlu0 %684
    %686 = vrot.lane.b32.xlu0 %v612, 120
    %v687 = vpop.permute.xlu0 %686
    %690 = vrot.lane.b32.xlu0 %v611, 6
    %v691 = vpop.permute.xlu0 %690
    %692 = vrot.lane.b32.xlu0 %v612, 6
    %v693 = vpop.permute.xlu0 %692
    %v696 = vsel %vm645, %v661, %v667
    %v697 = vsel %vm645, %v663, %v669
    %v698 = vsel %vm648, %v696, %v673
    %v699 = vsel %vm648, %v697, %v675
    %v700 = vsel %vm651, %v698, %v679
    %v701 = vsel %vm651, %v699, %v681
    %v702 = vsel %vm654, %v700, %v685
    %v703 = vsel %vm654, %v701, %v687
    %v704 = vsel %vm657, %v702, %v691
    %v705 = vsel %vm657, %v703, %v693
    %706 = vrot.lane.b32.xlu0 %v611, 96
    %v707 = vpop.permute.xlu0 %706
    %708 = vrot.lane.b32.xlu0 %v612, 96
    %v709 = vpop.permute.xlu0 %708
    %712 = vrot.lane.b32.xlu0 %v611, 110
    %v713 = vpop.permute.xlu0 %712
    %714 = vrot.lane.b32.xlu0 %v612, 110
    %v715 = vpop.permute.xlu0 %714
    %718 = vrot.lane.b32.xlu0 %v611, 124
    %v719 = vpop.permute.xlu0 %718
    %720 = vrot.lane.b32.xlu0 %v612, 124
    %v721 = vpop.permute.xlu0 %720
    %724 = vrot.lane.b32.xlu0 %v611, 90
    %v725 = vpop.permute.xlu0 %724
    %726 = vrot.lane.b32.xlu0 %v612, 90
    %v727 = vpop.permute.xlu0 %726
    %730 = vrot.lane.b32.xlu0 %v611, 104
    %v731 = vpop.permute.xlu0 %730
    %732 = vrot.lane.b32.xlu0 %v612, 104
    %v733 = vpop.permute.xlu0 %732
    %736 = vrot.lane.b32.xlu0 %v611, 118
    %v737 = vpop.permute.xlu0 %736
    %738 = vrot.lane.b32.xlu0 %v612, 118
    %v739 = vpop.permute.xlu0 %738
    %v742 = vsel %vm645, %v707, %v713
    %v743 = vsel %vm645, %v709, %v715
    %v744 = vsel %vm648, %v742, %v719
    %v745 = vsel %vm648, %v743, %v721
    %v746 = vsel %vm651, %v744, %v725
    %v747 = vsel %vm651, %v745, %v727
    %v748 = vsel %vm654, %v746, %v731
    %v749 = vsel %vm654, %v747, %v733
    %v750 = vsel %vm657, %v748, %v737
    %v751 = vsel %vm657, %v749, %v739
    %v752 = vld [vmem:[%s1 + $0x1b] sm:$0x1]
    %v753 = vlaneseq
    %v754 = vshrl.u32 %v753, 7
    %v755 = vsub.s32 0, %v754
    %v756 = vrot.slane %v752, %v755
    %v757 = vmul.f32 %v756, %v658
    %v758 = vmul.f32 %v756, %v659
    %v759 = vadd.f32 %v757, 0.0
    %v760 = vadd.f32 %v758, 0.0
    %v761 = vld [vmem:[%s1 + $0x1c] sm:$0x1]
    %v762 = vlaneseq
    %v763 = vshrl.u32 %v762, 7
    %v764 = vsub.s32 0, %v763
    %v765 = vrot.slane %v761, %v764
    %768 = vrot.lane.b32.xlu0 %v658, 127
    %v769 = vpop.permute.xlu0 %768
    %770 = vrot.lane.b32.xlu0 %v659, 127
    %v771 = vpop.permute.xlu0 %770
    %v774 = vmul.f32 %v765, %v769
    %v775 = vmul.f32 %v765, %v771
    %v776 = vadd.f32 %v759, %v774
    %v777 = vadd.f32 %v760, %v775
    %v778 = vld [vmem:[%s1 + $0x1d] sm:$0x1]
    %v779 = vlaneseq
    %v780 = vshrl.u32 %v779, 7
    %v781 = vsub.s32 0, %v780
    %v782 = vrot.slane %v778, %v781
    %783 = vrot.lane.b32.xlu0 %v658, 126
    %v784 = vpop.permute.xlu0 %783
    %785 = vrot.lane.b32.xlu0 %v659, 126
    %v786 = vpop.permute.xlu0 %785
    %v789 = vmul.f32 %v782, %v784
    %v790 = vmul.f32 %v782, %v786
    %v791 = vadd.f32 %v776, %v789
    %v792 = vadd.f32 %v777, %v790
    %v793 = vld [vmem:[%s1 + $0x1e] sm:$0x1]
    %v794 = vlaneseq
    %v795 = vshrl.u32 %v794, 7
    %v796 = vsub.s32 0, %v795
    %v797 = vrot.slane %v793, %v796
    %v798 = vmul.f32 %v797, %v658
    %v799 = vmul.f32 %v797, %v659
    %v802 = vrot.slane %v798, 1
    %v803 = vrot.slane %v799, 1
    %v804 = vsel %vm235, %v802, %v803
    %v807 = vadd.f32 %v791, %v804
    %v808 = vadd.f32 %v792, %v803
    %v809 = vld [vmem:[%s1 + $0x1f] sm:$0x1]
    %v810 = vlaneseq
    %v811 = vshrl.u32 %v810, 7
    %v812 = vsub.s32 0, %v811
    %v813 = vrot.slane %v809, %v812
    %v814 = vrot.slane %v658, 1
    %v815 = vrot.slane %v659, 1
    %v816 = vsel %vm235, %v814, %v815
    %817 = vrot.lane.b32.xlu0 %v816, 127
    %v818 = vpop.permute.xlu0 %817
    %819 = vrot.lane.b32.xlu0 %v815, 127
    %v820 = vpop.permute.xlu0 %819
    %v823 = vmul.f32 %v813, %v818
    %v824 = vmul.f32 %v813, %v820
    %v825 = vadd.f32 %v807, %v823
    %v826 = vadd.f32 %v808, %v824
    %v827 = vld [vmem:[%s1 + $0x20] sm:$0x1]
    %v828 = vlaneseq
    %v829 = vshrl.u32 %v828, 7
    %v830 = vsub.s32 0, %v829
    %v831 = vrot.slane %v827, %v830
    %832 = vrot.lane.b32.xlu0 %v816, 126
    %v833 = vpop.permute.xlu0 %832
    %834 = vrot.lane.b32.xlu0 %v815, 126
    %v835 = vpop.permute.xlu0 %834
    %v838 = vmul.f32 %v831, %v833
    %v839 = vmul.f32 %v831, %v835
    %v840 = vadd.f32 %v825, %v838
    %v841 = vadd.f32 %v826, %v839
    %v842 = vld [vmem:[%s1 + $0x21] sm:$0x1]
    %v843 = vlaneseq
    %v844 = vshrl.u32 %v843, 7
    %v845 = vsub.s32 0, %v844
    %v846 = vrot.slane %v842, %v845
    %v847 = vmul.f32 %v846, %v658
    %v848 = vmul.f32 %v846, %v659
    %v851 = vrot.slane %v847, 2
    %v852 = vrot.slane %v848, 2
    %v853 = vsel %vm285, %v851, %v852
    %v856 = vadd.f32 %v840, %v853
    %v857 = vadd.f32 %v841, %v852
    %v858 = vld [vmem:[%s1 + $0x22] sm:$0x1]
    %v859 = vlaneseq
    %v860 = vshrl.u32 %v859, 7
    %v861 = vsub.s32 0, %v860
    %v862 = vrot.slane %v858, %v861
    %v863 = vrot.slane %v658, 2
    %v864 = vrot.slane %v659, 2
    %v865 = vsel %vm285, %v863, %v864
    %866 = vrot.lane.b32.xlu0 %v865, 127
    %v867 = vpop.permute.xlu0 %866
    %868 = vrot.lane.b32.xlu0 %v864, 127
    %v869 = vpop.permute.xlu0 %868
    %v872 = vmul.f32 %v862, %v867
    %v873 = vmul.f32 %v862, %v869
    %v874 = vadd.f32 %v856, %v872
    %v875 = vadd.f32 %v857, %v873
    %v876 = vld [vmem:[%s1 + $0x23] sm:$0x1]
    %v877 = vlaneseq
    %v878 = vshrl.u32 %v877, 7
    %v879 = vsub.s32 0, %v878
    %v880 = vrot.slane %v876, %v879
    %881 = vrot.lane.b32.xlu0 %v865, 126
    %v882 = vpop.permute.xlu0 %881
    %883 = vrot.lane.b32.xlu0 %v864, 126
    %v884 = vpop.permute.xlu0 %883
    %v887 = vmul.f32 %v880, %v882
    %v888 = vmul.f32 %v880, %v884
    %v889 = vadd.f32 %v874, %v887
    %v890 = vadd.f32 %v875, %v888
    %v891 = vld [vmem:[%s1 + $0x24] sm:$0x1]
    %v892 = vlaneseq
    %v893 = vshrl.u32 %v892, 7
    %v894 = vsub.s32 0, %v893
    %v895 = vrot.slane %v891, %v894
    %v896 = vmul.f32 %v895, %v704
    %v897 = vmul.f32 %v895, %v705
    %v898 = vadd.f32 %v889, %v896
    %v899 = vadd.f32 %v890, %v897
    %v900 = vld [vmem:[%s1 + $0x25] sm:$0x1]
    %v901 = vlaneseq
    %v902 = vshrl.u32 %v901, 7
    %v903 = vsub.s32 0, %v902
    %v904 = vrot.slane %v900, %v903
    %907 = vrot.lane.b32.xlu0 %v704, 127
    %v908 = vpop.permute.xlu0 %907
    %909 = vrot.lane.b32.xlu0 %v705, 127
    %v910 = vpop.permute.xlu0 %909
    %v913 = vmul.f32 %v904, %v908
    %v914 = vmul.f32 %v904, %v910
    %v915 = vadd.f32 %v898, %v913
    %v916 = vadd.f32 %v899, %v914
    %v917 = vld [vmem:[%s1 + $0x26] sm:$0x1]
    %v918 = vlaneseq
    %v919 = vshrl.u32 %v918, 7
    %v920 = vsub.s32 0, %v919
    %v921 = vrot.slane %v917, %v920
    %922 = vrot.lane.b32.xlu0 %v704, 126
    %v923 = vpop.permute.xlu0 %922
    %924 = vrot.lane.b32.xlu0 %v705, 126
    %v925 = vpop.permute.xlu0 %924
    %v928 = vmul.f32 %v921, %v923
    %v929 = vmul.f32 %v921, %v925
    %v930 = vadd.f32 %v915, %v928
    %v931 = vadd.f32 %v916, %v929
    %v932 = vld [vmem:[%s1 + $0x27] sm:$0x1]
    %v933 = vlaneseq
    %v934 = vshrl.u32 %v933, 7
    %v935 = vsub.s32 0, %v934
    %v936 = vrot.slane %v932, %v935
    %v937 = vmul.f32 %v936, %v704
    %v938 = vmul.f32 %v936, %v705
    %v941 = vrot.slane %v937, 1
    %v942 = vrot.slane %v938, 1
    %v943 = vsel %vm235, %v941, %v942
    %v946 = vadd.f32 %v930, %v943
    %v947 = vadd.f32 %v931, %v942
    %v948 = vld [vmem:[%s1 + $0x28] sm:$0x1]
    %v949 = vlaneseq
    %v950 = vshrl.u32 %v949, 7
    %v951 = vsub.s32 0, %v950
    %v952 = vrot.slane %v948, %v951
    %v953 = vrot.slane %v704, 1
    %v954 = vrot.slane %v705, 1
    %v955 = vsel %vm235, %v953, %v954
    %956 = vrot.lane.b32.xlu0 %v955, 127
    %v957 = vpop.permute.xlu0 %956
    %958 = vrot.lane.b32.xlu0 %v954, 127
    %v959 = vpop.permute.xlu0 %958
    %v962 = vmul.f32 %v952, %v957
    %v963 = vmul.f32 %v952, %v959
    %v964 = vadd.f32 %v946, %v962
    %v965 = vadd.f32 %v947, %v963
    %v966 = vld [vmem:[%s1 + $0x29] sm:$0x1]
    %v967 = vlaneseq
    %v968 = vshrl.u32 %v967, 7
    %v969 = vsub.s32 0, %v968
    %v970 = vrot.slane %v966, %v969
    %971 = vrot.lane.b32.xlu0 %v955, 126
    %v972 = vpop.permute.xlu0 %971
    %973 = vrot.lane.b32.xlu0 %v954, 126
    %v974 = vpop.permute.xlu0 %973
    %v977 = vmul.f32 %v970, %v972
    %v978 = vmul.f32 %v970, %v974
    %v979 = vadd.f32 %v964, %v977
    %v980 = vadd.f32 %v965, %v978
    %v981 = vld [vmem:[%s1 + $0x2a] sm:$0x1]
    %v982 = vlaneseq
    %v983 = vshrl.u32 %v982, 7
    %v984 = vsub.s32 0, %v983
    %v985 = vrot.slane %v981, %v984
    %v986 = vmul.f32 %v985, %v704
    %v987 = vmul.f32 %v985, %v705
    %v990 = vrot.slane %v986, 2
    %v991 = vrot.slane %v987, 2
    %v992 = vsel %vm285, %v990, %v991
    %v995 = vadd.f32 %v979, %v992
    %v996 = vadd.f32 %v980, %v991
    %v997 = vld [vmem:[%s1 + $0x2b] sm:$0x1]
    %v998 = vlaneseq
    %v999 = vshrl.u32 %v998, 7
    %v1000 = vsub.s32 0, %v999
    %v1001 = vrot.slane %v997, %v1000
    %v1002 = vrot.slane %v704, 2
    %v1003 = vrot.slane %v705, 2
    %v1004 = vsel %vm285, %v1002, %v1003
    %1005 = vrot.lane.b32.xlu0 %v1004, 127
    %v1006 = vpop.permute.xlu0 %1005
    %1007 = vrot.lane.b32.xlu0 %v1003, 127
    %v1008 = vpop.permute.xlu0 %1007
    %v1011 = vmul.f32 %v1001, %v1006
    %v1012 = vmul.f32 %v1001, %v1008
    %v1013 = vadd.f32 %v995, %v1011
    %v1014 = vadd.f32 %v996, %v1012
    %v1015 = vld [vmem:[%s1 + $0x2c] sm:$0x1]
    %v1016 = vlaneseq
    %v1017 = vshrl.u32 %v1016, 7
    %v1018 = vsub.s32 0, %v1017
    %v1019 = vrot.slane %v1015, %v1018
    %1020 = vrot.lane.b32.xlu0 %v1004, 126
    %v1021 = vpop.permute.xlu0 %1020
    %1022 = vrot.lane.b32.xlu0 %v1003, 126
    %v1023 = vpop.permute.xlu0 %1022
    %v1026 = vmul.f32 %v1019, %v1021
    %v1027 = vmul.f32 %v1019, %v1023
    %v1028 = vadd.f32 %v1013, %v1026
    %v1029 = vadd.f32 %v1014, %v1027
    %v1030 = vld [vmem:[%s1 + $0x2d] sm:$0x1]
    %v1031 = vlaneseq
    %v1032 = vshrl.u32 %v1031, 7
    %v1033 = vsub.s32 0, %v1032
    %v1034 = vrot.slane %v1030, %v1033
    %v1035 = vmul.f32 %v1034, %v750
    %v1036 = vmul.f32 %v1034, %v751
    %v1037 = vadd.f32 %v1028, %v1035
    %v1038 = vadd.f32 %v1029, %v1036
    %v1039 = vld [vmem:[%s1 + $0x2e] sm:$0x1]
    %v1040 = vlaneseq
    %v1041 = vshrl.u32 %v1040, 7
    %v1042 = vsub.s32 0, %v1041
    %v1043 = vrot.slane %v1039, %v1042
    %1046 = vrot.lane.b32.xlu0 %v750, 127
    %v1047 = vpop.permute.xlu0 %1046
    %1048 = vrot.lane.b32.xlu0 %v751, 127
    %v1049 = vpop.permute.xlu0 %1048
    %v1052 = vmul.f32 %v1043, %v1047
    %v1053 = vmul.f32 %v1043, %v1049
    %v1054 = vadd.f32 %v1037, %v1052
    %v1055 = vadd.f32 %v1038, %v1053
    %v1056 = vld [vmem:[%s1 + $0x2f] sm:$0x1]
    %v1057 = vlaneseq
    %v1058 = vshrl.u32 %v1057, 7
    %v1059 = vsub.s32 0, %v1058
    %v1060 = vrot.slane %v1056, %v1059
    %1061 = vrot.lane.b32.xlu0 %v750, 126
    %v1062 = vpop.permute.xlu0 %1061
    %1063 = vrot.lane.b32.xlu0 %v751, 126
    %v1064 = vpop.permute.xlu0 %1063
    %v1067 = vmul.f32 %v1060, %v1062
    %v1068 = vmul.f32 %v1060, %v1064
    %v1069 = vadd.f32 %v1054, %v1067
    %v1070 = vadd.f32 %v1055, %v1068
    %v1071 = vld [vmem:[%s1 + $0x30] sm:$0x1]
    %v1072 = vlaneseq
    %v1073 = vshrl.u32 %v1072, 7
    %v1074 = vsub.s32 0, %v1073
    %v1075 = vrot.slane %v1071, %v1074
    %v1076 = vmul.f32 %v1075, %v750
    %v1077 = vmul.f32 %v1075, %v751
    %v1080 = vrot.slane %v1076, 1
    %v1081 = vrot.slane %v1077, 1
    %v1082 = vsel %vm235, %v1080, %v1081
    %v1085 = vadd.f32 %v1069, %v1082
    %v1086 = vadd.f32 %v1070, %v1081
    %v1087 = vld [vmem:[%s1 + $0x31] sm:$0x1]
    %v1088 = vlaneseq
    %v1089 = vshrl.u32 %v1088, 7
    %v1090 = vsub.s32 0, %v1089
    %v1091 = vrot.slane %v1087, %v1090
    %v1092 = vrot.slane %v750, 1
    %v1093 = vrot.slane %v751, 1
    %v1094 = vsel %vm235, %v1092, %v1093
    %1095 = vrot.lane.b32.xlu0 %v1094, 127
    %v1096 = vpop.permute.xlu0 %1095
    %1097 = vrot.lane.b32.xlu0 %v1093, 127
    %v1098 = vpop.permute.xlu0 %1097
    %v1101 = vmul.f32 %v1091, %v1096
    %v1102 = vmul.f32 %v1091, %v1098
    %v1103 = vadd.f32 %v1085, %v1101
    %v1104 = vadd.f32 %v1086, %v1102
    %v1105 = vld [vmem:[%s1 + $0x32] sm:$0x1]
    %v1106 = vlaneseq
    %v1107 = vshrl.u32 %v1106, 7
    %v1108 = vsub.s32 0, %v1107
    %v1109 = vrot.slane %v1105, %v1108
    %1110 = vrot.lane.b32.xlu0 %v1094, 126
    %v1111 = vpop.permute.xlu0 %1110
    %1112 = vrot.lane.b32.xlu0 %v1093, 126
    %v1113 = vpop.permute.xlu0 %1112
    %v1116 = vmul.f32 %v1109, %v1111
    %v1117 = vmul.f32 %v1109, %v1113
    %v1118 = vadd.f32 %v1103, %v1116
    %v1119 = vadd.f32 %v1104, %v1117
    %v1120 = vld [vmem:[%s1 + $0x33] sm:$0x1]
    %v1121 = vlaneseq
    %v1122 = vshrl.u32 %v1121, 7
    %v1123 = vsub.s32 0, %v1122
    %v1124 = vrot.slane %v1120, %v1123
    %v1125 = vmul.f32 %v1124, %v750
    %v1126 = vmul.f32 %v1124, %v751
    %v1129 = vrot.slane %v1125, 2
    %v1130 = vrot.slane %v1126, 2
    %v1131 = vsel %vm285, %v1129, %v1130
    %v1134 = vadd.f32 %v1118, %v1131
    %v1135 = vadd.f32 %v1119, %v1130
    %v1136 = vld [vmem:[%s1 + $0x34] sm:$0x1]
    %v1137 = vlaneseq
    %v1138 = vshrl.u32 %v1137, 7
    %v1139 = vsub.s32 0, %v1138
    %v1140 = vrot.slane %v1136, %v1139
    %v1141 = vrot.slane %v750, 2
    %v1142 = vrot.slane %v751, 2
    %v1143 = vsel %vm285, %v1141, %v1142
    %1144 = vrot.lane.b32.xlu0 %v1143, 127
    %v1145 = vpop.permute.xlu0 %1144
    %1146 = vrot.lane.b32.xlu0 %v1142, 127
    %v1147 = vpop.permute.xlu0 %1146
    %v1150 = vmul.f32 %v1140, %v1145
    %v1151 = vmul.f32 %v1140, %v1147
    %v1152 = vadd.f32 %v1134, %v1150
    %v1153 = vadd.f32 %v1135, %v1151
    %v1154 = vld [vmem:[%s1 + $0x35] sm:$0x1]
    %v1155 = vlaneseq
    %v1156 = vshrl.u32 %v1155, 7
    %v1157 = vsub.s32 0, %v1156
    %v1158 = vrot.slane %v1154, %v1157
    %1159 = vrot.lane.b32.xlu0 %v1143, 126
    %v1160 = vpop.permute.xlu0 %1159
    %1161 = vrot.lane.b32.xlu0 %v1142, 126
    %v1162 = vpop.permute.xlu0 %1161
    %v1165 = vmul.f32 %v1158, %v1160
    %v1166 = vmul.f32 %v1158, %v1162
    %v1167 = vadd.f32 %v1152, %v1165
    %v1168 = vadd.f32 %v1153, %v1166
    %v1169 = vld [vmem:[%s2 + $0x1] sm:$0x1]
    %v1170 = vlaneseq
    %v1171 = vshrl.u32 %v1170, 7
    %v1172 = vsub.s32 0, %v1171
    %v1173 = vrot.slane %v1169, %v1172
    %v1174 = vadd.f32 %v1167, %v1173
    %v1175 = vadd.f32 %v1168, %v1173
    %v1176 = vmax.f32 %v1174, 0.0
    %v1177 = vmax.f32 %v1175, 0.0
    %1180 = vrot.lane.b32.xlu0 %v1176, 12
    %v1181 = vpop.permute.xlu0 %1180
    %1182 = vrot.lane.b32.xlu0 %v1177, 12
    %v1183 = vpop.permute.xlu0 %1182
    %1186 = vrot.lane.b32.xlu0 %v1176, 24
    %v1187 = vpop.permute.xlu0 %1186
    %1188 = vrot.lane.b32.xlu0 %v1177, 24
    %v1189 = vpop.permute.xlu0 %1188
    %1192 = vrot.lane.b32.xlu0 %v1176, 36
    %v1193 = vpop.permute.xlu0 %1192
    %1194 = vrot.lane.b32.xlu0 %v1177, 36
    %v1195 = vpop.permute.xlu0 %1194
    %1198 = vrot.lane.b32.xlu0 %v1176, 48
    %v1199 = vpop.permute.xlu0 %1198
    %1200 = vrot.lane.b32.xlu0 %v1177, 48
    %v1201 = vpop.permute.xlu0 %1200
    %1204 = vrot.lane.b32.xlu0 %v1176, 18
    %v1205 = vpop.permute.xlu0 %1204
    %1206 = vrot.lane.b32.xlu0 %v1177, 18
    %v1207 = vpop.permute.xlu0 %1206
    %1210 = vrot.lane.b32.xlu0 %v1176, 30
    %v1211 = vpop.permute.xlu0 %1210
    %1212 = vrot.lane.b32.xlu0 %v1177, 30
    %v1213 = vpop.permute.xlu0 %1212
    %1216 = vrot.lane.b32.xlu0 %v1176, 42
    %v1217 = vpop.permute.xlu0 %1216
    %1218 = vrot.lane.b32.xlu0 %v1177, 42
    %v1219 = vpop.permute.xlu0 %1218
    %1222 = vrot.lane.b32.xlu0 %v1176, 54
    %v1223 = vpop.permute.xlu0 %1222
    %1224 = vrot.lane.b32.xlu0 %v1177, 54
    %v1225 = vpop.permute.xlu0 %1224
    %1228 = vrot.lane.b32.xlu0 %v1176, 66
    %v1229 = vpop.permute.xlu0 %1228
    %1230 = vrot.lane.b32.xlu0 %v1177, 66
    %v1231 = vpop.permute.xlu0 %1230
    %vm1234 = vcmask 97280
    %v1235 = vsel %vm1234, %v1176, %v1181
    %v1236 = vsel %vm1234, %v1177, %v1183
    %vm1237 = vcmask 195584
    %v1238 = vsel %vm1237, %v1235, %v1187
    %v1239 = vsel %vm1237, %v1236, %v1189
    %vm1240 = vcmask 293888
    %v1241 = vsel %vm1240, %v1238, %v1193
    %v1242 = vsel %vm1240, %v1239, %v1195
    %v1243 = vsel %vm76, %v1241, %v1199
    %v1244 = vsel %vm76, %v1242, %v1201
    %vm1245 = vcmask 490496
    %v1246 = vsel %vm1245, %v1243, %v1205
    %v1247 = vsel %vm1245, %v1244, %v1207
    %vm1248 = vcmask 588800
    %v1249 = vsel %vm1248, %v1246, %v1211
    %v1250 = vsel %vm1248, %v1247, %v1213
    %vm1251 = vcmask 687104
    %v1252 = vsel %vm1251, %v1249, %v1217
    %v1253 = vsel %vm1251, %v1250, %v1219
    %vm1254 = vcmask 785408
    %v1255 = vsel %vm1254, %v1252, %v1223
    %v1256 = vsel %vm1254, %v1253, %v1225
    %vm1257 = vcmask 883712
    %v1258 = vsel %vm1257, %v1255, %v1229
    %v1259 = vsel %vm1257, %v1256, %v1231
    %1260 = vrot.lane.b32.xlu0 %v1176, 114
    %v1261 = vpop.permute.xlu0 %1260
    %1262 = vrot.lane.b32.xlu0 %v1177, 114
    %v1263 = vpop.permute.xlu0 %1262
    %1266 = vrot.lane.b32.xlu0 %v1176, 126
    %v1267 = vpop.permute.xlu0 %1266
    %1268 = vrot.lane.b32.xlu0 %v1177, 126
    %v1269 = vpop.permute.xlu0 %1268
    %1272 = vrot.lane.b32.xlu0 %v1176, 10
    %v1273 = vpop.permute.xlu0 %1272
    %1274 = vrot.lane.b32.xlu0 %v1177, 10
    %v1275 = vpop.permute.xlu0 %1274
    %1278 = vrot.lane.b32.xlu0 %v1176, 22
    %v1279 = vpop.permute.xlu0 %1278
    %1280 = vrot.lane.b32.xlu0 %v1177, 22
    %v1281 = vpop.permute.xlu0 %1280
    %1284 = vrot.lane.b32.xlu0 %v1176, 34
    %v1285 = vpop.permute.xlu0 %1284
    %1286 = vrot.lane.b32.xlu0 %v1177, 34
    %v1287 = vpop.permute.xlu0 %1286
    %1290 = vrot.lane.b32.xlu0 %v1176, 4
    %v1291 = vpop.permute.xlu0 %1290
    %1292 = vrot.lane.b32.xlu0 %v1177, 4
    %v1293 = vpop.permute.xlu0 %1292
    %1296 = vrot.lane.b32.xlu0 %v1176, 16
    %v1297 = vpop.permute.xlu0 %1296
    %1298 = vrot.lane.b32.xlu0 %v1177, 16
    %v1299 = vpop.permute.xlu0 %1298
    %1302 = vrot.lane.b32.xlu0 %v1176, 28
    %v1303 = vpop.permute.xlu0 %1302
    %1304 = vrot.lane.b32.xlu0 %v1177, 28
    %v1305 = vpop.permute.xlu0 %1304
    %1308 = vrot.lane.b32.xlu0 %v1176, 40
    %v1309 = vpop.permute.xlu0 %1308
    %1310 = vrot.lane.b32.xlu0 %v1177, 40
    %v1311 = vpop.permute.xlu0 %1310
    %1314 = vrot.lane.b32.xlu0 %v1176, 52
    %v1315 = vpop.permute.xlu0 %1314
    %1316 = vrot.lane.b32.xlu0 %v1177, 52
    %v1317 = vpop.permute.xlu0 %1316
    %v1320 = vsel %vm1234, %v1261, %v1267
    %v1321 = vsel %vm1234, %v1263, %v1269
    %v1322 = vsel %vm1237, %v1320, %v1273
    %v1323 = vsel %vm1237, %v1321, %v1275
    %v1324 = vsel %vm1240, %v1322, %v1279
    %v1325 = vsel %vm1240, %v1323, %v1281
    %v1326 = vsel %vm76, %v1324, %v1285
    %v1327 = vsel %vm76, %v1325, %v1287
    %v1328 = vsel %vm1245, %v1326, %v1291
    %v1329 = vsel %vm1245, %v1327, %v1293
    %v1330 = vsel %vm1248, %v1328, %v1297
    %v1331 = vsel %vm1248, %v1329, %v1299
    %v1332 = vsel %vm1251, %v1330, %v1303
    %v1333 = vsel %vm1251, %v1331, %v1305
    %v1334 = vsel %vm1254, %v1332, %v1309
    %v1335 = vsel %vm1254, %v1333, %v1311
    %v1336 = vsel %vm1257, %v1334, %v1315
    %v1337 = vsel %vm1257, %v1335, %v1317
    %1338 = vrot.lane.b32.xlu0 %v1176, 100
    %v1339 = vpop.permute.xlu0 %1338
    %1340 = vrot.lane.b32.xlu0 %v1177, 100
    %v1341 = vpop.permute.xlu0 %1340
    %1344 = vrot.lane.b32.xlu0 %v1176, 112
    %v1345 = vpop.permute.xlu0 %1344
    %1346 = vrot.lane.b32.xlu0 %v1177, 112
    %v1347 = vpop.permute.xlu0 %1346
    %1350 = vrot.lane.b32.xlu0 %v1176, 124
    %v1351 = vpop.permute.xlu0 %1350
    %1352 = vrot.lane.b32.xlu0 %v1177, 124
    %v1353 = vpop.permute.xlu0 %1352
    %1356 = vrot.lane.b32.xlu0 %v1176, 8
    %v1357 = vpop.permute.xlu0 %1356
    %1358 = vrot.lane.b32.xlu0 %v1177, 8
    %v1359 = vpop.permute.xlu0 %1358
    %1362 = vrot.lane.b32.xlu0 %v1176, 20
    %v1363 = vpop.permute.xlu0 %1362
    %1364 = vrot.lane.b32.xlu0 %v1177, 20
    %v1365 = vpop.permute.xlu0 %1364
    %1368 = vrot.lane.b32.xlu0 %v1176, 118
    %v1369 = vpop.permute.xlu0 %1368
    %1370 = vrot.lane.b32.xlu0 %v1177, 118
    %v1371 = vpop.permute.xlu0 %1370
    %1374 = vrot.lane.b32.xlu0 %v1176, 2
    %v1375 = vpop.permute.xlu0 %1374
    %1376 = vrot.lane.b32.xlu0 %v1177, 2
    %v1377 = vpop.permute.xlu0 %1376
    %1380 = vrot.lane.b32.xlu0 %v1176, 14
    %v1381 = vpop.permute.xlu0 %1380
    %1382 = vrot.lane.b32.xlu0 %v1177, 14
    %v1383 = vpop.permute.xlu0 %1382
    %1386 = vrot.lane.b32.xlu0 %v1176, 26
    %v1387 = vpop.permute.xlu0 %1386
    %1388 = vrot.lane.b32.xlu0 %v1177, 26
    %v1389 = vpop.permute.xlu0 %1388
    %1392 = vrot.lane.b32.xlu0 %v1176, 38
    %v1393 = vpop.permute.xlu0 %1392
    %1394 = vrot.lane.b32.xlu0 %v1177, 38
    %v1395 = vpop.permute.xlu0 %1394
    %v1398 = vsel %vm1234, %v1339, %v1345
    %v1399 = vsel %vm1234, %v1341, %v1347
    %v1400 = vsel %vm1237, %v1398, %v1351
    %v1401 = vsel %vm1237, %v1399, %v1353
    %v1402 = vsel %vm1240, %v1400, %v1357
    %v1403 = vsel %vm1240, %v1401, %v1359
    %v1404 = vsel %vm76, %v1402, %v1363
    %v1405 = vsel %vm76, %v1403, %v1365
    %v1406 = vsel %vm1245, %v1404, %v1369
    %v1407 = vsel %vm1245, %v1405, %v1371
    %v1408 = vsel %vm1248, %v1406, %v1375
    %v1409 = vsel %vm1248, %v1407, %v1377
    %v1410 = vsel %vm1251, %v1408, %v1381
    %v1411 = vsel %vm1251, %v1409, %v1383
    %v1412 = vsel %vm1254, %v1410, %v1387
    %v1413 = vsel %vm1254, %v1411, %v1389
    %v1414 = vsel %vm1257, %v1412, %v1393
    %v1415 = vsel %vm1257, %v1413, %v1395
    %v1416 = vld [vmem:[%s1 + $0x36] sm:$0x1]
    %v1417 = vlaneseq
    %v1418 = vshrl.u32 %v1417, 7
    %v1419 = vsub.s32 0, %v1418
    %v1420 = vrot.slane %v1416, %v1419
    %v1421 = vmul.f32 %v1420, %v1258
    %v1422 = vmul.f32 %v1420, %v1259
    %v1423 = vadd.f32 %v1421, 0.0
    %v1424 = vadd.f32 %v1422, 0.0
    %v1425 = vld [vmem:[%s1 + $0x37] sm:$0x1]
    %v1426 = vlaneseq
    %v1427 = vshrl.u32 %v1426, 7
    %v1428 = vsub.s32 0, %v1427
    %v1429 = vrot.slane %v1425, %v1428
    %1432 = vrot.lane.b32.xlu0 %v1258, 127
    %v1433 = vpop.permute.xlu0 %1432
    %1434 = vrot.lane.b32.xlu0 %v1259, 127
    %v1435 = vpop.permute.xlu0 %1434
    %v1438 = vmul.f32 %v1429, %v1433
    %v1439 = vmul.f32 %v1429, %v1435
    %v1440 = vadd.f32 %v1423, %v1438
    %v1441 = vadd.f32 %v1424, %v1439
    %v1442 = vld [vmem:[%s1 + $0x38] sm:$0x1]
    %v1443 = vlaneseq
    %v1444 = vshrl.u32 %v1443, 7
    %v1445 = vsub.s32 0, %v1444
    %v1446 = vrot.slane %v1442, %v1445
    %1447 = vrot.lane.b32.xlu0 %v1258, 126
    %v1448 = vpop.permute.xlu0 %1447
    %1449 = vrot.lane.b32.xlu0 %v1259, 126
    %v1450 = vpop.permute.xlu0 %1449
    %v1453 = vmul.f32 %v1446, %v1448
    %v1454 = vmul.f32 %v1446, %v1450
    %v1455 = vadd.f32 %v1440, %v1453
    %v1456 = vadd.f32 %v1441, %v1454
    %v1457 = vld [vmem:[%s1 + $0x39] sm:$0x1]
    %v1458 = vlaneseq
    %v1459 = vshrl.u32 %v1458, 7
    %v1460 = vsub.s32 0, %v1459
    %v1461 = vrot.slane %v1457, %v1460
    %v1462 = vmul.f32 %v1461, %v1258
    %v1463 = vmul.f32 %v1461, %v1259
    %v1466 = vrot.slane %v1462, 1
    %v1467 = vrot.slane %v1463, 1
    %v1468 = vsel %vm235, %v1466, %v1467
    %v1471 = vadd.f32 %v1455, %v1468
    %v1472 = vadd.f32 %v1456, %v1467
    %v1473 = vld [vmem:[%s1 + $0x3a] sm:$0x1]
    %v1474 = vlaneseq
    %v1475 = vshrl.u32 %v1474, 7
    %v1476 = vsub.s32 0, %v1475
    %v1477 = vrot.slane %v1473, %v1476
    %v1478 = vrot.slane %v1258, 1
    %v1479 = vrot.slane %v1259, 1
    %v1480 = vsel %vm235, %v1478, %v1479
    %1481 = vrot.lane.b32.xlu0 %v1480, 127
    %v1482 = vpop.permute.xlu0 %1481
    %1483 = vrot.lane.b32.xlu0 %v1479, 127
    %v1484 = vpop.permute.xlu0 %1483
    %v1487 = vmul.f32 %v1477, %v1482
    %v1488 = vmul.f32 %v1477, %v1484
    %v1489 = vadd.f32 %v1471, %v1487
    %v1490 = vadd.f32 %v1472, %v1488
    %v1491 = vld [vmem:[%s1 + $0x3b] sm:$0x1]
    %v1492 = vlaneseq
    %v1493 = vshrl.u32 %v1492, 7
    %v1494 = vsub.s32 0, %v1493
    %v1495 = vrot.slane %v1491, %v1494
    %1496 = vrot.lane.b32.xlu0 %v1480, 126
    %v1497 = vpop.permute.xlu0 %1496
    %1498 = vrot.lane.b32.xlu0 %v1479, 126
    %v1499 = vpop.permute.xlu0 %1498
    %v1502 = vmul.f32 %v1495, %v1497
    %v1503 = vmul.f32 %v1495, %v1499
    %v1504 = vadd.f32 %v1489, %v1502
    %v1505 = vadd.f32 %v1490, %v1503
    %v1506 = vld [vmem:[%s1 + $0x3c] sm:$0x1]
    %v1507 = vlaneseq
    %v1508 = vshrl.u32 %v1507, 7
    %v1509 = vsub.s32 0, %v1508
    %v1510 = vrot.slane %v1506, %v1509
    %v1511 = vmul.f32 %v1510, %v1258
    %v1512 = vmul.f32 %v1510, %v1259
    %v1515 = vrot.slane %v1511, 2
    %v1516 = vrot.slane %v1512, 2
    %v1517 = vsel %vm285, %v1515, %v1516
    %v1520 = vadd.f32 %v1504, %v1517
    %v1521 = vadd.f32 %v1505, %v1516
    %v1522 = vld [vmem:[%s1 + $0x3d] sm:$0x1]
    %v1523 = vlaneseq
    %v1524 = vshrl.u32 %v1523, 7
    %v1525 = vsub.s32 0, %v1524
    %v1526 = vrot.slane %v1522, %v1525
    %v1527 = vrot.slane %v1258, 2
    %v1528 = vrot.slane %v1259, 2
    %v1529 = vsel %vm285, %v1527, %v1528
    %1530 = vrot.lane.b32.xlu0 %v1529, 127
    %v1531 = vpop.permute.xlu0 %1530
    %1532 = vrot.lane.b32.xlu0 %v1528, 127
    %v1533 = vpop.permute.xlu0 %1532
    %v1536 = vmul.f32 %v1526, %v1531
    %v1537 = vmul.f32 %v1526, %v1533
    %v1538 = vadd.f32 %v1520, %v1536
    %v1539 = vadd.f32 %v1521, %v1537
    %v1540 = vld [vmem:[%s1 + $0x3e] sm:$0x1]
    %v1541 = vlaneseq
    %v1542 = vshrl.u32 %v1541, 7
    %v1543 = vsub.s32 0, %v1542
    %v1544 = vrot.slane %v1540, %v1543
    %1545 = vrot.lane.b32.xlu0 %v1529, 126
    %v1546 = vpop.permute.xlu0 %1545
    %1547 = vrot.lane.b32.xlu0 %v1528, 126
    %v1548 = vpop.permute.xlu0 %1547
    %v1551 = vmul.f32 %v1544, %v1546
    %v1552 = vmul.f32 %v1544, %v1548
    %v1553 = vadd.f32 %v1538, %v1551
    %v1554 = vadd.f32 %v1539, %v1552
    %v1555 = vld [vmem:[%s1 + $0x3f] sm:$0x1]
    %v1556 = vlaneseq
    %v1557 = vshrl.u32 %v1556, 7
    %v1558 = vsub.s32 0, %v1557
    %v1559 = vrot.slane %v1555, %v1558
    %v1560 = vmul.f32 %v1559, %v1336
    %v1561 = vmul.f32 %v1559, %v1337
    %v1562 = vadd.f32 %v1553, %v1560
    %v1563 = vadd.f32 %v1554, %v1561
    %v1564 = vld [vmem:[%s1 + $0x40] sm:$0x1]
    %v1565 = vlaneseq
    %v1566 = vshrl.u32 %v1565, 7
    %v1567 = vsub.s32 0, %v1566
    %v1568 = vrot.slane %v1564, %v1567
    %1571 = vrot.lane.b32.xlu0 %v1336, 127
    %v1572 = vpop.permute.xlu0 %1571
    %1573 = vrot.lane.b32.xlu0 %v1337, 127
    %v1574 = vpop.permute.xlu0 %1573
    %v1577 = vmul.f32 %v1568, %v1572
    %v1578 = vmul.f32 %v1568, %v1574
    %v1579 = vadd.f32 %v1562, %v1577
    %v1580 = vadd.f32 %v1563, %v1578
    %v1581 = vld [vmem:[%s1 + $0x41] sm:$0x1]
    %v1582 = vlaneseq
    %v1583 = vshrl.u32 %v1582, 7
    %v1584 = vsub.s32 0, %v1583
    %v1585 = vrot.slane %v1581, %v1584
    %1586 = vrot.lane.b32.xlu0 %v1336, 126
    %v1587 = vpop.permute.xlu0 %1586
    %1588 = vrot.lane.b32.xlu0 %v1337, 126
    %v1589 = vpop.permute.xlu0 %1588
    %v1592 = vmul.f32 %v1585, %v1587
    %v1593 = vmul.f32 %v1585, %v1589
    %v1594 = vadd.f32 %v1579, %v1592
    %v1595 = vadd.f32 %v1580, %v1593
    %v1596 = vld [vmem:[%s1 + $0x42] sm:$0x1]
    %v1597 = vlaneseq
    %v1598 = vshrl.u32 %v1597, 7
    %v1599 = vsub.s32 0, %v1598
    %v1600 = vrot.slane %v1596, %v1599
    %v1601 = vmul.f32 %v1600, %v1336
    %v1602 = vmul.f32 %v1600, %v1337
    %v1605 = vrot.slane %v1601, 1
    %v1606 = vrot.slane %v1602, 1
    %v1607 = vsel %vm235, %v1605, %v1606
    %v1610 = vadd.f32 %v1594, %v1607
    %v1611 = vadd.f32 %v1595, %v1606
    %v1612 = vld [vmem:[%s1 + $0x43] sm:$0x1]
    %v1613 = vlaneseq
    %v1614 = vshrl.u32 %v1613, 7
    %v1615 = vsub.s32 0, %v1614
    %v1616 = vrot.slane %v1612, %v1615
    %v1617 = vrot.slane %v1336, 1
    %v1618 = vrot.slane %v1337, 1
    %v1619 = vsel %vm235, %v1617, %v1618
    %1620 = vrot.lane.b32.xlu0 %v1619, 127
    %v1621 = vpop.permute.xlu0 %1620
    %1622 = vrot.lane.b32.xlu0 %v1618, 127
    %v1623 = vpop.permute.xlu0 %1622
    %v1626 = vmul.f32 %v1616, %v1621
    %v1627 = vmul.f32 %v1616, %v1623
    %v1628 = vadd.f32 %v1610, %v1626
    %v1629 = vadd.f32 %v1611, %v1627
    %v1630 = vld [vmem:[%s1 + $0x44] sm:$0x1]
    %v1631 = vlaneseq
    %v1632 = vshrl.u32 %v1631, 7
    %v1633 = vsub.s32 0, %v1632
    %v1634 = vrot.slane %v1630, %v1633
    %1635 = vrot.lane.b32.xlu0 %v1619, 126
    %v1636 = vpop.permute.xlu0 %1635
    %1637 = vrot.lane.b32.xlu0 %v1618, 126
    %v1638 = vpop.permute.xlu0 %1637
    %v1641 = vmul.f32 %v1634, %v1636
    %v1642 = vmul.f32 %v1634, %v1638
    %v1643 = vadd.f32 %v1628, %v1641
    %v1644 = vadd.f32 %v1629, %v1642
    %v1645 = vld [vmem:[%s1 + $0x45] sm:$0x1]
    %v1646 = vlaneseq
    %v1647 = vshrl.u32 %v1646, 7
    %v1648 = vsub.s32 0, %v1647
    %v1649 = vrot.slane %v1645, %v1648
    %v1650 = vmul.f32 %v1649, %v1336
    %v1651 = vmul.f32 %v1649, %v1337
    %v1654 = vrot.slane %v1650, 2
    %v1655 = vrot.slane %v1651, 2
    %v1656 = vsel %vm285, %v1654, %v1655
    %v1659 = vadd.f32 %v1643, %v1656
    %v1660 = vadd.f32 %v1644, %v1655
    %v1661 = vld [vmem:[%s1 + $0x46] sm:$0x1]
    %v1662 = vlaneseq
    %v1663 = vshrl.u32 %v1662, 7
    %v1664 = vsub.s32 0, %v1663
    %v1665 = vrot.slane %v1661, %v1664
    %v1666 = vrot.slane %v1336, 2
    %v1667 = vrot.slane %v1337, 2
    %v1668 = vsel %vm285, %v1666, %v1667
    %1669 = vrot.lane.b32.xlu0 %v1668, 127
    %v1670 = vpop.permute.xlu0 %1669
    %1671 = vrot.lane.b32.xlu0 %v1667, 127
    %v1672 = vpop.permute.xlu0 %1671
    %v1675 = vmul.f32 %v1665, %v1670
    %v1676 = vmul.f32 %v1665, %v1672
    %v1677 = vadd.f32 %v1659, %v1675
    %v1678 = vadd.f32 %v1660, %v1676
    %v1679 = vld [vmem:[%s1 + $0x47] sm:$0x1]
    %v1680 = vlaneseq
    %v1681 = vshrl.u32 %v1680, 7
    %v1682 = vsub.s32 0, %v1681
    %v1683 = vrot.slane %v1679, %v1682
    %1684 = vrot.lane.b32.xlu0 %v1668, 126
    %v1685 = vpop.permute.xlu0 %1684
    %1686 = vrot.lane.b32.xlu0 %v1667, 126
    %v1687 = vpop.permute.xlu0 %1686
    %v1690 = vmul.f32 %v1683, %v1685
    %v1691 = vmul.f32 %v1683, %v1687
    %v1692 = vadd.f32 %v1677, %v1690
    %v1693 = vadd.f32 %v1678, %v1691
    %v1694 = vld [vmem:[%s1 + $0x48] sm:$0x1]
    %v1695 = vlaneseq
    %v1696 = vshrl.u32 %v1695, 7
    %v1697 = vsub.s32 0, %v1696
    %v1698 = vrot.slane %v1694, %v1697
    %v1699 = vmul.f32 %v1698, %v1414
    %v1700 = vmul.f32 %v1698, %v1415
    %v1701 = vadd.f32 %v1692, %v1699
    %v1702 = vadd.f32 %v1693, %v1700
    %v1703 = vld [vmem:[%s1 + $0x49] sm:$0x1]
    %v1704 = vlaneseq
    %v1705 = vshrl.u32 %v1704, 7
    %v1706 = vsub.s32 0, %v1705
    %v1707 = vrot.slane %v1703, %v1706
    %1710 = vrot.lane.b32.xlu0 %v1414, 127
    %v1711 = vpop.permute.xlu0 %1710
    %1712 = vrot.lane.b32.xlu0 %v1415, 127
    %v1713 = vpop.permute.xlu0 %1712
    %v1716 = vmul.f32 %v1707, %v1711
    %v1717 = vmul.f32 %v1707, %v1713
    %v1718 = vadd.f32 %v1701, %v1716
    %v1719 = vadd.f32 %v1702, %v1717
    %v1720 = vld [vmem:[%s1 + $0x4a] sm:$0x1]
    %v1721 = vlaneseq
    %v1722 = vshrl.u32 %v1721, 7
    %v1723 = vsub.s32 0, %v1722
    %v1724 = vrot.slane %v1720, %v1723
    %1725 = vrot.lane.b32.xlu0 %v1414, 126
    %v1726 = vpop.permute.xlu0 %1725
    %1727 = vrot.lane.b32.xlu0 %v1415, 126
    %v1728 = vpop.permute.xlu0 %1727
    %v1731 = vmul.f32 %v1724, %v1726
    %v1732 = vmul.f32 %v1724, %v1728
    %v1733 = vadd.f32 %v1718, %v1731
    %v1734 = vadd.f32 %v1719, %v1732
    %v1735 = vld [vmem:[%s1 + $0x4b] sm:$0x1]
    %v1736 = vlaneseq
    %v1737 = vshrl.u32 %v1736, 7
    %v1738 = vsub.s32 0, %v1737
    %v1739 = vrot.slane %v1735, %v1738
    %v1740 = vmul.f32 %v1739, %v1414
    %v1741 = vmul.f32 %v1739, %v1415
    %v1744 = vrot.slane %v1740, 1
    %v1745 = vrot.slane %v1741, 1
    %v1746 = vsel %vm235, %v1744, %v1745
    %v1749 = vadd.f32 %v1733, %v1746
    %v1750 = vadd.f32 %v1734, %v1745
    %v1751 = vld [vmem:[%s1 + $0x4c] sm:$0x1]
    %v1752 = vlaneseq
    %v1753 = vshrl.u32 %v1752, 7
    %v1754 = vsub.s32 0, %v1753
    %v1755 = vrot.slane %v1751, %v1754
    %v1756 = vrot.slane %v1414, 1
    %v1757 = vrot.slane %v1415, 1
    %v1758 = vsel %vm235, %v1756, %v1757
    %1759 = vrot.lane.b32.xlu0 %v1758, 127
    %v1760 = vpop.permute.xlu0 %1759
    %1761 = vrot.lane.b32.xlu0 %v1757, 127
    %v1762 = vpop.permute.xlu0 %1761
    %v1765 = vmul.f32 %v1755, %v1760
    %v1766 = vmul.f32 %v1755, %v1762
    %v1767 = vadd.f32 %v1749, %v1765
    %v1768 = vadd.f32 %v1750, %v1766
    %v1769 = vld [vmem:[%s1 + $0x4d] sm:$0x1]
    %v1770 = vlaneseq
    %v1771 = vshrl.u32 %v1770, 7
    %v1772 = vsub.s32 0, %v1771
    %v1773 = vrot.slane %v1769, %v1772
    %1774 = vrot.lane.b32.xlu0 %v1758, 126
    %v1775 = vpop.permute.xlu0 %1774
    %1776 = vrot.lane.b32.xlu0 %v1757, 126
    %v1777 = vpop.permute.xlu0 %1776
    %v1780 = vmul.f32 %v1773, %v1775
    %v1781 = vmul.f32 %v1773, %v1777
    %v1782 = vadd.f32 %v1767, %v1780
    %v1783 = vadd.f32 %v1768, %v1781
    %v1784 = vld [vmem:[%s1 + $0x4e] sm:$0x1]
    %v1785 = vlaneseq
    %v1786 = vshrl.u32 %v1785, 7
    %v1787 = vsub.s32 0, %v1786
    %v1788 = vrot.slane %v1784, %v1787
    %v1789 = vmul.f32 %v1788, %v1414
    %v1790 = vmul.f32 %v1788, %v1415
    %v1793 = vrot.slane %v1789, 2
    %v1794 = vrot.slane %v1790, 2
    %v1795 = vsel %vm285, %v1793, %v1794
    %v1798 = vadd.f32 %v1782, %v1795
    %v1799 = vadd.f32 %v1783, %v1794
    %v1800 = vld [vmem:[%s1 + $0x4f] sm:$0x1]
    %v1801 = vlaneseq
    %v1802 = vshrl.u32 %v1801, 7
    %v1803 = vsub.s32 0, %v1802
    %v1804 = vrot.slane %v1800, %v1803
    %v1805 = vrot.slane %v1414, 2
    %v1806 = vrot.slane %v1415, 2
    %v1807 = vsel %vm285, %v1805, %v1806
    %1808 = vrot.lane.b32.xlu0 %v1807, 127
    %v1809 = vpop.permute.xlu0 %1808
    %1810 = vrot.lane.b32.xlu0 %v1806, 127
    %v1811 = vpop.permute.xlu0 %1810
    %v1814 = vmul.f32 %v1804, %v1809
    %v1815 = vmul.f32 %v1804, %v1811
    %v1816 = vadd.f32 %v1798, %v1814
    %v1817 = vadd.f32 %v1799, %v1815
    %v1818 = vld [vmem:[%s1 + $0x50] sm:$0x1]
    %v1819 = vlaneseq
    %v1820 = vshrl.u32 %v1819, 7
    %v1821 = vsub.s32 0, %v1820
    %v1822 = vrot.slane %v1818, %v1821
    %1823 = vrot.lane.b32.xlu0 %v1807, 126
    %v1824 = vpop.permute.xlu0 %1823
    %1825 = vrot.lane.b32.xlu0 %v1806, 126
    %v1826 = vpop.permute.xlu0 %1825
    %v1829 = vmul.f32 %v1822, %v1824
    %v1830 = vmul.f32 %v1822, %v1826
    %v1831 = vadd.f32 %v1816, %v1829
    %v1832 = vadd.f32 %v1817, %v1830
    %v1833 = vld [vmem:[%s2 + $0x2] sm:$0x1]
    %v1834 = vlaneseq
    %v1835 = vshrl.u32 %v1834, 7
    %v1836 = vsub.s32 0, %v1835
    %v1837 = vrot.slane %v1833, %v1836
    %v1838 = vadd.f32 %v1831, %v1837
    %v1839 = vadd.f32 %v1832, %v1837
    %v1840 = vmax.f32 %v1838, 0.0
    %v1841 = vmax.f32 %v1839, 0.0
    %1844 = vrot.lane.b32.xlu0 %v1840, 10
    %v1845 = vpop.permute.xlu0 %1844
    %1846 = vrot.lane.b32.xlu0 %v1841, 10
    %v1847 = vpop.permute.xlu0 %1846
    %1850 = vrot.lane.b32.xlu0 %v1840, 20
    %v1851 = vpop.permute.xlu0 %1850
    %1852 = vrot.lane.b32.xlu0 %v1841, 20
    %v1853 = vpop.permute.xlu0 %1852
    %1856 = vrot.lane.b32.xlu0 %v1840, 30
    %v1857 = vpop.permute.xlu0 %1856
    %1858 = vrot.lane.b32.xlu0 %v1841, 30
    %v1859 = vpop.permute.xlu0 %1858
    %1862 = vrot.lane.b32.xlu0 %v1840, 40
    %v1863 = vpop.permute.xlu0 %1862
    %1864 = vrot.lane.b32.xlu0 %v1841, 40
    %v1865 = vpop.permute.xlu0 %1864
    %1868 = vrot.lane.b32.xlu0 %v1840, 118
    %v1869 = vpop.permute.xlu0 %1868
    %1870 = vrot.lane.b32.xlu0 %v1841, 118
    %v1871 = vpop.permute.xlu0 %1870
    %vm1874 = vcmask 80896
    %v1875 = vsel %vm1874, %v1840, %v1845
    %v1876 = vsel %vm1874, %v1841, %v1847
    %vm1877 = vcmask 162816
    %v1878 = vsel %vm1877, %v1875, %v1851
    %v1879 = vsel %vm1877, %v1876, %v1853
    %vm1880 = vcmask 244736
    %v1881 = vsel %vm1880, %v1878, %v1857
    %v1882 = vsel %vm1880, %v1879, %v1859
    %vm1883 = vcmask 326656
    %v1884 = vsel %vm1883, %v1881, %v1863
    %v1885 = vsel %vm1883, %v1882, %v1865
    %vm1886 = vcmask 408576
    %v1887 = vsel %vm1886, %v1884, %v1869
    %v1888 = vsel %vm1886, %v1885, %v1871
    %v1889 = vsel %vm1245, %v1887, %v1840
    %v1890 = vsel %vm1245, %v1888, %v1841
    %v1891 = vsel %vm657, %v1889, %v1845
    %v1892 = vsel %vm657, %v1890, %v1847
    %v1893 = vsel %vm82, %v1891, %v1851
    %v1894 = vsel %vm82, %v1892, %v1853
    %vm1895 = vcmask 736256
    %v1896 = vsel %vm1895, %v1893, %v1857
    %v1897 = vsel %vm1895, %v1894, %v1859
    %1898 = vrot.lane.b32.xlu0 %v1840, 116
    %v1899 = vpop.permute.xlu0 %1898
    %1900 = vrot.lane.b32.xlu0 %v1841, 116
    %v1901 = vpop.permute.xlu0 %1900
    %1904 = vrot.lane.b32.xlu0 %v1840, 126
    %v1905 = vpop.permute.xlu0 %1904
    %1906 = vrot.lane.b32.xlu0 %v1841, 126
    %v1907 = vpop.permute.xlu0 %1906
    %1910 = vrot.lane.b32.xlu0 %v1840, 8
    %v1911 = vpop.permute.xlu0 %1910
    %1912 = vrot.lane.b32.xlu0 %v1841, 8
    %v1913 = vpop.permute.xlu0 %1912
    %1916 = vrot.lane.b32.xlu0 %v1840, 18
    %v1917 = vpop.permute.xlu0 %1916
    %1918 = vrot.lane.b32.xlu0 %v1841, 18
    %v1919 = vpop.permute.xlu0 %1918
    %1922 = vrot.lane.b32.xlu0 %v1840, 28
    %v1923 = vpop.permute.xlu0 %1922
    %1924 = vrot.lane.b32.xlu0 %v1841, 28
    %v1925 = vpop.permute.xlu0 %1924
    %1928 = vrot.lane.b32.xlu0 %v1840, 106
    %v1929 = vpop.permute.xlu0 %1928
    %1930 = vrot.lane.b32.xlu0 %v1841, 106
    %v1931 = vpop.permute.xlu0 %1930
    %v1934 = vsel %vm1874, %v1899, %v1905
    %v1935 = vsel %vm1874, %v1901, %v1907
    %v1936 = vsel %vm1877, %v1934, %v1911
    %v1937 = vsel %vm1877, %v1935, %v1913
    %v1938 = vsel %vm1880, %v1936, %v1917
    %v1939 = vsel %vm1880, %v1937, %v1919
    %v1940 = vsel %vm1883, %v1938, %v1923
    %v1941 = vsel %vm1883, %v1939, %v1925
    %v1942 = vsel %vm1886, %v1940, %v1929
    %v1943 = vsel %vm1886, %v1941, %v1931
    %v1944 = vsel %vm1245, %v1942, %v1899
    %v1945 = vsel %vm1245, %v1943, %v1901
    %v1946 = vsel %vm657, %v1944, %v1905
    %v1947 = vsel %vm657, %v1945, %v1907
    %v1948 = vsel %vm82, %v1946, %v1911
    %v1949 = vsel %vm82, %v1947, %v1913
    %v1950 = vsel %vm1895, %v1948, %v1917
    %v1951 = vsel %vm1895, %v1949, %v1919
    %1952 = vrot.lane.b32.xlu0 %v1840, 104
    %v1953 = vpop.permute.xlu0 %1952
    %1954 = vrot.lane.b32.xlu0 %v1841, 104
    %v1955 = vpop.permute.xlu0 %1954
    %1958 = vrot.lane.b32.xlu0 %v1840, 114
    %v1959 = vpop.permute.xlu0 %1958
    %1960 = vrot.lane.b32.xlu0 %v1841, 114
    %v1961 = vpop.permute.xlu0 %1960
    %1964 = vrot.lane.b32.xlu0 %v1840, 124
    %v1965 = vpop.permute.xlu0 %1964
    %1966 = vrot.lane.b32.xlu0 %v1841, 124
    %v1967 = vpop.permute.xlu0 %1966
    %1970 = vrot.lane.b32.xlu0 %v1840, 6
    %v1971 = vpop.permute.xlu0 %1970
    %1972 = vrot.lane.b32.xlu0 %v1841, 6
    %v1973 = vpop.permute.xlu0 %1972
    %1976 = vrot.lane.b32.xlu0 %v1840, 16
    %v1977 = vpop.permute.xlu0 %1976
    %1978 = vrot.lane.b32.xlu0 %v1841, 16
    %v1979 = vpop.permute.xlu0 %1978
    %1982 = vrot.lane.b32.xlu0 %v1840, 94
    %v1983 = vpop.permute.xlu0 %1982
    %1984 = vrot.lane.b32.xlu0 %v1841, 94
    %v1985 = vpop.permute.xlu0 %1984
    %v1988 = vsel %vm1874, %v1953, %v1959
    %v1989 = vsel %vm1874, %v1955, %v1961
    %v1990 = vsel %vm1877, %v1988, %v1965
    %v1991 = vsel %vm1877, %v1989, %v1967
    %v1992 = vsel %vm1880, %v1990, %v1971
    %v1993 = vsel %vm1880, %v1991, %v1973
    %v1994 = vsel %vm1883, %v1992, %v1977
    %v1995 = vsel %vm1883, %v1993, %v1979
    %v1996 = vsel %vm1886, %v1994, %v1983
    %v1997 = vsel %vm1886, %v1995, %v1985
    %v1998 = vsel %vm1245, %v1996, %v1953
    %v1999 = vsel %vm1245, %v1997, %v1955
    %v2000 = vsel %vm657, %v1998, %v1959
    %v2001 = vsel %vm657, %v1999, %v1961
    %v2002 = vsel %vm82, %v2000, %v1965
    %v2003 = vsel %vm82, %v2001, %v1967
    %v2004 = vsel %vm1895, %v2002, %v1971
    %v2005 = vsel %vm1895, %v2003, %v1973
    %2006 = vrot.lane.b32.xlu0 %v1840, 92
    %v2007 = vpop.permute.xlu0 %2006
    %2008 = vrot.lane.b32.xlu0 %v1841, 92
    %v2009 = vpop.permute.xlu0 %2008
    %2012 = vrot.lane.b32.xlu0 %v1840, 102
    %v2013 = vpop.permute.xlu0 %2012
    %2014 = vrot.lane.b32.xlu0 %v1841, 102
    %v2015 = vpop.permute.xlu0 %2014
    %2018 = vrot.lane.b32.xlu0 %v1840, 112
    %v2019 = vpop.permute.xlu0 %2018
    %2020 = vrot.lane.b32.xlu0 %v1841, 112
    %v2021 = vpop.permute.xlu0 %2020
    %2024 = vrot.lane.b32.xlu0 %v1840, 122
    %v2025 = vpop.permute.xlu0 %2024
    %2026 = vrot.lane.b32.xlu0 %v1841, 122
    %v2027 = vpop.permute.xlu0 %2026
    %2030 = vrot.lane.b32.xlu0 %v1840, 4
    %v2031 = vpop.permute.xlu0 %2030
    %2032 = vrot.lane.b32.xlu0 %v1841, 4
    %v2033 = vpop.permute.xlu0 %2032
    %2036 = vrot.lane.b32.xlu0 %v1840, 82
    %v2037 = vpop.permute.xlu0 %2036
    %2038 = vrot.lane.b32.xlu0 %v1841, 82
    %v2039 = vpop.permute.xlu0 %2038
    %v2042 = vsel %vm1874, %v2007, %v2013
    %v2043 = vsel %vm1874, %v2009, %v2015
    %v2044 = vsel %vm1877, %v2042, %v2019
    %v2045 = vsel %vm1877, %v2043, %v2021
    %v2046 = vsel %vm1880, %v2044, %v2025
    %v2047 = vsel %vm1880, %v2045, %v2027
    %v2048 = vsel %vm1883, %v2046, %v2031
    %v2049 = vsel %vm1883, %v2047, %v2033
    %v2050 = vsel %vm1886, %v2048, %v2037
    %v2051 = vsel %vm1886, %v2049, %v2039
    %v2052 = vsel %vm1245, %v2050, %v2007
    %v2053 = vsel %vm1245, %v2051, %v2009
    %v2054 = vsel %vm657, %v2052, %v2013
    %v2055 = vsel %vm657, %v2053, %v2015
    %v2056 = vsel %vm82, %v2054, %v2019
    %v2057 = vsel %vm82, %v2055, %v2021
    %v2058 = vsel %vm1895, %v2056, %v2025
    %v2059 = vsel %vm1895, %v2057, %v2027
    %2060 = vrot.lane.b32.xlu0 %v1840, 80
    %v2061 = vpop.permute.xlu0 %2060
    %2062 = vrot.lane.b32.xlu0 %v1841, 80
    %v2063 = vpop.permute.xlu0 %2062
    %2066 = vrot.lane.b32.xlu0 %v1840, 90
    %v2067 = vpop.permute.xlu0 %2066
    %2068 = vrot.lane.b32.xlu0 %v1841, 90
    %v2069 = vpop.permute.xlu0 %2068
    %2072 = vrot.lane.b32.xlu0 %v1840, 100
    %v2073 = vpop.permute.xlu0 %2072
    %2074 = vrot.lane.b32.xlu0 %v1841, 100
    %v2075 = vpop.permute.xlu0 %2074
    %2078 = vrot.lane.b32.xlu0 %v1840, 110
    %v2079 = vpop.permute.xlu0 %2078
    %2080 = vrot.lane.b32.xlu0 %v1841, 110
    %v2081 = vpop.permute.xlu0 %2080
    %2084 = vrot.lane.b32.xlu0 %v1840, 120
    %v2085 = vpop.permute.xlu0 %2084
    %2086 = vrot.lane.b32.xlu0 %v1841, 120
    %v2087 = vpop.permute.xlu0 %2086
    %2090 = vrot.lane.b32.xlu0 %v1840, 70
    %v2091 = vpop.permute.xlu0 %2090
    %2092 = vrot.lane.b32.xlu0 %v1841, 70
    %v2093 = vpop.permute.xlu0 %2092
    %v2096 = vsel %vm1874, %v2061, %v2067
    %v2097 = vsel %vm1874, %v2063, %v2069
    %v2098 = vsel %vm1877, %v2096, %v2073
    %v2099 = vsel %vm1877, %v2097, %v2075
    %v2100 = vsel %vm1880, %v2098, %v2079
    %v2101 = vsel %vm1880, %v2099, %v2081
    %v2102 = vsel %vm1883, %v2100, %v2085
    %v2103 = vsel %vm1883, %v2101, %v2087
    %v2104 = vsel %vm1886, %v2102, %v2091
    %v2105 = vsel %vm1886, %v2103, %v2093
    %v2106 = vsel %vm1245, %v2104, %v2061
    %v2107 = vsel %vm1245, %v2105, %v2063
    %v2108 = vsel %vm657, %v2106, %v2067
    %v2109 = vsel %vm657, %v2107, %v2069
    %v2110 = vsel %vm82, %v2108, %v2073
    %v2111 = vsel %vm82, %v2109, %v2075
    %v2112 = vsel %vm1895, %v2110, %v2079
    %v2113 = vsel %vm1895, %v2111, %v2081
    %v2114 = vld [vmem:[%s1 + $0x51] sm:$0x1]
    %v2115 = vlaneseq
    %v2116 = vshrl.u32 %v2115, 7
    %v2117 = vsub.s32 0, %v2116
    %v2118 = vrot.slane %v2114, %v2117
    %v2119 = vmul.f32 %v2118, %v1896
    %v2120 = vadd.f32 %v2119, 0.0
    %v2121 = vld [vmem:[%s1 + $0x52] sm:$0x1]
    %v2122 = vlaneseq
    %v2123 = vshrl.u32 %v2122, 7
    %v2124 = vsub.s32 0, %v2123
    %v2125 = vrot.slane %v2121, %v2124
    %2127 = vrot.lane.b32.xlu0 %v1896, 127
    %v2128 = vpop.permute.xlu0 %2127
    %v2130 = vmul.f32 %v2125, %v2128
    %v2131 = vadd.f32 %v2120, %v2130
    %v2132 = vld [vmem:[%s1 + $0x53] sm:$0x1]
    %v2133 = vlaneseq
    %v2134 = vshrl.u32 %v2133, 7
    %v2135 = vsub.s32 0, %v2134
    %v2136 = vrot.slane %v2132, %v2135
    %2137 = vrot.lane.b32.xlu0 %v1896, 126
    %v2138 = vpop.permute.xlu0 %2137
    %v2140 = vmul.f32 %v2136, %v2138
    %v2141 = vadd.f32 %v2131, %v2140
    %v2142 = vld [vmem:[%s1 + $0x54] sm:$0x1]
    %v2143 = vlaneseq
    %v2144 = vshrl.u32 %v2143, 7
    %v2145 = vsub.s32 0, %v2144
    %v2146 = vrot.slane %v2142, %v2145
    %v2147 = vmul.f32 %v2146, %v1896
    %v2148 = vmul.f32 %v2146, %v1897
    %v2151 = vrot.slane %v2147, 1
    %v2152 = vrot.slane %v2148, 1
    %v2153 = vsel %vm235, %v2151, %v2152
    %v2155 = vadd.f32 %v2141, %v2153
    %v2156 = vld [vmem:[%s1 + $0x55] sm:$0x1]
    %v2157 = vlaneseq
    %v2158 = vshrl.u32 %v2157, 7
    %v2159 = vsub.s32 0, %v2158
    %v2160 = vrot.slane %v2156, %v2159
    %v2162 = vrot.slane %v1896, 1
    %v2163 = vrot.slane %v1897, 1
    %v2164 = vsel %vm235, %v2162, %v2163
    %2165 = vrot.lane.b32.xlu0 %v2164, 127
    %v2166 = vpop.permute.xlu0 %2165
    %v2168 = vmul.f32 %v2160, %v2166
    %v2169 = vadd.f32 %v2155, %v2168
    %v2170 = vld [vmem:[%s1 + $0x56] sm:$0x1]
    %v2171 = vlaneseq
    %v2172 = vshrl.u32 %v2171, 7
    %v2173 = vsub.s32 0, %v2172
    %v2174 = vrot.slane %v2170, %v2173
    %2175 = vrot.lane.b32.xlu0 %v2164, 126
    %v2176 = vpop.permute.xlu0 %2175
    %v2178 = vmul.f32 %v2174, %v2176
    %v2179 = vadd.f32 %v2169, %v2178
    %v2180 = vld [vmem:[%s1 + $0x57] sm:$0x1]
    %v2181 = vlaneseq
    %v2182 = vshrl.u32 %v2181, 7
    %v2183 = vsub.s32 0, %v2182
    %v2184 = vrot.slane %v2180, %v2183
    %v2185 = vmul.f32 %v2184, %v1896
    %v2186 = vmul.f32 %v2184, %v1897
    %v2189 = vrot.slane %v2185, 2
    %v2190 = vrot.slane %v2186, 2
    %v2191 = vsel %vm285, %v2189, %v2190
    %v2193 = vadd.f32 %v2179, %v2191
    %v2194 = vld [vmem:[%s1 + $0x58] sm:$0x1]
    %v2195 = vlaneseq
    %v2196 = vshrl.u32 %v2195, 7
    %v2197 = vsub.s32 0, %v2196
    %v2198 = vrot.slane %v2194, %v2197
    %v2199 = vrot.slane %v1896, 2
    %v2200 = vrot.slane %v1897, 2
    %v2201 = vsel %vm285, %v2199, %v2200
    %2202 = vrot.lane.b32.xlu0 %v2201, 127
    %v2203 = vpop.permute.xlu0 %2202
    %v2205 = vmul.f32 %v2198, %v2203
    %v2206 = vadd.f32 %v2193, %v2205
    %v2207 = vld [vmem:[%s1 + $0x59] sm:$0x1]
    %v2208 = vlaneseq
    %v2209 = vshrl.u32 %v2208, 7
    %v2210 = vsub.s32 0, %v2209
    %v2211 = vrot.slane %v2207, %v2210
    %2212 = vrot.lane.b32.xlu0 %v2201, 126
    %v2213 = vpop.permute.xlu0 %2212
    %v2215 = vmul.f32 %v2211, %v2213
    %v2216 = vadd.f32 %v2206, %v2215
    %v2217 = vld [vmem:[%s1 + $0x5a] sm:$0x1]
    %v2218 = vlaneseq
    %v2219 = vshrl.u32 %v2218, 7
    %v2220 = vsub.s32 0, %v2219
    %v2221 = vrot.slane %v2217, %v2220
    %v2222 = vmul.f32 %v2221, %v1950
    %v2223 = vadd.f32 %v2216, %v2222
    %v2224 = vld [vmem:[%s1 + $0x5b] sm:$0x1]
    %v2225 = vlaneseq
    %v2226 = vshrl.u32 %v2225, 7
    %v2227 = vsub.s32 0, %v2226
    %v2228 = vrot.slane %v2224, %v2227
    %2230 = vrot.lane.b32.xlu0 %v1950, 127
    %v2231 = vpop.permute.xlu0 %2230
    %v2233 = vmul.f32 %v2228, %v2231
    %v2234 = vadd.f32 %v2223, %v2233
    %v2235 = vld [vmem:[%s1 + $0x5c] sm:$0x1]
    %v2236 = vlaneseq
    %v2237 = vshrl.u32 %v2236, 7
    %v2238 = vsub.s32 0, %v2237
    %v2239 = vrot.slane %v2235, %v2238
    %2240 = vrot.lane.b32.xlu0 %v1950, 126
    %v2241 = vpop.permute.xlu0 %2240
    %v2243 = vmul.f32 %v2239, %v2241
    %v2244 = vadd.f32 %v2234, %v2243
    %v2245 = vld [vmem:[%s1 + $0x5d] sm:$0x1]
    %v2246 = vlaneseq
    %v2247 = vshrl.u32 %v2246, 7
    %v2248 = vsub.s32 0, %v2247
    %v2249 = vrot.slane %v2245, %v2248
    %v2250 = vmul.f32 %v2249, %v1950
    %v2251 = vmul.f32 %v2249, %v1951
    %v2254 = vrot.slane %v2250, 1
    %v2255 = vrot.slane %v2251, 1
    %v2256 = vsel %vm235, %v2254, %v2255
    %v2258 = vadd.f32 %v2244, %v2256
    %v2259 = vld [vmem:[%s1 + $0x5e] sm:$0x1]
    %v2260 = vlaneseq
    %v2261 = vshrl.u32 %v2260, 7
    %v2262 = vsub.s32 0, %v2261
    %v2263 = vrot.slane %v2259, %v2262
    %v2265 = vrot.slane %v1950, 1
    %v2266 = vrot.slane %v1951, 1
    %v2267 = vsel %vm235, %v2265, %v2266
    %2268 = vrot.lane.b32.xlu0 %v2267, 127
    %v2269 = vpop.permute.xlu0 %2268
    %v2271 = vmul.f32 %v2263, %v2269
    %v2272 = vadd.f32 %v2258, %v2271
    %v2273 = vld [vmem:[%s1 + $0x5f] sm:$0x1]
    %v2274 = vlaneseq
    %v2275 = vshrl.u32 %v2274, 7
    %v2276 = vsub.s32 0, %v2275
    %v2277 = vrot.slane %v2273, %v2276
    %2278 = vrot.lane.b32.xlu0 %v2267, 126
    %v2279 = vpop.permute.xlu0 %2278
    %v2281 = vmul.f32 %v2277, %v2279
    %v2282 = vadd.f32 %v2272, %v2281
    %v2283 = vld [vmem:[%s1 + $0x60] sm:$0x1]
    %v2284 = vlaneseq
    %v2285 = vshrl.u32 %v2284, 7
    %v2286 = vsub.s32 0, %v2285
    %v2287 = vrot.slane %v2283, %v2286
    %v2288 = vmul.f32 %v2287, %v1950
    %v2289 = vmul.f32 %v2287, %v1951
    %v2292 = vrot.slane %v2288, 2
    %v2293 = vrot.slane %v2289, 2
    %v2294 = vsel %vm285, %v2292, %v2293
    %v2296 = vadd.f32 %v2282, %v2294
    %v2297 = vld [vmem:[%s1 + $0x61] sm:$0x1]
    %v2298 = vlaneseq
    %v2299 = vshrl.u32 %v2298, 7
    %v2300 = vsub.s32 0, %v2299
    %v2301 = vrot.slane %v2297, %v2300
    %v2302 = vrot.slane %v1950, 2
    %v2303 = vrot.slane %v1951, 2
    %v2304 = vsel %vm285, %v2302, %v2303
    %2305 = vrot.lane.b32.xlu0 %v2304, 127
    %v2306 = vpop.permute.xlu0 %2305
    %v2308 = vmul.f32 %v2301, %v2306
    %v2309 = vadd.f32 %v2296, %v2308
    %v2310 = vld [vmem:[%s1 + $0x62] sm:$0x1]
    %v2311 = vlaneseq
    %v2312 = vshrl.u32 %v2311, 7
    %v2313 = vsub.s32 0, %v2312
    %v2314 = vrot.slane %v2310, %v2313
    %2315 = vrot.lane.b32.xlu0 %v2304, 126
    %v2316 = vpop.permute.xlu0 %2315
    %v2318 = vmul.f32 %v2314, %v2316
    %v2319 = vadd.f32 %v2309, %v2318
    %v2320 = vld [vmem:[%s1 + $0x63] sm:$0x1]
    %v2321 = vlaneseq
    %v2322 = vshrl.u32 %v2321, 7
    %v2323 = vsub.s32 0, %v2322
    %v2324 = vrot.slane %v2320, %v2323
    %v2325 = vmul.f32 %v2324, %v2004
    %v2326 = vadd.f32 %v2319, %v2325
    %v2327 = vld [vmem:[%s1 + $0x64] sm:$0x1]
    %v2328 = vlaneseq
    %v2329 = vshrl.u32 %v2328, 7
    %v2330 = vsub.s32 0, %v2329
    %v2331 = vrot.slane %v2327, %v2330
    %2333 = vrot.lane.b32.xlu0 %v2004, 127
    %v2334 = vpop.permute.xlu0 %2333
    %v2336 = vmul.f32 %v2331, %v2334
    %v2337 = vadd.f32 %v2326, %v2336
    %v2338 = vld [vmem:[%s1 + $0x65] sm:$0x1]
    %v2339 = vlaneseq
    %v2340 = vshrl.u32 %v2339, 7
    %v2341 = vsub.s32 0, %v2340
    %v2342 = vrot.slane %v2338, %v2341
    %2343 = vrot.lane.b32.xlu0 %v2004, 126
    %v2344 = vpop.permute.xlu0 %2343
    %v2346 = vmul.f32 %v2342, %v2344
    %v2347 = vadd.f32 %v2337, %v2346
    %v2348 = vld [vmem:[%s1 + $0x66] sm:$0x1]
    %v2349 = vlaneseq
    %v2350 = vshrl.u32 %v2349, 7
    %v2351 = vsub.s32 0, %v2350
    %v2352 = vrot.slane %v2348, %v2351
    %v2353 = vmul.f32 %v2352, %v2004
    %v2354 = vmul.f32 %v2352, %v2005
    %v2357 = vrot.slane %v2353, 1
    %v2358 = vrot.slane %v2354, 1
    %v2359 = vsel %vm235, %v2357, %v2358
    %v2361 = vadd.f32 %v2347, %v2359
    %v2362 = vld [vmem:[%s1 + $0x67] sm:$0x1]
    %v2363 = vlaneseq
    %v2364 = vshrl.u32 %v2363, 7
    %v2365 = vsub.s32 0, %v2364
    %v2366 = vrot.slane %v2362, %v2365
    %v2368 = vrot.slane %v2004, 1
    %v2369 = vrot.slane %v2005, 1
    %v2370 = vsel %vm235, %v2368, %v2369
    %2371 = vrot.lane.b32.xlu0 %v2370, 127
    %v2372 = vpop.permute.xlu0 %2371
    %v2374 = vmul.f32 %v2366, %v2372
    %v2375 = vadd.f32 %v2361, %v2374
    %v2376 = vld [vmem:[%s1 + $0x68] sm:$0x1]
    %v2377 = vlaneseq
    %v2378 = vshrl.u32 %v2377, 7
    %v2379 = vsub.s32 0, %v2378
    %v2380 = vrot.slane %v2376, %v2379
    %2381 = vrot.lane.b32.xlu0 %v2370, 126
    %v2382 = vpop.permute.xlu0 %2381
    %v2384 = vmul.f32 %v2380, %v2382
    %v2385 = vadd.f32 %v2375, %v2384
    %v2386 = vld [vmem:[%s1 + $0x69] sm:$0x1]
    %v2387 = vlaneseq
    %v2388 = vshrl.u32 %v2387, 7
    %v2389 = vsub.s32 0, %v2388
    %v2390 = vrot.slane %v2386, %v2389
    %v2391 = vmul.f32 %v2390, %v2004
    %v2392 = vmul.f32 %v2390, %v2005
    %v2395 = vrot.slane %v2391, 2
    %v2396 = vrot.slane %v2392, 2
    %v2397 = vsel %vm285, %v2395, %v2396
    %v2399 = vadd.f32 %v2385, %v2397
    %v2400 = vld [vmem:[%s1 + $0x6a] sm:$0x1]
    %v2401 = vlaneseq
    %v2402 = vshrl.u32 %v2401, 7
    %v2403 = vsub.s32 0, %v2402
    %v2404 = vrot.slane %v2400, %v2403
    %v2405 = vrot.slane %v2004, 2
    %v2406 = vrot.slane %v2005, 2
    %v2407 = vsel %vm285, %v2405, %v2406
    %2408 = vrot.lane.b32.xlu0 %v2407, 127
    %v2409 = vpop.permute.xlu0 %2408
    %v2411 = vmul.f32 %v2404, %v2409
    %v2412 = vadd.f32 %v2399, %v2411
    %v2413 = vld [vmem:[%s1 + $0x6b] sm:$0x1]
    %v2414 = vlaneseq
    %v2415 = vshrl.u32 %v2414, 7
    %v2416 = vsub.s32 0, %v2415
    %v2417 = vrot.slane %v2413, %v2416
    %2418 = vrot.lane.b32.xlu0 %v2407, 126
    %v2419 = vpop.permute.xlu0 %2418
    %v2421 = vmul.f32 %v2417, %v2419
    %v2422 = vadd.f32 %v2412, %v2421
    %v2423 = vld [vmem:[%s1 + $0x6c] sm:$0x1]
    %v2424 = vlaneseq
    %v2425 = vshrl.u32 %v2424, 7
    %v2426 = vsub.s32 0, %v2425
    %v2427 = vrot.slane %v2423, %v2426
    %v2428 = vmul.f32 %v2427, %v2058
    %v2429 = vadd.f32 %v2422, %v2428
    %v2430 = vld [vmem:[%s1 + $0x6d] sm:$0x1]
    %v2431 = vlaneseq
    %v2432 = vshrl.u32 %v2431, 7
    %v2433 = vsub.s32 0, %v2432
    %v2434 = vrot.slane %v2430, %v2433
    %2436 = vrot.lane.b32.xlu0 %v2058, 127
    %v2437 = vpop.permute.xlu0 %2436
    %v2439 = vmul.f32 %v2434, %v2437
    %v2440 = vadd.f32 %v2429, %v2439
    %v2441 = vld [vmem:[%s1 + $0x6e] sm:$0x1]
    %v2442 = vlaneseq
    %v2443 = vshrl.u32 %v2442, 7
    %v2444 = vsub.s32 0, %v2443
    %v2445 = vrot.slane %v2441, %v2444
    %2446 = vrot.lane.b32.xlu0 %v2058, 126
    %v2447 = vpop.permute.xlu0 %2446
    %v2449 = vmul.f32 %v2445, %v2447
    %v2450 = vadd.f32 %v2440, %v2449
    %v2451 = vld [vmem:[%s1 + $0x6f] sm:$0x1]
    %v2452 = vlaneseq
    %v2453 = vshrl.u32 %v2452, 7
    %v2454 = vsub.s32 0, %v2453
    %v2455 = vrot.slane %v2451, %v2454
    %v2456 = vmul.f32 %v2455, %v2058
    %v2457 = vmul.f32 %v2455, %v2059
    %v2460 = vrot.slane %v2456, 1
    %v2461 = vrot.slane %v2457, 1
    %v2462 = vsel %vm235, %v2460, %v2461
    %v2464 = vadd.f32 %v2450, %v2462
    %v2465 = vld [vmem:[%s1 + $0x70] sm:$0x1]
    %v2466 = vlaneseq
    %v2467 = vshrl.u32 %v2466, 7
    %v2468 = vsub.s32 0, %v2467
    %v2469 = vrot.slane %v2465, %v2468
    %v2471 = vrot.slane %v2058, 1
    %v2472 = vrot.slane %v2059, 1
    %v2473 = vsel %vm235, %v2471, %v2472
    %2474 = vrot.lane.b32.xlu0 %v2473, 127
    %v2475 = vpop.permute.xlu0 %2474
    %v2477 = vmul.f32 %v2469, %v2475
    %v2478 = vadd.f32 %v2464, %v2477
    %v2479 = vld [vmem:[%s1 + $0x71] sm:$0x1]
    %v2480 = vlaneseq
    %v2481 = vshrl.u32 %v2480, 7
    %v2482 = vsub.s32 0, %v2481
    %v2483 = vrot.slane %v2479, %v2482
    %2484 = vrot.lane.b32.xlu0 %v2473, 126
    %v2485 = vpop.permute.xlu0 %2484
    %v2487 = vmul.f32 %v2483, %v2485
    %v2488 = vadd.f32 %v2478, %v2487
    %v2489 = vld [vmem:[%s1 + $0x72] sm:$0x1]
    %v2490 = vlaneseq
    %v2491 = vshrl.u32 %v2490, 7
    %v2492 = vsub.s32 0, %v2491
    %v2493 = vrot.slane %v2489, %v2492
    %v2494 = vmul.f32 %v2493, %v2058
    %v2495 = vmul.f32 %v2493, %v2059
    %v2498 = vrot.slane %v2494, 2
    %v2499 = vrot.slane %v2495, 2
    %v2500 = vsel %vm285, %v2498, %v2499
    %v2502 = vadd.f32 %v2488, %v2500
    %v2503 = vld [vmem:[%s1 + $0x73] sm:$0x1]
    %v2504 = vlaneseq
    %v2505 = vshrl.u32 %v2504, 7
    %v2506 = vsub.s32 0, %v2505
    %v2507 = vrot.slane %v2503, %v2506
    %v2508 = vrot.slane %v2058, 2
    %v2509 = vrot.slane %v2059, 2
    %v2510 = vsel %vm285, %v2508, %v2509
    %2511 = vrot.lane.b32.xlu0 %v2510, 127
    %v2512 = vpop.permute.xlu0 %2511
    %v2514 = vmul.f32 %v2507, %v2512
    %v2515 = vadd.f32 %v2502, %v2514
    %v2516 = vld [vmem:[%s1 + $0x74] sm:$0x1]
    %v2517 = vlaneseq
    %v2518 = vshrl.u32 %v2517, 7
    %v2519 = vsub.s32 0, %v2518
    %v2520 = vrot.slane %v2516, %v2519
    %2521 = vrot.lane.b32.xlu0 %v2510, 126
    %v2522 = vpop.permute.xlu0 %2521
    %v2524 = vmul.f32 %v2520, %v2522
    %v2525 = vadd.f32 %v2515, %v2524
    %v2526 = vld [vmem:[%s1 + $0x75] sm:$0x1]
    %v2527 = vlaneseq
    %v2528 = vshrl.u32 %v2527, 7
    %v2529 = vsub.s32 0, %v2528
    %v2530 = vrot.slane %v2526, %v2529
    %v2531 = vmul.f32 %v2530, %v2112
    %v2532 = vadd.f32 %v2525, %v2531
    %v2533 = vld [vmem:[%s1 + $0x76] sm:$0x1]
    %v2534 = vlaneseq
    %v2535 = vshrl.u32 %v2534, 7
    %v2536 = vsub.s32 0, %v2535
    %v2537 = vrot.slane %v2533, %v2536
    %2539 = vrot.lane.b32.xlu0 %v2112, 127
    %v2540 = vpop.permute.xlu0 %2539
    %v2542 = vmul.f32 %v2537, %v2540
    %v2543 = vadd.f32 %v2532, %v2542
    %v2544 = vld [vmem:[%s1 + $0x77] sm:$0x1]
    %v2545 = vlaneseq
    %v2546 = vshrl.u32 %v2545, 7
    %v2547 = vsub.s32 0, %v2546
    %v2548 = vrot.slane %v2544, %v2547
    %2549 = vrot.lane.b32.xlu0 %v2112, 126
    %v2550 = vpop.permute.xlu0 %2549
    %v2552 = vmul.f32 %v2548, %v2550
    %v2553 = vadd.f32 %v2543, %v2552
    %v2554 = vld [vmem:[%s1 + $0x78] sm:$0x1]
    %v2555 = vlaneseq
    %v2556 = vshrl.u32 %v2555, 7
    %v2557 = vsub.s32 0, %v2556
    %v2558 = vrot.slane %v2554, %v2557
    %v2559 = vmul.f32 %v2558, %v2112
    %v2560 = vmul.f32 %v2558, %v2113
    %v2563 = vrot.slane %v2559, 1
    %v2564 = vrot.slane %v2560, 1
    %v2565 = vsel %vm235, %v2563, %v2564
    %v2567 = vadd.f32 %v2553, %v2565
    %v2568 = vld [vmem:[%s1 + $0x79] sm:$0x1]
    %v2569 = vlaneseq
    %v2570 = vshrl.u32 %v2569, 7
    %v2571 = vsub.s32 0, %v2570
    %v2572 = vrot.slane %v2568, %v2571
    %v2574 = vrot.slane %v2112, 1
    %v2575 = vrot.slane %v2113, 1
    %v2576 = vsel %vm235, %v2574, %v2575
    %2577 = vrot.lane.b32.xlu0 %v2576, 127
    %v2578 = vpop.permute.xlu0 %2577
    %v2580 = vmul.f32 %v2572, %v2578
    %v2581 = vadd.f32 %v2567, %v2580
    %v2582 = vld [vmem:[%s1 + $0x7a] sm:$0x1]
    %v2583 = vlaneseq
    %v2584 = vshrl.u32 %v2583, 7
    %v2585 = vsub.s32 0, %v2584
    %v2586 = vrot.slane %v2582, %v2585
    %2587 = vrot.lane.b32.xlu0 %v2576, 126
    %v2588 = vpop.permute.xlu0 %2587
    %v2590 = vmul.f32 %v2586, %v2588
    %v2591 = vadd.f32 %v2581, %v2590
    %v2592 = vld [vmem:[%s1 + $0x7b] sm:$0x1]
    %v2593 = vlaneseq
    %v2594 = vshrl.u32 %v2593, 7
    %v2595 = vsub.s32 0, %v2594
    %v2596 = vrot.slane %v2592, %v2595
    %v2597 = vmul.f32 %v2596, %v2112
    %v2598 = vmul.f32 %v2596, %v2113
    %v2601 = vrot.slane %v2597, 2
    %v2602 = vrot.slane %v2598, 2
    %v2603 = vsel %vm285, %v2601, %v2602
    %v2605 = vadd.f32 %v2591, %v2603
    %v2606 = vld [vmem:[%s1 + $0x7c] sm:$0x1]
    %v2607 = vlaneseq
    %v2608 = vshrl.u32 %v2607, 7
    %v2609 = vsub.s32 0, %v2608
    %v2610 = vrot.slane %v2606, %v2609
    %v2611 = vrot.slane %v2112, 2
    %v2612 = vrot.slane %v2113, 2
    %v2613 = vsel %vm285, %v2611, %v2612
    %2614 = vrot.lane.b32.xlu0 %v2613, 127
    %v2615 = vpop.permute.xlu0 %2614
    %v2617 = vmul.f32 %v2610, %v2615
    %v2618 = vadd.f32 %v2605, %v2617
    %v2619 = vld [vmem:[%s1 + $0x7d] sm:$0x1]
    %v2620 = vlaneseq
    %v2621 = vshrl.u32 %v2620, 7
    %v2622 = vsub.s32 0, %v2621
    %v2623 = vrot.slane %v2619, %v2622
    %2624 = vrot.lane.b32.xlu0 %v2613, 126
    %v2625 = vpop.permute.xlu0 %2624
    %v2627 = vmul.f32 %v2623, %v2625
    %v2628 = vadd.f32 %v2618, %v2627
    %v2629 = vld [vmem:[%s2 + $0x3] sm:$0x1]
    %v2630 = vlaneseq
    %v2631 = vshrl.u32 %v2630, 7
    %v2632 = vsub.s32 0, %v2631
    %v2633 = vrot.slane %v2629, %v2632
    %v2634 = vadd.f32 %v2628, %v2633
    %v2635 = vmax.f32 %v2634, 0.0
    %2637 = vrot.lane.b32.xlu0 %v2635, 127
    %v2638 = vpop.permute.xlu0 %2637
    %v2640 = vmax.f32 %v2635, %v2638
    %v2642 = vrot.slane %v2640, 1
    %v2644 = vmax.f32 %v2640, %v2642
    %v2646 = vrot.slane %v2644, 1
    %v2648 = vrot.slane %v2644, 2
    %v2650 = vrot.slane %v2644, 3
    %vm2652 = vcmask 1040384
    %v2653 = vsel %vm2652, %v2644, %v2646
    %vm2654 = vcmask 1041408
    %v2655 = vsel %vm2654, %v2653, %v2648
    %vm2656 = vcmask 1042432
    %v2657 = vsel %vm2656, %v2655, %v2650
    %v2658 = vld [vmem:[%s3] sm:$0xff]
    %v2659 = vld [vmem:[%s3 + $0x8] sm:$0xff]
    %v2660 = vld [vmem:[%s3 + $0x10] sm:$0xff]
    %v2661 = vld [vmem:[%s3 + $0x18] sm:$0xff]
    %v2662 = vld [vmem:[%s3 + $0x20] sm:$0xff]
    %v2663 = vld [vmem:[%s3 + $0x28] sm:$0xff]
    %v2664 = vld [vmem:[%s3 + $0x30] sm:$0xff]
    %v2665 = vld [vmem:[%s3 + $0x38] sm:$0xff]
    %v2666 = vld [vmem:[%s3 + $0x40] sm:$0xff]
    %v2667 = vld [vmem:[%s3 + $0x48] sm:$0xff]
    %v2668 = vld [vmem:[%s3 + $0x50] sm:$0xff]
    %v2669 = vld [vmem:[%s3 + $0x58] sm:$0xff]
    %v2670 = vld [vmem:[%s3 + $0x60] sm:$0x1]
    %vm2671 = vcmask 793600
    %v2673 = vsel %vm2671, %v2657, 0
    %v2676 = vsel %vm2652, %v2670, 0
    %2678 = vmatprep.subr.mxu0 0.0
    %2679 = vmatpush1.msra.mxu0 0.0
    %2680 = vmatprep.subr.mxu0 0.0
    %2681 = vmatpush1.msra.mxu0 0.0
    %2682 = vmatprep.subr.mxu0 0.0
    %2683 = vmatpush1.msra.mxu0 0.0
    %2684 = vmatprep.subr.mxu0 0.0
    %2685 = vmatpush1.msra.mxu0 %v2676
    %2686 = vmatprep.subr.mxu0 0.0
    %2687 = vmatpush1.msra.mxu0 %v2669
    %2688 = vmatprep.subr.mxu0 0.0
    %2689 = vmatpush1.msra.mxu0 %v2668
    %2690 = vmatprep.subr.mxu0 0.0
    %2691 = vmatpush1.msra.mxu0 %v2667
    %2692 = vmatprep.subr.mxu0 0.0
    %2693 = vmatpush1.msra.mxu0 %v2666
    %2694 = vmatprep.subr.mxu0 0.0
    %2695 = vmatpush1.msra.mxu0 %v2665
    %2696 = vmatprep.subr.mxu0 0.0
    %2697 = vmatpush1.msra.mxu0 %v2664
    %2698 = vmatprep.subr.mxu0 0.0
    %2699 = vmatpush1.msra.mxu0 %v2663
    %2700 = vmatprep.subr.mxu0 0.0
    %2701 = vmatpush1.msra.mxu0 %v2662
    %2702 = vmatprep.subr.mxu0 0.0
    %2703 = vmatpush1.msra.mxu0 %v2661
    %2704 = vmatprep.subr.mxu0 0.0
    %2705 = vmatpush1.msra.mxu0 %v2660
    %2706 = vmatprep.subr.mxu0 0.0
    %2707 = vmatpush1.msra.mxu0 %v2659
    %2708 = vmatprep.subr.mxu0 0.0
    %2709 = vmatpush1.msra.mxu0 %v2658
    %2710 = vmatprep.subr.mxu0 0.0
    %2711 = vmatpush2.msra.mxu0 0.0
    %2712 = vmatprep.subr.mxu0 0.0
    %2713 = vmatpush2.msra.mxu0 0.0
    %2714 = vmatprep.subr.mxu0 0.0
    %2715 = vmatpush2.msra.mxu0 0.0
    %2716 = vmatprep.subr.mxu0 0.0
    %2717 = vmatpush2.msra.mxu0 0.0
    %2718 = vmatprep.subr.mxu0 0.0
    %2719 = vmatpush2.msra.mxu0 0.0
    %2720 = vmatprep.subr.mxu0 0.0
    %2721 = vmatpush2.msra.mxu0 0.0
    %2722 = vmatprep.subr.mxu0 0.0
    %2723 = vmatpush2.msra.mxu0 0.0
    %2724 = vmatprep.subr.mxu0 0.0
    %2725 = vmatpush2.msra.mxu0 0.0
    %2726 = vmatprep.subr.mxu0 0.0
    %2727 = vmatpush2.msra.mxu0 0.0
    %2728 = vmatprep.subr.mxu0 0.0
    %2729 = vmatpush2.msra.mxu0 0.0
    %2730 = vmatprep.subr.mxu0 0.0
    %2731 = vmatpush2.msra.mxu0 0.0
    %2732 = vmatprep.subr.mxu0 0.0
    %2733 = vmatpush2.msra.mxu0 0.0
    %2734 = vmatprep.subr.mxu0 0.0
    %2735 = vmatpush2.msra.mxu0 0.0
    %2736 = vmatprep.subr.mxu0 0.0
    %2737 = vmatpush2.msra.mxu0 0.0
    %2738 = vmatprep.subr.mxu0 0.0
    %2739 = vmatpush2.msra.mxu0 0.0
    %2740 = vmatprep.subr.mxu0 0.0
    %2741 = vmatpush2.msra.mxu0 0.0
    %2742 = vmatprep.mubr.f32.mxu0 0.0
    %2743 = vmatmul.mubr.f32.gmra.mxu0 %v2673
    %v2744 = vpop.f32.mrf.mxu0
    %v2745 = vadd.f32 0.0, %v2744
    %v2746 = vpop.f32.mrf.mxu0
    %2747 = vdwg.mxu0
    %vm2748 = vcmask 322560
    %2749 = vst.msk [vmem:[%s4] sm:$0xf] %vm2748, %v2745
    // Predicated region
    $region22: #{model_forward.1} parent=1 // pred_check
      _
    $region23: #{model_forward.1} parent=1 // pred_check_branch
      %2751 = sbr.rel (0) target = $region25
    $region24: #{model_forward.1} parent=1 // pred_region
      _
    $region25: #{model_forward.1} parent=1 // pred_fallthru
      _
    // Predicated region
    $region26: #{model_forward.1} parent=1 // pred_check
      _
    $region27: #{model_forward.1} parent=1 // pred_check_branch
      %2753 = sbr.rel (0) target = $region29
    $region28: #{model_forward.1} parent=1 // pred_region
      _
    $region29: #{model_forward.1} parent=1 // pred_fallthru
      _
    %2754 = vsyncpa [#allocation3], 1

</llo_original>
